<compile_context>
chip_gen: v6e
topology: v6e:2x2x1
jax: 0.10.0
libtpu: 0.0.40
codegen_flags: <defaults>
</compile_context>

<pallas_src>
import math
import functools

import jax
import jax.numpy as jnp
import numpy as np
from jax import lax
from jax.experimental import pallas as pl
from jax.experimental.pallas import tpu as pltpu


def _layer_norm(x, gamma, beta, eps=1e-12):
    # TF-style layernorm: eps inside the sqrt.  rsqrt -> EUP slot.
    u = jnp.mean(x, axis=-1, keepdims=True)
    xc = x - u
    s = jnp.mean(xc * xc, axis=-1, keepdims=True)
    return gamma * (xc * lax.rsqrt(s + eps)) + beta


def _gelu(x):
    # HuggingFace exact gelu: x * 0.5 * (1 + erf(x / sqrt(2))).
    # (tanh-approx gelu would move this from the VALU to the EUP slot, but
    #  would change numerics vs. the PyTorch reference, so we keep erf.)
    return x * 0.5 * (1.0 + lax.erf(x / math.sqrt(2.0)))


def encoder_layer_kernel(
    x_ref, mask_ref,
    wqkv_ref, bqkv_ref,
    wo_ref, bo_ref, g1_ref, be1_ref,
    w1_ref, bf1_ref, w2_ref, bf2_ref, g2_ref, be2_ref,
    o_ref,
    *, n_heads,
):
    x = x_ref[0]                      # (S, D) f32
    S, D = x.shape
    W = D // n_heads

    x_bf = x.astype(jnp.bfloat16)

    # ---- fused QKV projection: one MXU call, f32 accumulation ---------------
    # (1/sqrt(W) is already folded into the Q columns of wqkv / bqkv)
    qkv = jnp.dot(x_bf, wqkv_ref[...],
                  preferred_element_type=jnp.float32) + bqkv_ref[...]   # (S,3D)

    # ---- head split: one bf16 cast + one relayout per tensor ---------------
    qkv_bf = qkv.astype(jnp.bfloat16)

    def heads(t):                                   # (S, D) -> (H, S, W)
        return jnp.transpose(t.reshape(S, n_heads, W), (1, 0, 2))

    q_h = heads(qkv_bf[:, :D])
    k_h = heads(qkv_bf[:, D:2 * D])
    v_h = heads(qkv_bf[:, 2 * D:])

    # ---- head-batched attention ---------------------------------------------
    scores = jnp.einsum('hqw,hkw->hqk', q_h, k_h,
                        preferred_element_type=jnp.float32)             # (H,S,S)
    scores = scores + (-10000.0) * (1.0 - mask_ref[...])                # (1,1,S)

    m = jnp.max(scores, axis=-1, keepdims=True)
    e = jnp.exp(scores - m)
    denom = jnp.sum(e, axis=-1, keepdims=True)
    p = e * pl.reciprocal(denom, approx=True)     # softmax (attn dropout = id)

    ctx = jnp.einsum('hqk,hkw->hqw', p.astype(jnp.bfloat16), v_h,
                     preferred_element_type=jnp.float32)                # (H,S,W)

    # ---- merge heads + single output projection + residual + norm1 ---------
    ctx_sd = jnp.transpose(ctx.astype(jnp.bfloat16), (1, 0, 2)).reshape(S, D)
    proj = jnp.dot(ctx_sd, wo_ref[...],
                   preferred_element_type=jnp.float32) + bo_ref[...]
    h1 = _layer_norm(x + proj, g1_ref[...], be1_ref[...])

    # ---- position-wise FFN + residual + norm2 --------------------------------
    ff = jnp.dot(h1.astype(jnp.bfloat16), w1_ref[...],
                 preferred_element_type=jnp.float32) + bf1_ref[...]
    ff = _gelu(ff)
    ff = jnp.dot(ff.astype(jnp.bfloat16), w2_ref[...],
                 preferred_element_type=jnp.float32) + bf2_ref[...]
    h2 = _layer_norm(h1 + ff, g2_ref[...], be2_ref[...])

    o_ref[0] = h2.astype(o_ref.dtype)


def _vmem_limit_bytes():
    # Re-derive the scoped-VMEM request per chip generation; never ask for
    # more than ~5/8 of physical VMEM (v7x: 64 MiB -> 40 MiB request).
    cap = 128 * 1024 * 1024
    try:
        cap = int(getattr(pltpu.get_tpu_info(), "vmem_capacity_bytes", cap))
    except Exception:
        pass
    return int(min(48 * 1024 * 1024, (cap * 5) // 8))


def encoder_layer(x, mask, params, *, n_heads):
    B, S, D = x.shape
    Dff = params["w1"].shape[1]
    W = D // n_heads
    scale = 1.0 / math.sqrt(W)

    # Host-side repacking (static weights, done once):
    #   * fused QKV weight with the attention scale folded into the Q columns
    #   * bf16 matmul weights (halves weight DMA bytes); f32 biases/LN params
    wqkv = jnp.concatenate(
        [params["wq"] * scale, params["wk"], params["wv"]],
        axis=1).astype(jnp.bfloat16)
    bqkv = jnp.concatenate(
        [params["bq"] * scale, params["bk"], params["bv"]],
        axis=1).astype(jnp.float32)
    wo = params["wo"].astype(jnp.bfloat16)
    w1 = params["w1"].astype(jnp.bfloat16)
    w2 = params["w2"].astype(jnp.bfloat16)
    mask3 = mask.reshape(B, 1, S).astype(jnp.float32)   # layout-clean blocks

    kernel = functools.partial(encoder_layer_kernel, n_heads=n_heads)

    # Advisory cost estimate for XLA scheduling around the custom call.
    flops = 2 * B * S * (4 * D * D + 2 * S * D + 2 * D * Dff)
    transcendentals = B * S * (n_heads * S + Dff)
    bytes_accessed = int(2 * x.size * x.dtype.itemsize + mask3.size * 4
                         + 2 * (wqkv.size + wo.size + w1.size + w2.size)
                         + 4 * (3 * D + Dff + 6 * D))

    operands = (x, mask3, wqkv, bqkv, wo, params["bo"],
                params["gamma1"], params["beta1"],
                w1, params["b1"], w2, params["b2"],
                params["gamma2"], params["beta2"])

    # TODO(synk): for full-size BERT (S>=512, Dff=3072) on v7x (64 MiB VMEM),
    # add a query-tile grid axis with flash-style online softmax over key
    # tiles (tq~256) plus a Dff-chunk accumulator axis for the FFN, and make
    # the query-tile axis the "parallel" axis so small-batch serving still
    # fills both TensorCores.  v5e/v6e (128 MiB VMEM) keep this fused form.

    def build_call(single_buffer):
        def inv_spec(shape):
            # Grid-invariant (weight/bias) block: constant index_map over the
            # batch grid -> nothing to double-buffer; single-buffer it.
            idx = lambda b, _n=len(shape): (0,) * _n
            if single_buffer:
                return pl.BlockSpec(shape, idx,
                                    pipeline_mode=pl.Buffered(buffer_count=1))
            return pl.BlockSpec(shape, idx)

        in_specs = [
            pl.BlockSpec((1, S, D), lambda b: (b, 0, 0)),   # x
            pl.BlockSpec((1, 1, S), lambda b: (b, 0, 0)),   # mask (B,1,S)
            inv_spec((D, 3 * D)), inv_spec((1, 3 * D)),     # wqkv, bqkv
            inv_spec((D, D)), inv_spec((1, D)),             # wo, bo
            inv_spec((1, D)), inv_spec((1, D)),             # gamma1, beta1
            inv_spec((D, Dff)), inv_spec((1, Dff)),         # w1, b1
            inv_spec((Dff, D)), inv_spec((1, D)),           # w2, b2
            inv_spec((1, D)), inv_spec((1, D)),             # gamma2, beta2
        ]

        return pl.pallas_call(
            kernel,
            out_shape=jax.ShapeDtypeStruct((B, S, D), x.dtype),
            grid_spec=pltpu.PrefetchScalarGridSpec(
                num_scalar_prefetch=0,
                grid=(B,),
                in_specs=in_specs,
                out_specs=pl.BlockSpec((1, S, D), lambda b: (b, 0, 0)),
            ),
            compiler_params=pltpu.CompilerParams(
                dimension_semantics=("parallel",),   # shard batch over TCs
                vmem_limit_bytes=_vmem_limit_bytes(),
            ),
            cost_estimate=pl.CostEstimate(
                flops=flops,
                transcendentals=transcendentals,
                bytes_accessed=bytes_accessed),
        )

    try:
        return build_call(single_buffer=True)(*operands)
    except Exception:
        # Portability guard: older Pallas builds without BlockSpec.pipeline_mode
        # / pl.Buffered support fall back to default double-buffering.
        return build_call(single_buffer=False)(*operands)


def reference_encoder_layer(x, mask, params, *, n_heads):
    """Pure-JAX f32 reference (mirrors the PyTorch forward in eval mode)."""
    B, S, D = x.shape
    W = D // n_heads

    def ln(y, g, b, eps=1e-12):
        u = jnp.mean(y, -1, keepdims=True)
        s = jnp.mean((y - u) ** 2, -1, keepdims=True)
        return g * ((y - u) / jnp.sqrt(s + eps)) + b

    q = x @ params["wq"] + params["bq"]
    k = x @ params["wk"] + params["bk"]
    v = x @ params["wv"] + params["bv"]
    q, k, v = (t.reshape(B, S, n_heads, W).transpose(0, 2, 1, 3) for t in (q, k, v))
    scores = q @ jnp.swapaxes(k, -2, -1) / np.sqrt(W)
    scores = scores - 10000.0 * (1.0 - mask[:, None, None, :])
    p = jax.nn.softmax(scores, axis=-1)
    h = (p @ v).transpose(0, 2, 1, 3).reshape(B, S, D)
    h1 = ln(x + (h @ params["wo"] + params["bo"]), params["gamma1"], params["beta1"])
    ff = h1 @ params["w1"] + params["b1"]
    ff = ff * 0.5 * (1.0 + lax.erf(ff / math.sqrt(2.0)))
    ff = ff @ params["w2"] + params["b2"]
    return ln(h1 + ff, params["gamma2"], params["beta2"])


if __name__ == "__main__":
    B, S, D, H, DFF = 2, 8, 32, 4, 64

    key = jax.random.PRNGKey(0)
    keys = jax.random.split(key, 8)

    def init(k, shape, scale=0.02):
        return (scale * jax.random.normal(k, shape)).astype(jnp.float32)

    params = {
        "wq": init(keys[0], (D, D)), "bq": jnp.zeros((1, D), jnp.float32),
        "wk": init(keys[1], (D, D)), "bk": jnp.zeros((1, D), jnp.float32),
        "wv": init(keys[2], (D, D)), "bv": jnp.zeros((1, D), jnp.float32),
        "wo": init(keys[3], (D, D)), "bo": jnp.zeros((1, D), jnp.float32),
        "gamma1": jnp.ones((1, D), jnp.float32), "beta1": jnp.zeros((1, D), jnp.float32),
        "w1": init(keys[4], (D, DFF)), "b1": jnp.zeros((1, DFF), jnp.float32),
        "w2": init(keys[5], (DFF, D)), "b2": jnp.zeros((1, D), jnp.float32),
        "gamma2": jnp.ones((1, D), jnp.float32), "beta2": jnp.zeros((1, D), jnp.float32),
    }

    x = jax.random.normal(keys[6], (B, S, D), dtype=jnp.float32)
    # mask: first batch has last 2 positions padded, second is fully valid
    mask = jnp.array(
        [[1, 1, 1, 1, 1, 1, 0, 0],
         [1, 1, 1, 1, 1, 1, 1, 1]], dtype=jnp.float32)

    out = encoder_layer(x, mask, params, n_heads=H)
    out = jax.block_until_ready(out)

    ref = reference_encoder_layer(
        x, mask, {k: (v[0] if v.ndim == 2 and v.shape[0] == 1 else v)
                  for k, v in params.items()},
        n_heads=H)
    # Matmul operands are bf16 (f32 accumulation), so compare against the f32
    # reference with a bf16-appropriate tolerance.
    np.testing.assert_allclose(np.asarray(out), np.asarray(ref),
                               rtol=2e-2, atol=2e-2)

    print("KERNEL_OK")
</pallas_src>

<mosaic_0001>
module attributes {stable_mosaic.version = 11 : i64} {
  func.func @encoder_layer_kernel(%arg0: i32, %arg1: memref<1x8x32xf32, #tpu.memory_space<vmem>>, %arg2: memref<1x1x8xf32, #tpu.memory_space<vmem>>, %arg3: memref<32x96xbf16, #tpu.memory_space<vmem>>, %arg4: memref<1x96xf32, #tpu.memory_space<vmem>>, %arg5: memref<32x32xbf16, #tpu.memory_space<vmem>>, %arg6: memref<1x32xf32, #tpu.memory_space<vmem>>, %arg7: memref<1x32xf32, #tpu.memory_space<vmem>>, %arg8: memref<1x32xf32, #tpu.memory_space<vmem>>, %arg9: memref<32x64xbf16, #tpu.memory_space<vmem>>, %arg10: memref<1x64xf32, #tpu.memory_space<vmem>>, %arg11: memref<64x32xbf16, #tpu.memory_space<vmem>>, %arg12: memref<1x32xf32, #tpu.memory_space<vmem>>, %arg13: memref<1x32xf32, #tpu.memory_space<vmem>>, %arg14: memref<1x32xf32, #tpu.memory_space<vmem>>, %arg15: memref<1x8x32xf32, #tpu.memory_space<vmem>>) attributes {dimension_semantics = [#tpu.dimension_semantics<parallel>], iteration_bounds = array<i64: 2>, scalar_prefetch = 0 : i64, scratch_operands = 0 : i64, tpu.core_type = #tpu.core_type<tc>, window_params = [{transform_indices = @transform_0, window_bounds = array<i64: 1, 8, 32>}, {transform_indices = @transform_1, window_bounds = array<i64: 1, 1, 8>}, {pipeline_mode = #tpu.pipeline_mode<synchronous>, transform_indices = @transform_2, window_bounds = array<i64: 32, 96>}, {pipeline_mode = #tpu.pipeline_mode<synchronous>, transform_indices = @transform_3, window_bounds = array<i64: 1, 96>}, {pipeline_mode = #tpu.pipeline_mode<synchronous>, transform_indices = @transform_4, window_bounds = array<i64: 32, 32>}, {pipeline_mode = #tpu.pipeline_mode<synchronous>, transform_indices = @transform_5, window_bounds = array<i64: 1, 32>}, {pipeline_mode = #tpu.pipeline_mode<synchronous>, transform_indices = @transform_6, window_bounds = array<i64: 1, 32>}, {pipeline_mode = #tpu.pipeline_mode<synchronous>, transform_indices = @transform_7, window_bounds = array<i64: 1, 32>}, {pipeline_mode = #tpu.pipeline_mode<synchronous>, transform_indices = @transform_8, window_bounds = array<i64: 32, 64>}, {pipeline_mode = #tpu.pipeline_mode<synchronous>, transform_indices = @transform_9, window_bounds = array<i64: 1, 64>}, {pipeline_mode = #tpu.pipeline_mode<synchronous>, transform_indices = @transform_10, window_bounds = array<i64: 64, 32>}, {pipeline_mode = #tpu.pipeline_mode<synchronous>, transform_indices = @transform_11, window_bounds = array<i64: 1, 32>}, {pipeline_mode = #tpu.pipeline_mode<synchronous>, transform_indices = @transform_12, window_bounds = array<i64: 1, 32>}, {pipeline_mode = #tpu.pipeline_mode<synchronous>, transform_indices = @transform_13, window_bounds = array<i64: 1, 32>}, {transform_indices = @transform_14, window_bounds = array<i64: 1, 8, 32>}]} {
    %c0 = arith.constant 0 : index
    %c0_0 = arith.constant 0 : index
    %c0_1 = arith.constant 0 : index
    %0 = vector.load %arg1[%c0, %c0_0, %c0_1] : memref<1x8x32xf32, #tpu.memory_space<vmem>>, vector<1x8x32xf32>
    %1 = vector.shape_cast %0 : vector<1x8x32xf32> to vector<8x32xf32>
    %2 = arith.truncf %1 : vector<8x32xf32> to vector<8x32xbf16>
    %c0_2 = arith.constant 0 : index
    %c0_3 = arith.constant 0 : index
    %3 = vector.load %arg3[%c0_2, %c0_3] : memref<32x96xbf16, #tpu.memory_space<vmem>>, vector<32x96xbf16>
    %cst = arith.constant dense<0.000000e+00> : vector<8x96xf32>
    %4 = tpu.matmul %2, %3, %cst {dimension_numbers = #tpu.dot_dimension_numbers<[1], [0], [0], [1], [0, 0, 1, 1], [], []>} : vector<8x32xbf16>, vector<32x96xbf16>, vector<8x96xf32> -> vector<8x96xf32>
    %c0_4 = arith.constant 0 : index
    %c0_5 = arith.constant 0 : index
    %5 = vector.load %arg4[%c0_4, %c0_5] : memref<1x96xf32, #tpu.memory_space<vmem>>, vector<1x96xf32>
    %6 = vector.broadcast %5 : vector<1x96xf32> to vector<8x96xf32>
    %7 = arith.addf %4, %6 : vector<8x96xf32>
    %8 = arith.truncf %7 : vector<8x96xf32> to vector<8x96xbf16>
    %9 = vector.extract_strided_slice %8 {offsets = [0, 0], sizes = [8, 32], strides = [1, 1]} : vector<8x96xbf16> to vector<8x32xbf16>
    %10 = vector.shape_cast %9 : vector<8x32xbf16> to vector<8x4x8xbf16>
    %11 = tpu.transpose %10, [1, 0, 2] : vector<8x4x8xbf16> -> vector<4x8x8xbf16>
    %12 = vector.extract_strided_slice %8 {offsets = [0, 32], sizes = [8, 32], strides = [1, 1]} : vector<8x96xbf16> to vector<8x32xbf16>
    %13 = vector.shape_cast %12 : vector<8x32xbf16> to vector<8x4x8xbf16>
    %14 = tpu.transpose %13, [1, 0, 2] : vector<8x4x8xbf16> -> vector<4x8x8xbf16>
    %15 = vector.extract_strided_slice %8 {offsets = [0, 64], sizes = [8, 32], strides = [1, 1]} : vector<8x96xbf16> to vector<8x32xbf16>
    %16 = vector.shape_cast %15 : vector<8x32xbf16> to vector<8x4x8xbf16>
    %17 = tpu.transpose %16, [1, 0, 2] : vector<8x4x8xbf16> -> vector<4x8x8xbf16>
    "tpu.trace_start"() <{level = 10 : i32, message = "hqw,hkw->hqk"}> : () -> ()
    %cst_6 = arith.constant dense<0.000000e+00> : vector<4x8x8xf32>
    %18 = tpu.matmul %11, %14, %cst_6 {dimension_numbers = #tpu.dot_dimension_numbers<[2], [2], [1], [1], [0, 0, 0, 1, 1, 1], [0], [0]>} : vector<4x8x8xbf16>, vector<4x8x8xbf16>, vector<4x8x8xf32> -> vector<4x8x8xf32>
    "tpu.trace_stop"() : () -> ()
    %c0_7 = arith.constant 0 : index
    %c0_8 = arith.constant 0 : index
    %c0_9 = arith.constant 0 : index
    %19 = vector.load %arg2[%c0_7, %c0_8, %c0_9] : memref<1x1x8xf32, #tpu.memory_space<vmem>>, vector<1x1x8xf32>
    %cst_10 = arith.constant 1.000000e+00 : f32
    %20 = vector.broadcast %cst_10 : f32 to vector<1x1x8xf32>
    %21 = arith.subf %20, %19 : vector<1x1x8xf32>
    %cst_11 = arith.constant -1.000000e+04 : f32
    %22 = vector.broadcast %cst_11 : f32 to vector<1x1x8xf32>
    %23 = arith.mulf %22, %21 : vector<1x1x8xf32>
    %24 = vector.broadcast %23 : vector<1x1x8xf32> to vector<4x8x8xf32>
    %25 = arith.addf %18, %24 : vector<4x8x8xf32>
    %cst_12 = arith.constant dense<0xFF800000> : vector<4x8xf32>
    %26 = vector.multi_reduction <maximumf>, %25, %cst_12 [2] : vector<4x8x8xf32> to vector<4x8xf32>
    %27 = vector.shape_cast %26 : vector<4x8xf32> to vector<4x8x1xf32>
    %28 = vector.broadcast %27 : vector<4x8x1xf32> to vector<4x8x8xf32>
    %29 = arith.subf %25, %28 : vector<4x8x8xf32>
    %30 = math.exp %29 : vector<4x8x8xf32>
    %cst_13 = arith.constant dense<0.000000e+00> : vector<4x8xf32>
    %31 = vector.multi_reduction <add>, %30, %cst_13 [2] : vector<4x8x8xf32> to vector<4x8xf32>
    %32 = vector.shape_cast %31 : vector<4x8xf32> to vector<4x8x1xf32>
    %33 = tpu.reciprocal %32 {approx = true} : vector<4x8x1xf32> -> vector<4x8x1xf32>
    %34 = vector.broadcast %33 : vector<4x8x1xf32> to vector<4x8x8xf32>
    %35 = arith.mulf %30, %34 : vector<4x8x8xf32>
    %36 = arith.truncf %35 : vector<4x8x8xf32> to vector<4x8x8xbf16>
    "tpu.trace_start"() <{level = 10 : i32, message = "hqk,hkw->hqw"}> : () -> ()
    %cst_14 = arith.constant dense<0.000000e+00> : vector<4x8x8xf32>
    %37 = tpu.matmul %36, %17, %cst_14 {dimension_numbers = #tpu.dot_dimension_numbers<[2], [1], [1], [2], [0, 0, 0, 1, 1, 2], [0], [0]>} : vector<4x8x8xbf16>, vector<4x8x8xbf16>, vector<4x8x8xf32> -> vector<4x8x8xf32>
    "tpu.trace_stop"() : () -> ()
    %38 = arith.truncf %37 : vector<4x8x8xf32> to vector<4x8x8xbf16>
    %39 = tpu.transpose %38, [1, 0, 2] : vector<4x8x8xbf16> -> vector<8x4x8xbf16>
    %40 = vector.shape_cast %39 : vector<8x4x8xbf16> to vector<8x32xbf16>
    %c0_15 = arith.constant 0 : index
    %c0_16 = arith.constant 0 : index
    %41 = vector.load %arg5[%c0_15, %c0_16] : memref<32x32xbf16, #tpu.memory_space<vmem>>, vector<32x32xbf16>
    %cst_17 = arith.constant dense<0.000000e+00> : vector<8x32xf32>
    %42 = tpu.matmul %40, %41, %cst_17 {dimension_numbers = #tpu.dot_dimension_numbers<[1], [0], [0], [1], [0, 0, 1, 1], [], []>} : vector<8x32xbf16>, vector<32x32xbf16>, vector<8x32xf32> -> vector<8x32xf32>
    %c0_18 = arith.constant 0 : index
    %c0_19 = arith.constant 0 : index
    %43 = vector.load %arg6[%c0_18, %c0_19] : memref<1x32xf32, #tpu.memory_space<vmem>>, vector<1x32xf32>
    %44 = vector.broadcast %43 : vector<1x32xf32> to vector<8x32xf32>
    %45 = arith.addf %42, %44 : vector<8x32xf32>
    %46 = arith.addf %1, %45 : vector<8x32xf32>
    %c0_20 = arith.constant 0 : index
    %c0_21 = arith.constant 0 : index
    %47 = vector.load %arg7[%c0_20, %c0_21] : memref<1x32xf32, #tpu.memory_space<vmem>>, vector<1x32xf32>
    %c0_22 = arith.constant 0 : index
    %c0_23 = arith.constant 0 : index
    %48 = vector.load %arg8[%c0_22, %c0_23] : memref<1x32xf32, #tpu.memory_space<vmem>>, vector<1x32xf32>
    %cst_24 = arith.constant dense<0.000000e+00> : vector<8xf32>
    %49 = vector.multi_reduction <add>, %46, %cst_24 [1] : vector<8x32xf32> to vector<8xf32>
    %50 = vector.shape_cast %49 : vector<8xf32> to vector<8x1xf32>
    %cst_25 = arith.constant 3.200000e+01 : f32
    %51 = vector.broadcast %cst_25 : f32 to vector<8x1xf32>
    %52 = arith.divf %50, %51 : vector<8x1xf32>
    %53 = vector.broadcast %52 : vector<8x1xf32> to vector<8x32xf32>
    %54 = arith.subf %46, %53 : vector<8x32xf32>
    %55 = arith.mulf %54, %54 : vector<8x32xf32>
    %cst_26 = arith.constant dense<0.000000e+00> : vector<8xf32>
    %56 = vector.multi_reduction <add>, %55, %cst_26 [1] : vector<8x32xf32> to vector<8xf32>
    %57 = vector.shape_cast %56 : vector<8xf32> to vector<8x1xf32>
    %cst_27 = arith.constant 3.200000e+01 : f32
    %58 = vector.broadcast %cst_27 : f32 to vector<8x1xf32>
    %59 = arith.divf %57, %58 : vector<8x1xf32>
    %cst_28 = arith.constant 9.99999996E-13 : f32
    %60 = vector.broadcast %cst_28 : f32 to vector<8x1xf32>
    %61 = arith.addf %59, %60 : vector<8x1xf32>
    %62 = math.rsqrt %61 : vector<8x1xf32>
    %63 = vector.broadcast %62 : vector<8x1xf32> to vector<8x32xf32>
    %64 = arith.mulf %54, %63 : vector<8x32xf32>
    %65 = vector.broadcast %47 : vector<1x32xf32> to vector<8x32xf32>
    %66 = arith.mulf %65, %64 : vector<8x32xf32>
    %67 = vector.broadcast %48 : vector<1x32xf32> to vector<8x32xf32>
    %68 = arith.addf %66, %67 : vector<8x32xf32>
    %69 = arith.truncf %68 : vector<8x32xf32> to vector<8x32xbf16>
    %c0_29 = arith.constant 0 : index
    %c0_30 = arith.constant 0 : index
    %70 = vector.load %arg9[%c0_29, %c0_30] : memref<32x64xbf16, #tpu.memory_space<vmem>>, vector<32x64xbf16>
    %cst_31 = arith.constant dense<0.000000e+00> : vector<8x64xf32>
    %71 = tpu.matmul %69, %70, %cst_31 {dimension_numbers = #tpu.dot_dimension_numbers<[1], [0], [0], [1], [0, 0, 1, 1], [], []>} : vector<8x32xbf16>, vector<32x64xbf16>, vector<8x64xf32> -> vector<8x64xf32>
    %c0_32 = arith.constant 0 : index
    %c0_33 = arith.constant 0 : index
    %72 = vector.load %arg10[%c0_32, %c0_33] : memref<1x64xf32, #tpu.memory_space<vmem>>, vector<1x64xf32>
    %73 = vector.broadcast %72 : vector<1x64xf32> to vector<8x64xf32>
    %74 = arith.addf %71, %73 : vector<8x64xf32>
    %cst_34 = arith.constant 5.000000e-01 : f32
    %75 = vector.broadcast %cst_34 : f32 to vector<8x64xf32>
    %76 = arith.mulf %74, %75 : vector<8x64xf32>
    %cst_35 = arith.constant 1.41421354 : f32
    %77 = vector.broadcast %cst_35 : f32 to vector<8x64xf32>
    %78 = arith.divf %74, %77 : vector<8x64xf32>
    %79 = math.erf %78 : vector<8x64xf32>
    %cst_36 = arith.constant 1.000000e+00 : f32
    %80 = vector.broadcast %cst_36 : f32 to vector<8x64xf32>
    %81 = arith.addf %80, %79 : vector<8x64xf32>
    %82 = arith.mulf %76, %81 : vector<8x64xf32>
    %83 = arith.truncf %82 : vector<8x64xf32> to vector<8x64xbf16>
    %c0_37 = arith.constant 0 : index
    %c0_38 = arith.constant 0 : index
    %84 = vector.load %arg11[%c0_37, %c0_38] : memref<64x32xbf16, #tpu.memory_space<vmem>>, vector<64x32xbf16>
    %cst_39 = arith.constant dense<0.000000e+00> : vector<8x32xf32>
    %85 = tpu.matmul %83, %84, %cst_39 {dimension_numbers = #tpu.dot_dimension_numbers<[1], [0], [0], [1], [0, 0, 1, 1], [], []>} : vector<8x64xbf16>, vector<64x32xbf16>, vector<8x32xf32> -> vector<8x32xf32>
    %c0_40 = arith.constant 0 : index
    %c0_41 = arith.constant 0 : index
    %86 = vector.load %arg12[%c0_40, %c0_41] : memref<1x32xf32, #tpu.memory_space<vmem>>, vector<1x32xf32>
    %87 = vector.broadcast %86 : vector<1x32xf32> to vector<8x32xf32>
    %88 = arith.addf %85, %87 : vector<8x32xf32>
    %89 = arith.addf %68, %88 : vector<8x32xf32>
    %c0_42 = arith.constant 0 : index
    %c0_43 = arith.constant 0 : index
    %90 = vector.load %arg13[%c0_42, %c0_43] : memref<1x32xf32, #tpu.memory_space<vmem>>, vector<1x32xf32>
    %c0_44 = arith.constant 0 : index
    %c0_45 = arith.constant 0 : index
    %91 = vector.load %arg14[%c0_44, %c0_45] : memref<1x32xf32, #tpu.memory_space<vmem>>, vector<1x32xf32>
    %cst_46 = arith.constant dense<0.000000e+00> : vector<8xf32>
    %92 = vector.multi_reduction <add>, %89, %cst_46 [1] : vector<8x32xf32> to vector<8xf32>
    %93 = vector.shape_cast %92 : vector<8xf32> to vector<8x1xf32>
    %cst_47 = arith.constant 3.200000e+01 : f32
    %94 = vector.broadcast %cst_47 : f32 to vector<8x1xf32>
    %95 = arith.divf %93, %94 : vector<8x1xf32>
    %96 = vector.broadcast %95 : vector<8x1xf32> to vector<8x32xf32>
    %97 = arith.subf %89, %96 : vector<8x32xf32>
    %98 = arith.mulf %97, %97 : vector<8x32xf32>
    %cst_48 = arith.constant dense<0.000000e+00> : vector<8xf32>
    %99 = vector.multi_reduction <add>, %98, %cst_48 [1] : vector<8x32xf32> to vector<8xf32>
    %100 = vector.shape_cast %99 : vector<8xf32> to vector<8x1xf32>
    %cst_49 = arith.constant 3.200000e+01 : f32
    %101 = vector.broadcast %cst_49 : f32 to vector<8x1xf32>
    %102 = arith.divf %100, %101 : vector<8x1xf32>
    %cst_50 = arith.constant 9.99999996E-13 : f32
    %103 = vector.broadcast %cst_50 : f32 to vector<8x1xf32>
    %104 = arith.addf %102, %103 : vector<8x1xf32>
    %105 = math.rsqrt %104 : vector<8x1xf32>
    %106 = vector.broadcast %105 : vector<8x1xf32> to vector<8x32xf32>
    %107 = arith.mulf %97, %106 : vector<8x32xf32>
    %108 = vector.broadcast %90 : vector<1x32xf32> to vector<8x32xf32>
    %109 = arith.mulf %108, %107 : vector<8x32xf32>
    %110 = vector.broadcast %91 : vector<1x32xf32> to vector<8x32xf32>
    %111 = arith.addf %109, %110 : vector<8x32xf32>
    %c0_51 = arith.constant 0 : index
    %c0_52 = arith.constant 0 : index
    %c0_53 = arith.constant 0 : index
    %112 = vector.load %arg15[%c0_51, %c0_52, %c0_53] : memref<1x8x32xf32, #tpu.memory_space<vmem>>, vector<1x8x32xf32>
    %113 = vector.shape_cast %112 : vector<1x8x32xf32> to vector<8x32xf32>
    %114 = vector.shape_cast %111 : vector<8x32xf32> to vector<1x8x32xf32>
    tpu.vector_store %arg15[%c0_51, %c0_52, %c0_53], %114 {strides = array<i32>} : memref<1x8x32xf32, #tpu.memory_space<vmem>>, vector<1x8x32xf32>,
    return
  }
  func.func @transform_0(%arg0: i32) -> (i32, i32, i32) {
    %c0_i32 = arith.constant 0 : i32
    %c0_i32_0 = arith.constant 0 : i32
    %c0_i32_1 = arith.constant 0 : i32
    return %arg0, %c0_i32, %c0_i32_0 : i32, i32, i32
  }
  func.func @transform_1(%arg0: i32) -> (i32, i32, i32) {
    %c0_i32 = arith.constant 0 : i32
    %c0_i32_0 = arith.constant 0 : i32
    %c0_i32_1 = arith.constant 0 : i32
    return %arg0, %c0_i32, %c0_i32_0 : i32, i32, i32
  }
  func.func @transform_2(%arg0: i32) -> (i32, i32) {
    %c0_i32 = arith.constant 0 : i32
    %c0_i32_0 = arith.constant 0 : i32
    %c0_i32_1 = arith.constant 0 : i32
    return %c0_i32, %c0_i32_0 : i32, i32
  }
  func.func @transform_3(%arg0: i32) -> (i32, i32) {
    %c0_i32 = arith.constant 0 : i32
    %c0_i32_0 = arith.constant 0 : i32
    %c0_i32_1 = arith.constant 0 : i32
    return %c0_i32, %c0_i32_0 : i32, i32
  }
  func.func @transform_4(%arg0: i32) -> (i32, i32) {
    %c0_i32 = arith.constant 0 : i32
    %c0_i32_0 = arith.constant 0 : i32
    %c0_i32_1 = arith.constant 0 : i32
    return %c0_i32, %c0_i32_0 : i32, i32
  }
  func.func @transform_5(%arg0: i32) -> (i32, i32) {
    %c0_i32 = arith.constant 0 : i32
    %c0_i32_0 = arith.constant 0 : i32
    %c0_i32_1 = arith.constant 0 : i32
    return %c0_i32, %c0_i32_0 : i32, i32
  }
  func.func @transform_6(%arg0: i32) -> (i32, i32) {
    %c0_i32 = arith.constant 0 : i32
    %c0_i32_0 = arith.constant 0 : i32
    %c0_i32_1 = arith.constant 0 : i32
    return %c0_i32, %c0_i32_0 : i32, i32
  }
  func.func @transform_7(%arg0: i32) -> (i32, i32) {
    %c0_i32 = arith.constant 0 : i32
    %c0_i32_0 = arith.constant 0 : i32
    %c0_i32_1 = arith.constant 0 : i32
    return %c0_i32, %c0_i32_0 : i32, i32
  }
  func.func @transform_8(%arg0: i32) -> (i32, i32) {
    %c0_i32 = arith.constant 0 : i32
    %c0_i32_0 = arith.constant 0 : i32
    %c0_i32_1 = arith.constant 0 : i32
    return %c0_i32, %c0_i32_0 : i32, i32
  }
  func.func @transform_9(%arg0: i32) -> (i32, i32) {
    %c0_i32 = arith.constant 0 : i32
    %c0_i32_0 = arith.constant 0 : i32
    %c0_i32_1 = arith.constant 0 : i32
    return %c0_i32, %c0_i32_0 : i32, i32
  }
  func.func @transform_10(%arg0: i32) -> (i32, i32) {
    %c0_i32 = arith.constant 0 : i32
    %c0_i32_0 = arith.constant 0 : i32
    %c0_i32_1 = arith.constant 0 : i32
    return %c0_i32, %c0_i32_0 : i32, i32
  }
  func.func @transform_11(%arg0: i32) -> (i32, i32) {
    %c0_i32 = arith.constant 0 : i32
    %c0_i32_0 = arith.constant 0 : i32
    %c0_i32_1 = arith.constant 0 : i32
    return %c0_i32, %c0_i32_0 : i32, i32
  }
  func.func @transform_12(%arg0: i32) -> (i32, i32) {
    %c0_i32 = arith.constant 0 : i32
    %c0_i32_0 = arith.constant 0 : i32
    %c0_i32_1 = arith.constant 0 : i32
    return %c0_i32, %c0_i32_0 : i32, i32
  }
  func.func @transform_13(%arg0: i32) -> (i32, i32) {
    %c0_i32 = arith.constant 0 : i32
    %c0_i32_0 = arith.constant 0 : i32
    %c0_i32_1 = arith.constant 0 : i32
    return %c0_i32, %c0_i32_0 : i32, i32
  }
  func.func @transform_14(%arg0: i32) -> (i32, i32, i32) {
    %c0_i32 = arith.constant 0 : i32
    %c0_i32_0 = arith.constant 0 : i32
    %c0_i32_1 = arith.constant 0 : i32
    return %arg0, %c0_i32, %c0_i32_0 : i32, i32, i32
  }
}

module attributes {stable_mosaic.version = 11 : i64} {
  func.func @encoder_layer_kernel(%arg0: i32, %arg1: memref<1x8x32xf32, #tpu.memory_space<vmem>>, %arg2: memref<1x1x8xf32, #tpu.memory_space<vmem>>, %arg3: memref<32x96xbf16, #tpu.memory_space<vmem>>, %arg4: memref<1x96xf32, #tpu.memory_space<vmem>>, %arg5: memref<32x32xbf16, #tpu.memory_space<vmem>>, %arg6: memref<1x32xf32, #tpu.memory_space<vmem>>, %arg7: memref<1x32xf32, #tpu.memory_space<vmem>>, %arg8: memref<1x32xf32, #tpu.memory_space<vmem>>, %arg9: memref<32x64xbf16, #tpu.memory_space<vmem>>, %arg10: memref<1x64xf32, #tpu.memory_space<vmem>>, %arg11: memref<64x32xbf16, #tpu.memory_space<vmem>>, %arg12: memref<1x32xf32, #tpu.memory_space<vmem>>, %arg13: memref<1x32xf32, #tpu.memory_space<vmem>>, %arg14: memref<1x32xf32, #tpu.memory_space<vmem>>, %arg15: memref<1x8x32xf32, #tpu.memory_space<vmem>>) attributes {dimension_semantics = [#tpu.dimension_semantics<parallel>], iteration_bounds = array<i64: 2>, scalar_prefetch = 0 : i64, scratch_operands = 0 : i64, tpu.core_type = #tpu.core_type<tc>, window_params = [{transform_indices = @transform_0, window_bounds = array<i64: 1, 8, 32>}, {transform_indices = @transform_1, window_bounds = array<i64: 1, 1, 8>}, {pipeline_mode = #tpu.pipeline_mode<synchronous>, transform_indices = @transform_2, window_bounds = array<i64: 32, 96>}, {pipeline_mode = #tpu.pipeline_mode<synchronous>, transform_indices = @transform_3, window_bounds = array<i64: 1, 96>}, {pipeline_mode = #tpu.pipeline_mode<synchronous>, transform_indices = @transform_4, window_bounds = array<i64: 32, 32>}, {pipeline_mode = #tpu.pipeline_mode<synchronous>, transform_indices = @transform_5, window_bounds = array<i64: 1, 32>}, {pipeline_mode = #tpu.pipeline_mode<synchronous>, transform_indices = @transform_6, window_bounds = array<i64: 1, 32>}, {pipeline_mode = #tpu.pipeline_mode<synchronous>, transform_indices = @transform_7, window_bounds = array<i64: 1, 32>}, {pipeline_mode = #tpu.pipeline_mode<synchronous>, transform_indices = @transform_8, window_bounds = array<i64: 32, 64>}, {pipeline_mode = #tpu.pipeline_mode<synchronous>, transform_indices = @transform_9, window_bounds = array<i64: 1, 64>}, {pipeline_mode = #tpu.pipeline_mode<synchronous>, transform_indices = @transform_10, window_bounds = array<i64: 64, 32>}, {pipeline_mode = #tpu.pipeline_mode<synchronous>, transform_indices = @transform_11, window_bounds = array<i64: 1, 32>}, {pipeline_mode = #tpu.pipeline_mode<synchronous>, transform_indices = @transform_12, window_bounds = array<i64: 1, 32>}, {pipeline_mode = #tpu.pipeline_mode<synchronous>, transform_indices = @transform_13, window_bounds = array<i64: 1, 32>}, {transform_indices = @transform_14, window_bounds = array<i64: 1, 8, 32>}]} {
    %c0 = arith.constant 0 : index
    %c0_0 = arith.constant 0 : index
    %c0_1 = arith.constant 0 : index
    %0 = vector.load %arg1[%c0, %c0_0, %c0_1] : memref<1x8x32xf32, #tpu.memory_space<vmem>>, vector<1x8x32xf32>
    %1 = vector.shape_cast %0 : vector<1x8x32xf32> to vector<8x32xf32>
    %2 = arith.truncf %1 : vector<8x32xf32> to vector<8x32xbf16>
    %c0_2 = arith.constant 0 : index
    %c0_3 = arith.constant 0 : index
    %3 = vector.load %arg3[%c0_2, %c0_3] : memref<32x96xbf16, #tpu.memory_space<vmem>>, vector<32x96xbf16>
    %cst = arith.constant dense<0.000000e+00> : vector<8x96xf32>
    %4 = tpu.matmul %2, %3, %cst {dimension_numbers = #tpu.dot_dimension_numbers<[1], [0], [0], [1], [0, 0, 1, 1], [], []>} : vector<8x32xbf16>, vector<32x96xbf16>, vector<8x96xf32> -> vector<8x96xf32>
    %c0_4 = arith.constant 0 : index
    %c0_5 = arith.constant 0 : index
    %5 = vector.load %arg4[%c0_4, %c0_5] : memref<1x96xf32, #tpu.memory_space<vmem>>, vector<1x96xf32>
    %6 = vector.broadcast %5 : vector<1x96xf32> to vector<8x96xf32>
    %7 = arith.addf %4, %6 : vector<8x96xf32>
    %8 = arith.truncf %7 : vector<8x96xf32> to vector<8x96xbf16>
    %9 = vector.extract_strided_slice %8 {offsets = [0, 0], sizes = [8, 32], strides = [1, 1]} : vector<8x96xbf16> to vector<8x32xbf16>
    %10 = vector.shape_cast %9 : vector<8x32xbf16> to vector<8x4x8xbf16>
    %11 = tpu.transpose %10, [1, 0, 2] : vector<8x4x8xbf16> -> vector<4x8x8xbf16>
    %12 = vector.extract_strided_slice %8 {offsets = [0, 32], sizes = [8, 32], strides = [1, 1]} : vector<8x96xbf16> to vector<8x32xbf16>
    %13 = vector.shape_cast %12 : vector<8x32xbf16> to vector<8x4x8xbf16>
    %14 = tpu.transpose %13, [1, 0, 2] : vector<8x4x8xbf16> -> vector<4x8x8xbf16>
    %15 = vector.extract_strided_slice %8 {offsets = [0, 64], sizes = [8, 32], strides = [1, 1]} : vector<8x96xbf16> to vector<8x32xbf16>
    %16 = vector.shape_cast %15 : vector<8x32xbf16> to vector<8x4x8xbf16>
    %17 = tpu.transpose %16, [1, 0, 2] : vector<8x4x8xbf16> -> vector<4x8x8xbf16>
    "tpu.trace_start"() <{level = 10 : i32, message = "hqw,hkw->hqk"}> : () -> ()
    %cst_6 = arith.constant dense<0.000000e+00> : vector<4x8x8xf32>
    %18 = tpu.matmul %11, %14, %cst_6 {dimension_numbers = #tpu.dot_dimension_numbers<[2], [2], [1], [1], [0, 0, 0, 1, 1, 1], [0], [0]>} : vector<4x8x8xbf16>, vector<4x8x8xbf16>, vector<4x8x8xf32> -> vector<4x8x8xf32>
    "tpu.trace_stop"() : () -> ()
    %c0_7 = arith.constant 0 : index
    %c0_8 = arith.constant 0 : index
    %c0_9 = arith.constant 0 : index
    %19 = vector.load %arg2[%c0_7, %c0_8, %c0_9] : memref<1x1x8xf32, #tpu.memory_space<vmem>>, vector<1x1x8xf32>
    %cst_10 = arith.constant 1.000000e+00 : f32
    %20 = vector.broadcast %cst_10 : f32 to vector<1x1x8xf32>
    %21 = arith.subf %20, %19 : vector<1x1x8xf32>
    %cst_11 = arith.constant -1.000000e+04 : f32
    %22 = vector.broadcast %cst_11 : f32 to vector<1x1x8xf32>
    %23 = arith.mulf %22, %21 : vector<1x1x8xf32>
    %24 = vector.broadcast %23 : vector<1x1x8xf32> to vector<4x8x8xf32>
    %25 = arith.addf %18, %24 : vector<4x8x8xf32>
    %cst_12 = arith.constant dense<0xFF800000> : vector<4x8xf32>
    %26 = vector.multi_reduction <maximumf>, %25, %cst_12 [2] : vector<4x8x8xf32> to vector<4x8xf32>
    %27 = vector.shape_cast %26 : vector<4x8xf32> to vector<4x8x1xf32>
    %28 = vector.broadcast %27 : vector<4x8x1xf32> to vector<4x8x8xf32>
    %29 = arith.subf %25, %28 : vector<4x8x8xf32>
    %30 = math.exp %29 : vector<4x8x8xf32>
    %cst_13 = arith.constant dense<0.000000e+00> : vector<4x8xf32>
    %31 = vector.multi_reduction <add>, %30, %cst_13 [2] : vector<4x8x8xf32> to vector<4x8xf32>
    %32 = vector.shape_cast %31 : vector<4x8xf32> to vector<4x8x1xf32>
    %33 = tpu.reciprocal %32 {approx = true} : vector<4x8x1xf32> -> vector<4x8x1xf32>
    %34 = vector.broadcast %33 : vector<4x8x1xf32> to vector<4x8x8xf32>
    %35 = arith.mulf %30, %34 : vector<4x8x8xf32>
    %36 = arith.truncf %35 : vector<4x8x8xf32> to vector<4x8x8xbf16>
    "tpu.trace_start"() <{level = 10 : i32, message = "hqk,hkw->hqw"}> : () -> ()
    %cst_14 = arith.constant dense<0.000000e+00> : vector<4x8x8xf32>
    %37 = tpu.matmul %36, %17, %cst_14 {dimension_numbers = #tpu.dot_dimension_numbers<[2], [1], [1], [2], [0, 0, 0, 1, 1, 2], [0], [0]>} : vector<4x8x8xbf16>, vector<4x8x8xbf16>, vector<4x8x8xf32> -> vector<4x8x8xf32>
    "tpu.trace_stop"() : () -> ()
    %38 = arith.truncf %37 : vector<4x8x8xf32> to vector<4x8x8xbf16>
    %39 = tpu.transpose %38, [1, 0, 2] : vector<4x8x8xbf16> -> vector<8x4x8xbf16>
    %40 = vector.shape_cast %39 : vector<8x4x8xbf16> to vector<8x32xbf16>
    %c0_15 = arith.constant 0 : index
    %c0_16 = arith.constant 0 : index
    %41 = vector.load %arg5[%c0_15, %c0_16] : memref<32x32xbf16, #tpu.memory_space<vmem>>, vector<32x32xbf16>
    %cst_17 = arith.constant dense<0.000000e+00> : vector<8x32xf32>
    %42 = tpu.matmul %40, %41, %cst_17 {dimension_numbers = #tpu.dot_dimension_numbers<[1], [0], [0], [1], [0, 0, 1, 1], [], []>} : vector<8x32xbf16>, vector<32x32xbf16>, vector<8x32xf32> -> vector<8x32xf32>
    %c0_18 = arith.constant 0 : index
    %c0_19 = arith.constant 0 : index
    %43 = vector.load %arg6[%c0_18, %c0_19] : memref<1x32xf32, #tpu.memory_space<vmem>>, vector<1x32xf32>
    %44 = vector.broadcast %43 : vector<1x32xf32> to vector<8x32xf32>
    %45 = arith.addf %42, %44 : vector<8x32xf32>
    %46 = arith.addf %1, %45 : vector<8x32xf32>
    %c0_20 = arith.constant 0 : index
    %c0_21 = arith.constant 0 : index
    %47 = vector.load %arg7[%c0_20, %c0_21] : memref<1x32xf32, #tpu.memory_space<vmem>>, vector<1x32xf32>
    %c0_22 = arith.constant 0 : index
    %c0_23 = arith.constant 0 : index
    %48 = vector.load %arg8[%c0_22, %c0_23] : memref<1x32xf32, #tpu.memory_space<vmem>>, vector<1x32xf32>
    %cst_24 = arith.constant dense<0.000000e+00> : vector<8xf32>
    %49 = vector.multi_reduction <add>, %46, %cst_24 [1] : vector<8x32xf32> to vector<8xf32>
    %50 = vector.shape_cast %49 : vector<8xf32> to vector<8x1xf32>
    %cst_25 = arith.constant 3.200000e+01 : f32
    %51 = vector.broadcast %cst_25 : f32 to vector<8x1xf32>
    %52 = arith.divf %50, %51 : vector<8x1xf32>
    %53 = vector.broadcast %52 : vector<8x1xf32> to vector<8x32xf32>
    %54 = arith.subf %46, %53 : vector<8x32xf32>
    %55 = arith.mulf %54, %54 : vector<8x32xf32>
    %cst_26 = arith.constant dense<0.000000e+00> : vector<8xf32>
    %56 = vector.multi_reduction <add>, %55, %cst_26 [1] : vector<8x32xf32> to vector<8xf32>
    %57 = vector.shape_cast %56 : vector<8xf32> to vector<8x1xf32>
    %cst_27 = arith.constant 3.200000e+01 : f32
    %58 = vector.broadcast %cst_27 : f32 to vector<8x1xf32>
    %59 = arith.divf %57, %58 : vector<8x1xf32>
    %cst_28 = arith.constant 9.99999996E-13 : f32
    %60 = vector.broadcast %cst_28 : f32 to vector<8x1xf32>
    %61 = arith.addf %59, %60 : vector<8x1xf32>
    %62 = math.rsqrt %61 : vector<8x1xf32>
    %63 = vector.broadcast %62 : vector<8x1xf32> to vector<8x32xf32>
    %64 = arith.mulf %54, %63 : vector<8x32xf32>
    %65 = vector.broadcast %47 : vector<1x32xf32> to vector<8x32xf32>
    %66 = arith.mulf %65, %64 : vector<8x32xf32>
    %67 = vector.broadcast %48 : vector<1x32xf32> to vector<8x32xf32>
    %68 = arith.addf %66, %67 : vector<8x32xf32>
    %69 = arith.truncf %68 : vector<8x32xf32> to vector<8x32xbf16>
    %c0_29 = arith.constant 0 : index
    %c0_30 = arith.constant 0 : index
    %70 = vector.load %arg9[%c0_29, %c0_30] : memref<32x64xbf16, #tpu.memory_space<vmem>>, vector<32x64xbf16>
    %cst_31 = arith.constant dense<0.000000e+00> : vector<8x64xf32>
    %71 = tpu.matmul %69, %70, %cst_31 {dimension_numbers = #tpu.dot_dimension_numbers<[1], [0], [0], [1], [0, 0, 1, 1], [], []>} : vector<8x32xbf16>, vector<32x64xbf16>, vector<8x64xf32> -> vector<8x64xf32>
    %c0_32 = arith.constant 0 : index
    %c0_33 = arith.constant 0 : index
    %72 = vector.load %arg10[%c0_32, %c0_33] : memref<1x64xf32, #tpu.memory_space<vmem>>, vector<1x64xf32>
    %73 = vector.broadcast %72 : vector<1x64xf32> to vector<8x64xf32>
    %74 = arith.addf %71, %73 : vector<8x64xf32>
    %cst_34 = arith.constant 5.000000e-01 : f32
    %75 = vector.broadcast %cst_34 : f32 to vector<8x64xf32>
    %76 = arith.mulf %74, %75 : vector<8x64xf32>
    %cst_35 = arith.constant 1.41421354 : f32
    %77 = vector.broadcast %cst_35 : f32 to vector<8x64xf32>
    %78 = arith.divf %74, %77 : vector<8x64xf32>
    %79 = math.erf %78 : vector<8x64xf32>
    %cst_36 = arith.constant 1.000000e+00 : f32
    %80 = vector.broadcast %cst_36 : f32 to vector<8x64xf32>
    %81 = arith.addf %80, %79 : vector<8x64xf32>
    %82 = arith.mulf %76, %81 : vector<8x64xf32>
    %83 = arith.truncf %82 : vector<8x64xf32> to vector<8x64xbf16>
    %c0_37 = arith.constant 0 : index
    %c0_38 = arith.constant 0 : index
    %84 = vector.load %arg11[%c0_37, %c0_38] : memref<64x32xbf16, #tpu.memory_space<vmem>>, vector<64x32xbf16>
    %cst_39 = arith.constant dense<0.000000e+00> : vector<8x32xf32>
    %85 = tpu.matmul %83, %84, %cst_39 {dimension_numbers = #tpu.dot_dimension_numbers<[1], [0], [0], [1], [0, 0, 1, 1], [], []>} : vector<8x64xbf16>, vector<64x32xbf16>, vector<8x32xf32> -> vector<8x32xf32>
    %c0_40 = arith.constant 0 : index
    %c0_41 = arith.constant 0 : index
    %86 = vector.load %arg12[%c0_40, %c0_41] : memref<1x32xf32, #tpu.memory_space<vmem>>, vector<1x32xf32>
    %87 = vector.broadcast %86 : vector<1x32xf32> to vector<8x32xf32>
    %88 = arith.addf %85, %87 : vector<8x32xf32>
    %89 = arith.addf %68, %88 : vector<8x32xf32>
    %c0_42 = arith.constant 0 : index
    %c0_43 = arith.constant 0 : index
    %90 = vector.load %arg13[%c0_42, %c0_43] : memref<1x32xf32, #tpu.memory_space<vmem>>, vector<1x32xf32>
    %c0_44 = arith.constant 0 : index
    %c0_45 = arith.constant 0 : index
    %91 = vector.load %arg14[%c0_44, %c0_45] : memref<1x32xf32, #tpu.memory_space<vmem>>, vector<1x32xf32>
    %cst_46 = arith.constant dense<0.000000e+00> : vector<8xf32>
    %92 = vector.multi_reduction <add>, %89, %cst_46 [1] : vector<8x32xf32> to vector<8xf32>
    %93 = vector.shape_cast %92 : vector<8xf32> to vector<8x1xf32>
    %cst_47 = arith.constant 3.200000e+01 : f32
    %94 = vector.broadcast %cst_47 : f32 to vector<8x1xf32>
    %95 = arith.divf %93, %94 : vector<8x1xf32>
    %96 = vector.broadcast %95 : vector<8x1xf32> to vector<8x32xf32>
    %97 = arith.subf %89, %96 : vector<8x32xf32>
    %98 = arith.mulf %97, %97 : vector<8x32xf32>
    %cst_48 = arith.constant dense<0.000000e+00> : vector<8xf32>
    %99 = vector.multi_reduction <add>, %98, %cst_48 [1] : vector<8x32xf32> to vector<8xf32>
    %100 = vector.shape_cast %99 : vector<8xf32> to vector<8x1xf32>
    %cst_49 = arith.constant 3.200000e+01 : f32
    %101 = vector.broadcast %cst_49 : f32 to vector<8x1xf32>
    %102 = arith.divf %100, %101 : vector<8x1xf32>
    %cst_50 = arith.constant 9.99999996E-13 : f32
    %103 = vector.broadcast %cst_50 : f32 to vector<8x1xf32>
    %104 = arith.addf %102, %103 : vector<8x1xf32>
    %105 = math.rsqrt %104 : vector<8x1xf32>
    %106 = vector.broadcast %105 : vector<8x1xf32> to vector<8x32xf32>
    %107 = arith.mulf %97, %106 : vector<8x32xf32>
    %108 = vector.broadcast %90 : vector<1x32xf32> to vector<8x32xf32>
    %109 = arith.mulf %108, %107 : vector<8x32xf32>
    %110 = vector.broadcast %91 : vector<1x32xf32> to vector<8x32xf32>
    %111 = arith.addf %109, %110 : vector<8x32xf32>
    %c0_51 = arith.constant 0 : index
    %c0_52 = arith.constant 0 : index
    %c0_53 = arith.constant 0 : index
    %112 = vector.load %arg15[%c0_51, %c0_52, %c0_53] : memref<1x8x32xf32, #tpu.memory_space<vmem>>, vector<1x8x32xf32>
    %113 = vector.shape_cast %112 : vector<1x8x32xf32> to vector<8x32xf32>
    %114 = vector.shape_cast %111 : vector<8x32xf32> to vector<1x8x32xf32>
    tpu.vector_store %arg15[%c0_51, %c0_52, %c0_53], %114 {strides = array<i32>} : memref<1x8x32xf32, #tpu.memory_space<vmem>>, vector<1x8x32xf32>,
    return
  }
  func.func @transform_0(%arg0: i32) -> (i32, i32, i32) {
    %c0_i32 = arith.constant 0 : i32
    %c0_i32_0 = arith.constant 0 : i32
    %c0_i32_1 = arith.constant 0 : i32
    return %arg0, %c0_i32, %c0_i32_0 : i32, i32, i32
  }
  func.func @transform_1(%arg0: i32) -> (i32, i32, i32) {
    %c0_i32 = arith.constant 0 : i32
    %c0_i32_0 = arith.constant 0 : i32
    %c0_i32_1 = arith.constant 0 : i32
    return %arg0, %c0_i32, %c0_i32_0 : i32, i32, i32
  }
  func.func @transform_2(%arg0: i32) -> (i32, i32) {
    %c0_i32 = arith.constant 0 : i32
    %c0_i32_0 = arith.constant 0 : i32
    %c0_i32_1 = arith.constant 0 : i32
    return %c0_i32, %c0_i32_0 : i32, i32
  }
  func.func @transform_3(%arg0: i32) -> (i32, i32) {
    %c0_i32 = arith.constant 0 : i32
    %c0_i32_0 = arith.constant 0 : i32
    %c0_i32_1 = arith.constant 0 : i32
    return %c0_i32, %c0_i32_0 : i32, i32
  }
  func.func @transform_4(%arg0: i32) -> (i32, i32) {
    %c0_i32 = arith.constant 0 : i32
    %c0_i32_0 = arith.constant 0 : i32
    %c0_i32_1 = arith.constant 0 : i32
    return %c0_i32, %c0_i32_0 : i32, i32
  }
  func.func @transform_5(%arg0: i32) -> (i32, i32) {
    %c0_i32 = arith.constant 0 : i32
    %c0_i32_0 = arith.constant 0 : i32
    %c0_i32_1 = arith.constant 0 : i32
    return %c0_i32, %c0_i32_0 : i32, i32
  }
  func.func @transform_6(%arg0: i32) -> (i32, i32) {
    %c0_i32 = arith.constant 0 : i32
    %c0_i32_0 = arith.constant 0 : i32
    %c0_i32_1 = arith.constant 0 : i32
    return %c0_i32, %c0_i32_0 : i32, i32
  }
  func.func @transform_7(%arg0: i32) -> (i32, i32) {
    %c0_i32 = arith.constant 0 : i32
    %c0_i32_0 = arith.constant 0 : i32
    %c0_i32_1 = arith.constant 0 : i32
    return %c0_i32, %c0_i32_0 : i32, i32
  }
  func.func @transform_8(%arg0: i32) -> (i32, i32) {
    %c0_i32 = arith.constant 0 : i32
    %c0_i32_0 = arith.constant 0 : i32
    %c0_i32_1 = arith.constant 0 : i32
    return %c0_i32, %c0_i32_0 : i32, i32
  }
  func.func @transform_9(%arg0: i32) -> (i32, i32) {
    %c0_i32 = arith.constant 0 : i32
    %c0_i32_0 = arith.constant 0 : i32
    %c0_i32_1 = arith.constant 0 : i32
    return %c0_i32, %c0_i32_0 : i32, i32
  }
  func.func @transform_10(%arg0: i32) -> (i32, i32) {
    %c0_i32 = arith.constant 0 : i32
    %c0_i32_0 = arith.constant 0 : i32
    %c0_i32_1 = arith.constant 0 : i32
    return %c0_i32, %c0_i32_0 : i32, i32
  }
  func.func @transform_11(%arg0: i32) -> (i32, i32) {
    %c0_i32 = arith.constant 0 : i32
    %c0_i32_0 = arith.constant 0 : i32
    %c0_i32_1 = arith.constant 0 : i32
    return %c0_i32, %c0_i32_0 : i32, i32
  }
  func.func @transform_12(%arg0: i32) -> (i32, i32) {
    %c0_i32 = arith.constant 0 : i32
    %c0_i32_0 = arith.constant 0 : i32
    %c0_i32_1 = arith.constant 0 : i32
    return %c0_i32, %c0_i32_0 : i32, i32
  }
  func.func @transform_13(%arg0: i32) -> (i32, i32) {
    %c0_i32 = arith.constant 0 : i32
    %c0_i32_0 = arith.constant 0 : i32
    %c0_i32_1 = arith.constant 0 : i32
    return %c0_i32, %c0_i32_0 : i32, i32
  }
  func.func @transform_14(%arg0: i32) -> (i32, i32, i32) {
    %c0_i32 = arith.constant 0 : i32
    %c0_i32_0 = arith.constant 0 : i32
    %c0_i32_1 = arith.constant 0 : i32
    return %arg0, %c0_i32, %c0_i32_0 : i32, i32, i32
  }
}

</mosaic_0001>

<llo_original>
// kernel: tpu_custom_call.1
$region0: #{tpu_custom_call.1}
  #allocation0 [shape = 'u32[]', space=smem, size = 0x4, offset = 0x4, fixed_abs, tag = 'smem constant byte address 0x4 - core index']
  #allocation1 [shape = 'u32[144,128]{1,0:T(1,128)}', space=vmem, size = 0x12000, scoped, tag = 'internal scratch']
  %s0 = inlined_call_operand.vmem [shape: f32[2,8,32], index: 0, kind: input, shape index: {}]
  %s1 = inlined_call_operand.hbm [shape: f32[2,1,8], index: 1, kind: input, shape index: {}]
  %s2 = inlined_call_operand.vmem [shape: bf16[32,96], index: 2, kind: input, shape index: {}]
  %s3 = inlined_call_operand.vmem [shape: f32[1,96], index: 3, kind: input, shape index: {}]
  %s4 = inlined_call_operand.vmem [shape: bf16[32,32], index: 4, kind: input, shape index: {}]
  %s5 = inlined_call_operand.vmem [shape: f32[1,32], index: 5, kind: input, shape index: {}]
  %s6 = inlined_call_operand.hbm [shape: f32[1,32], index: 6, kind: input, shape index: {}]
  %s7 = inlined_call_operand.hbm [shape: f32[1,32], index: 7, kind: input, shape index: {}]
  %s8 = inlined_call_operand.hbm [shape: bf16[32,64], index: 8, kind: input, shape index: {}]
  %s9 = inlined_call_operand.hbm [shape: f32[1,64], index: 9, kind: input, shape index: {}]
  %s10 = inlined_call_operand.vmem [shape: bf16[64,32], index: 10, kind: input, shape index: {}]
  %s11 = inlined_call_operand.vmem [shape: f32[1,32], index: 11, kind: input, shape index: {}]
  %s12 = inlined_call_operand.vmem [shape: f32[1,32], index: 12, kind: input, shape index: {}]
  %s13 = inlined_call_operand.vmem [shape: f32[1,32], index: 13, kind: input, shape index: {}]
  %s14 = inlined_call_operand.hbm [shape: f32[2,8,32], index: 14, kind: output, shape index: {}]
  %s15 = sld [smem:[#allocation0]]
  $region109: #{tpu_custom_call.1} parent=0
    _
  %s17 = ssub.s32 1, %s15
  %s18 = scalar_select 0, %s17, %s15
  $region1: #{tpu_custom_call.1} parent=0
    #allocation2 [shape = 'u8[1024]{0}', space=vmem, size = 0x400, scoped, tag = 'input window, operand 1']
    #allocation3 [shape = 's32[2]{0}', space=sflag, size = 0x8, scoped, tag = 'scoped memory for tpu_custom_call.1']
    #allocation4 [shape = 's32[2]{0}', space=sflag, size = 0x8, scoped, tag = 'scoped memory for tpu_custom_call.1']
    #allocation5 [shape = 'u8[512]{0}', space=vmem, size = 0x400, scoped, tag = 'input window, operand 6, single buffered']
    #allocation6 [shape = 's32[1]{0}', space=sflag, size = 0x4, scoped, tag = 'scoped memory for tpu_custom_call.1']
    #allocation7 [shape = 'u8[512]{0}', space=vmem, size = 0x400, scoped, tag = 'input window, operand 7, single buffered']
    #allocation8 [shape = 'u8[8192]{0}', space=vmem, size = 0x2000, scoped, tag = 'input window, operand 8, single buffered']
    #allocation9 [shape = 's32[1]{0}', space=sflag, size = 0x4, scoped, tag = 'scoped memory for tpu_custom_call.1']
    #allocation10 [shape = 'u8[512]{0}', space=vmem, size = 0x400, scoped, tag = 'input window, operand 9, single buffered']
    #allocation11 [shape = 'u8[8192]{0}', space=vmem, size = 0x2000, scoped, tag = 'output window, operand 0']
    %19 = vsyncpa [#allocation3], 0
    %s20 = scalar_lea.sflag [#allocation3], 1
    %21 = vsyncpa %s20, 0
    %22 = vsyncpa [#allocation6], 0
    %23 = vsyncpa [#allocation9], 0
    %24 = vsyncpa [#allocation4], 0
    %s25 = scalar_lea.sflag [#allocation4], 1
    %26 = vsyncpa %s25, 0
    loop: start=0, step=1, limit=4
    $region2: #{tpu_custom_call.1} parent=1 // loop_pre_header
      _
    $region3: #{tpu_custom_call.1} parent=1 // loop_header
      %s28 = sphi 0, %s32
      %p29 = scmp.ge.s32.totalorder %s28, 4
      %s38 = sphi 0, %s40
      %s41 = sphi 0, %s38
      %s42 = sphi 0, %s41
      %s58 = sphi 0, %s42
      %s64 = sphi 0, %s66
      %s67 = sphi 0, %s64
      %s68 = sphi 0, %s67
      %s84 = sphi 0, %s68
      %s88 = sphi 0, %s88
      %s90 = sphi 0, %s88
      %s91 = sphi 0, %s90
      %s105 = sphi 0, %s91
      %s109 = sphi 0, %s109
      %s111 = sphi 0, %s109
      %s112 = sphi 0, %s111
      %s126 = sphi 0, %s112
      %s130 = sphi 0, %s130
      %s132 = sphi 0, %s130
      %s133 = sphi 0, %s132
      %s147 = sphi 0, %s133
      %s151 = sphi 0, %s151
      %s153 = sphi 0, %s151
      %s154 = sphi 0, %s153
      %s168 = sphi 0, %s154
      %s172 = sphi 0, %s172
      %s174 = sphi 0, %s172
      %s175 = sphi 0, %s174
      %s189 = sphi 0, %s175
      %s193 = sphi 0, %s193
      %s195 = sphi 0, %s193
      %s196 = sphi 0, %s195
      %s210 = sphi 0, %s196
      %s214 = sphi 0, %s214
      %s216 = sphi 0, %s214
      %s217 = sphi 0, %s216
      %s231 = sphi 0, %s217
      %s235 = sphi 0, %s235
      %s237 = sphi 0, %s235
      %s238 = sphi 0, %s237
      %s252 = sphi 0, %s238
      %s256 = sphi 0, %s256
      %s258 = sphi 0, %s256
      %s259 = sphi 0, %s258
      %s273 = sphi 0, %s259
      %s277 = sphi 0, %s277
      %s279 = sphi 0, %s277
      %s280 = sphi 0, %s279
      %s294 = sphi 0, %s280
      %s298 = sphi 0, %s298
      %s300 = sphi 0, %s298
      %s301 = sphi 0, %s300
      %s315 = sphi 0, %s301
      %s319 = sphi 0, %s319
      %s321 = sphi 0, %s319
      %s322 = sphi 0, %s321
      %s336 = sphi 0, %s322
      %s342 = sphi 0, %s344
      %s345 = sphi 0, %s342
      %s346 = sphi 0, %s345
      %s362 = sphi 0, %s346
    $region4: #{tpu_custom_call.1} parent=1 // loop_header_branch
      %31 = sbr.rel (%p29) target = $region8
    $region5: #{tpu_custom_call.1} parent=1 // loop_body
      %s33 = ssub.s32 %s28, 1
      %s34 = ssub.s32 %s28, 2
      %s35 = sadd.s32 %s28, 1
      %s36 = ssub.s32 %s28, %s35
      %p37 = scmp.eq.s32.totalorder %s36, 0
      %s39 = sadd.s32 %s38, 1
      %s40 = scalar_select %p37, %s38, %s39
      %p43 = pneg %p37
      %p44 = scmp.eq.s32.totalorder %s28, 1
      %p45 = por %p43, %p44
      %p46 = scmp.ne.s32.totalorder %s38, %s41
      %p47 = scmp.eq.s32.totalorder %s28, 0
      %p48 = por %p46, %p47
      %p49 = scmp.ne.s32.totalorder %s38, %s41
      %p50 = scmp.eq.s32.totalorder %s33, 1
      %p51 = por %p49, %p50
      %p52 = scmp.ne.s32.totalorder %s41, %s42
      %p53 = scmp.eq.s32.totalorder %s33, 0
      %p54 = por %p52, %p53
      %p55 = scmp.ne.s32.totalorder %s41, %s42
      %p56 = scmp.eq.s32.totalorder %s34, 1
      %p57 = por %p55, %p56
      %p59 = scmp.ne.s32.totalorder %s42, %s58
      %p60 = scmp.eq.s32.totalorder %s34, 0
      %p61 = por %p59, %p60
      %s62 = ssub.s32 %s28, %s35
      %p63 = scmp.eq.s32.totalorder %s62, 0
      %s65 = sadd.s32 %s64, 1
      %s66 = scalar_select %p63, %s64, %s65
      %p69 = pneg %p63
      %p70 = scmp.eq.s32.totalorder %s28, 1
      %p71 = por %p69, %p70
      %p72 = scmp.ne.s32.totalorder %s64, %s67
      %p73 = scmp.eq.s32.totalorder %s28, 0
      %p74 = por %p72, %p73
      %p75 = scmp.ne.s32.totalorder %s64, %s67
      %p76 = scmp.eq.s32.totalorder %s33, 1
      %p77 = por %p75, %p76
      %p78 = scmp.ne.s32.totalorder %s67, %s68
      %p79 = scmp.eq.s32.totalorder %s33, 0
      %p80 = por %p78, %p79
      %p81 = scmp.ne.s32.totalorder %s67, %s68
      %p82 = scmp.eq.s32.totalorder %s34, 1
      %p83 = por %p81, %p82
      %p85 = scmp.ne.s32.totalorder %s68, %s84
      %p86 = scmp.eq.s32.totalorder %s34, 0
      %p87 = por %p85, %p86
      %s89 = sadd.s32 %s88, 1
      %p92 = scmp.eq.s32.totalorder %s28, 1
      %p93 = scmp.ne.s32.totalorder %s88, %s90
      %p94 = scmp.eq.s32.totalorder %s28, 0
      %p95 = por %p93, %p94
      %p96 = scmp.ne.s32.totalorder %s88, %s90
      %p97 = scmp.eq.s32.totalorder %s33, 1
      %p98 = por %p96, %p97
      %p99 = scmp.ne.s32.totalorder %s90, %s91
      %p100 = scmp.eq.s32.totalorder %s33, 0
      %p101 = por %p99, %p100
      %p102 = scmp.ne.s32.totalorder %s90, %s91
      %p103 = scmp.eq.s32.totalorder %s34, 1
      %p104 = por %p102, %p103
      %p106 = scmp.ne.s32.totalorder %s91, %s105
      %p107 = scmp.eq.s32.totalorder %s34, 0
      %p108 = por %p106, %p107
      %s110 = sadd.s32 %s109, 1
      %p113 = scmp.eq.s32.totalorder %s28, 1
      %p114 = scmp.ne.s32.totalorder %s109, %s111
      %p115 = scmp.eq.s32.totalorder %s28, 0
      %p116 = por %p114, %p115
      %p117 = scmp.ne.s32.totalorder %s109, %s111
      %p118 = scmp.eq.s32.totalorder %s33, 1
      %p119 = por %p117, %p118
      %p120 = scmp.ne.s32.totalorder %s111, %s112
      %p121 = scmp.eq.s32.totalorder %s33, 0
      %p122 = por %p120, %p121
      %p123 = scmp.ne.s32.totalorder %s111, %s112
      %p124 = scmp.eq.s32.totalorder %s34, 1
      %p125 = por %p123, %p124
      %p127 = scmp.ne.s32.totalorder %s112, %s126
      %p128 = scmp.eq.s32.totalorder %s34, 0
      %p129 = por %p127, %p128
      %s131 = sadd.s32 %s130, 1
      %p134 = scmp.eq.s32.totalorder %s28, 1
      %p135 = scmp.ne.s32.totalorder %s130, %s132
      %p136 = scmp.eq.s32.totalorder %s28, 0
      %p137 = por %p135, %p136
      %p138 = scmp.ne.s32.totalorder %s130, %s132
      %p139 = scmp.eq.s32.totalorder %s33, 1
      %p140 = por %p138, %p139
      %p141 = scmp.ne.s32.totalorder %s132, %s133
      %p142 = scmp.eq.s32.totalorder %s33, 0
      %p143 = por %p141, %p142
      %p144 = scmp.ne.s32.totalorder %s132, %s133
      %p145 = scmp.eq.s32.totalorder %s34, 1
      %p146 = por %p144, %p145
      %p148 = scmp.ne.s32.totalorder %s133, %s147
      %p149 = scmp.eq.s32.totalorder %s34, 0
      %p150 = por %p148, %p149
      %s152 = sadd.s32 %s151, 1
      %p155 = scmp.eq.s32.totalorder %s28, 1
      %p156 = scmp.ne.s32.totalorder %s151, %s153
      %p157 = scmp.eq.s32.totalorder %s28, 0
      %p158 = por %p156, %p157
      %p159 = scmp.ne.s32.totalorder %s151, %s153
      %p160 = scmp.eq.s32.totalorder %s33, 1
      %p161 = por %p159, %p160
      %p162 = scmp.ne.s32.totalorder %s153, %s154
      %p163 = scmp.eq.s32.totalorder %s33, 0
      %p164 = por %p162, %p163
      %p165 = scmp.ne.s32.totalorder %s153, %s154
      %p166 = scmp.eq.s32.totalorder %s34, 1
      %p167 = por %p165, %p166
      %p169 = scmp.ne.s32.totalorder %s154, %s168
      %p170 = scmp.eq.s32.totalorder %s34, 0
      %p171 = por %p169, %p170
      %s173 = sadd.s32 %s172, 1
      %p176 = scmp.eq.s32.totalorder %s28, 1
      %p177 = scmp.ne.s32.totalorder %s172, %s174
      %p178 = scmp.eq.s32.totalorder %s28, 0
      %p179 = por %p177, %p178
      %p180 = scmp.ne.s32.totalorder %s172, %s174
      %p181 = scmp.eq.s32.totalorder %s33, 1
      %p182 = por %p180, %p181
      %p183 = scmp.ne.s32.totalorder %s174, %s175
      %p184 = scmp.eq.s32.totalorder %s33, 0
      %p185 = por %p183, %p184
      %p186 = scmp.ne.s32.totalorder %s174, %s175
      %p187 = scmp.eq.s32.totalorder %s34, 1
      %p188 = por %p186, %p187
      %p190 = scmp.ne.s32.totalorder %s175, %s189
      %p191 = scmp.eq.s32.totalorder %s34, 0
      %p192 = por %p190, %p191
      %s194 = sadd.s32 %s193, 1
      %p197 = scmp.eq.s32.totalorder %s28, 1
      %p198 = scmp.ne.s32.totalorder %s193, %s195
      %p199 = scmp.eq.s32.totalorder %s28, 0
      %p200 = por %p198, %p199
      %p201 = scmp.ne.s32.totalorder %s193, %s195
      %p202 = scmp.eq.s32.totalorder %s33, 1
      %p203 = por %p201, %p202
      %p204 = scmp.ne.s32.totalorder %s195, %s196
      %p205 = scmp.eq.s32.totalorder %s33, 0
      %p206 = por %p204, %p205
      %p207 = scmp.ne.s32.totalorder %s195, %s196
      %p208 = scmp.eq.s32.totalorder %s34, 1
      %p209 = por %p207, %p208
      %p211 = scmp.ne.s32.totalorder %s196, %s210
      %p212 = scmp.eq.s32.totalorder %s34, 0
      %p213 = por %p211, %p212
      %s215 = sadd.s32 %s214, 1
      %p218 = scmp.eq.s32.totalorder %s28, 1
      %p219 = scmp.ne.s32.totalorder %s214, %s216
      %p220 = scmp.eq.s32.totalorder %s28, 0
      %p221 = por %p219, %p220
      %p222 = scmp.ne.s32.totalorder %s214, %s216
      %p223 = scmp.eq.s32.totalorder %s33, 1
      %p224 = por %p222, %p223
      %p225 = scmp.ne.s32.totalorder %s216, %s217
      %p226 = scmp.eq.s32.totalorder %s33, 0
      %p227 = por %p225, %p226
      %p228 = scmp.ne.s32.totalorder %s216, %s217
      %p229 = scmp.eq.s32.totalorder %s34, 1
      %p230 = por %p228, %p229
      %p232 = scmp.ne.s32.totalorder %s217, %s231
      %p233 = scmp.eq.s32.totalorder %s34, 0
      %p234 = por %p232, %p233
      %s236 = sadd.s32 %s235, 1
      %p239 = scmp.eq.s32.totalorder %s28, 1
      %p240 = scmp.ne.s32.totalorder %s235, %s237
      %p241 = scmp.eq.s32.totalorder %s28, 0
      %p242 = por %p240, %p241
      %p243 = scmp.ne.s32.totalorder %s235, %s237
      %p244 = scmp.eq.s32.totalorder %s33, 1
      %p245 = por %p243, %p244
      %p246 = scmp.ne.s32.totalorder %s237, %s238
      %p247 = scmp.eq.s32.totalorder %s33, 0
      %p248 = por %p246, %p247
      %p249 = scmp.ne.s32.totalorder %s237, %s238
      %p250 = scmp.eq.s32.totalorder %s34, 1
      %p251 = por %p249, %p250
      %p253 = scmp.ne.s32.totalorder %s238, %s252
      %p254 = scmp.eq.s32.totalorder %s34, 0
      %p255 = por %p253, %p254
      %s257 = sadd.s32 %s256, 1
      %p260 = scmp.eq.s32.totalorder %s28, 1
      %p261 = scmp.ne.s32.totalorder %s256, %s258
      %p262 = scmp.eq.s32.totalorder %s28, 0
      %p263 = por %p261, %p262
      %p264 = scmp.ne.s32.totalorder %s256, %s258
      %p265 = scmp.eq.s32.totalorder %s33, 1
      %p266 = por %p264, %p265
      %p267 = scmp.ne.s32.totalorder %s258, %s259
      %p268 = scmp.eq.s32.totalorder %s33, 0
      %p269 = por %p267, %p268
      %p270 = scmp.ne.s32.totalorder %s258, %s259
      %p271 = scmp.eq.s32.totalorder %s34, 1
      %p272 = por %p270, %p271
      %p274 = scmp.ne.s32.totalorder %s259, %s273
      %p275 = scmp.eq.s32.totalorder %s34, 0
      %p276 = por %p274, %p275
      %s278 = sadd.s32 %s277, 1
      %p281 = scmp.eq.s32.totalorder %s28, 1
      %p282 = scmp.ne.s32.totalorder %s277, %s279
      %p283 = scmp.eq.s32.totalorder %s28, 0
      %p284 = por %p282, %p283
      %p285 = scmp.ne.s32.totalorder %s277, %s279
      %p286 = scmp.eq.s32.totalorder %s33, 1
      %p287 = por %p285, %p286
      %p288 = scmp.ne.s32.totalorder %s279, %s280
      %p289 = scmp.eq.s32.totalorder %s33, 0
      %p290 = por %p288, %p289
      %p291 = scmp.ne.s32.totalorder %s279, %s280
      %p292 = scmp.eq.s32.totalorder %s34, 1
      %p293 = por %p291, %p292
      %p295 = scmp.ne.s32.totalorder %s280, %s294
      %p296 = scmp.eq.s32.totalorder %s34, 0
      %p297 = por %p295, %p296
      %s299 = sadd.s32 %s298, 1
      %p302 = scmp.eq.s32.totalorder %s28, 1
      %p303 = scmp.ne.s32.totalorder %s298, %s300
      %p304 = scmp.eq.s32.totalorder %s28, 0
      %p305 = por %p303, %p304
      %p306 = scmp.ne.s32.totalorder %s298, %s300
      %p307 = scmp.eq.s32.totalorder %s33, 1
      %p308 = por %p306, %p307
      %p309 = scmp.ne.s32.totalorder %s300, %s301
      %p310 = scmp.eq.s32.totalorder %s33, 0
      %p311 = por %p309, %p310
      %p312 = scmp.ne.s32.totalorder %s300, %s301
      %p313 = scmp.eq.s32.totalorder %s34, 1
      %p314 = por %p312, %p313
      %p316 = scmp.ne.s32.totalorder %s301, %s315
      %p317 = scmp.eq.s32.totalorder %s34, 0
      %p318 = por %p316, %p317
      %s320 = sadd.s32 %s319, 1
      %p323 = scmp.eq.s32.totalorder %s28, 1
      %p324 = scmp.ne.s32.totalorder %s319, %s321
      %p325 = scmp.eq.s32.totalorder %s28, 0
      %p326 = por %p324, %p325
      %p327 = scmp.ne.s32.totalorder %s319, %s321
      %p328 = scmp.eq.s32.totalorder %s33, 1
      %p329 = por %p327, %p328
      %p330 = scmp.ne.s32.totalorder %s321, %s322
      %p331 = scmp.eq.s32.totalorder %s33, 0
      %p332 = por %p330, %p331
      %p333 = scmp.ne.s32.totalorder %s321, %s322
      %p334 = scmp.eq.s32.totalorder %s34, 1
      %p335 = por %p333, %p334
      %p337 = scmp.ne.s32.totalorder %s322, %s336
      %p338 = scmp.eq.s32.totalorder %s34, 0
      %p339 = por %p337, %p338
      %s340 = ssub.s32 %s28, %s35
      %p341 = scmp.eq.s32.totalorder %s340, 0
      %s343 = sadd.s32 %s342, 1
      %s344 = scalar_select %p341, %s342, %s343
      %p347 = pneg %p341
      %p348 = scmp.eq.s32.totalorder %s28, 1
      %p349 = por %p347, %p348
      %p350 = scmp.ne.s32.totalorder %s342, %s345
      %p351 = scmp.eq.s32.totalorder %s28, 0
      %p352 = por %p350, %p351
      %p353 = scmp.ne.s32.totalorder %s342, %s345
      %p354 = scmp.eq.s32.totalorder %s33, 1
      %p355 = por %p353, %p354
      %p356 = scmp.ne.s32.totalorder %s345, %s346
      %p357 = scmp.eq.s32.totalorder %s33, 0
      %p358 = por %p356, %p357
      %p359 = scmp.ne.s32.totalorder %s345, %s346
      %p360 = scmp.eq.s32.totalorder %s34, 1
      %p361 = por %p359, %p360
      %p363 = scmp.ne.s32.totalorder %s346, %s362
      %p364 = scmp.eq.s32.totalorder %s34, 0
      %p365 = por %p363, %p364
      %p366 = scmp.le.s32.totalorder 1, %s28
      %p367 = scmp.lt.s32.totalorder %s28, 3
      %p368 = pnand %p366, %p367
      %p369 = pneg %p368
      // Predicated region
      $region9: #{tpu_custom_call.1} parent=5 // pred_check
        _
      $region10: #{tpu_custom_call.1} parent=5 // pred_check_branch
        %371 = sbr.rel (%p368) target = $region12
      $region11: #{tpu_custom_call.1} parent=5 // pred_region
        %s372 = ssub.s32 %s28, 1
        // Predicated region
        $region13: #{tpu_custom_call.1} parent=11 // pred_check
          %p373 = pneg %p101
        $region14: #{tpu_custom_call.1} parent=11 // pred_check_branch
          %375 = sbr.rel (%p373) target = $region16
        $region15: #{tpu_custom_call.1} parent=11 // pred_region
          _
        $region16: #{tpu_custom_call.1} parent=11 // pred_fallthru
          _
        // Predicated region
        $region17: #{tpu_custom_call.1} parent=11 // pred_check
          %p376 = pneg %p122
        $region18: #{tpu_custom_call.1} parent=11 // pred_check_branch
          %378 = sbr.rel (%p376) target = $region20
        $region19: #{tpu_custom_call.1} parent=11 // pred_region
          _
        $region20: #{tpu_custom_call.1} parent=11 // pred_fallthru
          _
        // Predicated region
        $region21: #{tpu_custom_call.1} parent=11 // pred_check
          %p379 = pneg %p143
        $region22: #{tpu_custom_call.1} parent=11 // pred_check_branch
          %381 = sbr.rel (%p379) target = $region24
        $region23: #{tpu_custom_call.1} parent=11 // pred_region
          _
        $region24: #{tpu_custom_call.1} parent=11 // pred_fallthru
          _
        // Predicated region
        $region25: #{tpu_custom_call.1} parent=11 // pred_check
          %p382 = pneg %p164
        $region26: #{tpu_custom_call.1} parent=11 // pred_check_branch
          %384 = sbr.rel (%p382) target = $region28
        $region27: #{tpu_custom_call.1} parent=11 // pred_region
          _
        $region28: #{tpu_custom_call.1} parent=11 // pred_fallthru
          _
        // Predicated region
        $region29: #{tpu_custom_call.1} parent=11 // pred_check
          %p385 = pneg %p185
        $region30: #{tpu_custom_call.1} parent=11 // pred_check_branch
          %387 = sbr.rel (%p385) target = $region32
        $region31: #{tpu_custom_call.1} parent=11 // pred_region
          %s389 = ssub.s32 16, 16
          %390 = vsyncadd [#allocation6], %s389
          %s392 = sshll.u32 [#allocation5], 4
          %s393 = int_to_ptr.vmem [resolvable:$true] %s392
          %395 = dma.hbm_to_vmem [thread:$0]  %s6, 16, %s393, [#allocation6]
        $region32: #{tpu_custom_call.1} parent=11 // pred_fallthru
          _
        // Predicated region
        $region33: #{tpu_custom_call.1} parent=11 // pred_check
          %p396 = pneg %p206
        $region34: #{tpu_custom_call.1} parent=11 // pred_check_branch
          %398 = sbr.rel (%p396) target = $region36
        $region35: #{tpu_custom_call.1} parent=11 // pred_region
          %s400 = ssub.s32 16, 16
          %401 = vsyncadd [#allocation6], %s400
          %s403 = sshll.u32 [#allocation7], 4
          %s404 = int_to_ptr.vmem [resolvable:$true] %s403
          %406 = dma.hbm_to_vmem [thread:$0]  %s7, 16, %s404, [#allocation6]
        $region36: #{tpu_custom_call.1} parent=11 // pred_fallthru
          _
        // Predicated region
        $region37: #{tpu_custom_call.1} parent=11 // pred_check
          %p407 = pneg %p227
        $region38: #{tpu_custom_call.1} parent=11 // pred_check_branch
          %409 = sbr.rel (%p407) target = $region40
        $region39: #{tpu_custom_call.1} parent=11 // pred_region
          %s411 = ssub.s32 256, 256
          %412 = vsyncadd [#allocation9], %s411
          %s413 = sshll.u32 [#allocation8], 4
          %s414 = int_to_ptr.vmem [resolvable:$true] %s413
          %419 = dma.hbm_to_vmem [thread:$0]  %s8, 256, %s414, [#allocation9], 64, 64, 4
        $region40: #{tpu_custom_call.1} parent=11 // pred_fallthru
          _
        // Predicated region
        $region41: #{tpu_custom_call.1} parent=11 // pred_check
          %p420 = pneg %p248
        $region42: #{tpu_custom_call.1} parent=11 // pred_check_branch
          %422 = sbr.rel (%p420) target = $region44
        $region43: #{tpu_custom_call.1} parent=11 // pred_region
          %s424 = ssub.s32 16, 16
          %425 = vsyncadd [#allocation9], %s424
          %s427 = sshll.u32 [#allocation10], 4
          %s428 = int_to_ptr.vmem [resolvable:$true] %s427
          %430 = dma.hbm_to_vmem [thread:$0]  %s9, 16, %s428, [#allocation9]
        $region44: #{tpu_custom_call.1} parent=11 // pred_fallthru
          _
        // Predicated region
        $region45: #{tpu_custom_call.1} parent=11 // pred_check
          %p431 = pneg %p269
        $region46: #{tpu_custom_call.1} parent=11 // pred_check_branch
          %433 = sbr.rel (%p431) target = $region48
        $region47: #{tpu_custom_call.1} parent=11 // pred_region
          _
        $region48: #{tpu_custom_call.1} parent=11 // pred_fallthru
          _
        // Predicated region
        $region49: #{tpu_custom_call.1} parent=11 // pred_check
          %p434 = pneg %p290
        $region50: #{tpu_custom_call.1} parent=11 // pred_check_branch
          %436 = sbr.rel (%p434) target = $region52
        $region51: #{tpu_custom_call.1} parent=11 // pred_region
          _
        $region52: #{tpu_custom_call.1} parent=11 // pred_fallthru
          _
        // Predicated region
        $region53: #{tpu_custom_call.1} parent=11 // pred_check
          %p437 = pneg %p311
        $region54: #{tpu_custom_call.1} parent=11 // pred_check_branch
          %439 = sbr.rel (%p437) target = $region56
        $region55: #{tpu_custom_call.1} parent=11 // pred_region
          _
        $region56: #{tpu_custom_call.1} parent=11 // pred_fallthru
          _
        // Predicated region
        $region57: #{tpu_custom_call.1} parent=11 // pred_check
          %p440 = pneg %p332
        $region58: #{tpu_custom_call.1} parent=11 // pred_check_branch
          %442 = sbr.rel (%p440) target = $region60
        $region59: #{tpu_custom_call.1} parent=11 // pred_region
          _
        $region60: #{tpu_custom_call.1} parent=11 // pred_fallthru
          _
      $region12: #{tpu_custom_call.1} parent=5 // pred_fallthru
        _
      %p443 = scmp.lt.s32.totalorder %s28, 2
      // Predicated region
      $region61: #{tpu_custom_call.1} parent=5 // pred_check
        %p444 = pneg %p443
      $region62: #{tpu_custom_call.1} parent=5 // pred_check_branch
        %446 = sbr.rel (%p444) target = $region64
      $region63: #{tpu_custom_call.1} parent=5 // pred_region
        // Predicated region
        $region65: #{tpu_custom_call.1} parent=63 // pred_check
          %p447 = pneg %p48
        $region66: #{tpu_custom_call.1} parent=63 // pred_check_branch
          %449 = sbr.rel (%p447) target = $region68
        $region67: #{tpu_custom_call.1} parent=63 // pred_region
          %p450 = scmp.lt.s32.totalorder %s28, 1
          %s451 = scalar_select %p450, %s28, 1
          %s452 = smul.addr %s451, 8
          %s453 = scalar_lea.vmem %s0, %s452
        $region68: #{tpu_custom_call.1} parent=63 // pred_fallthru
          _
        // Predicated region
        $region69: #{tpu_custom_call.1} parent=63 // pred_check
          %p454 = pneg %p74
        $region70: #{tpu_custom_call.1} parent=63 // pred_check_branch
          %456 = sbr.rel (%p454) target = $region72
        $region71: #{tpu_custom_call.1} parent=63 // pred_region
          %s457 = sand.u32 %s64, 1
          %s458 = scalar_lea.sflag [#allocation3], %s457
          %s459 = sand.u32 %s64, 1
          %s460 = scalar_lea.vmem [#allocation2], %s459
          %s462 = ssub.s32 16, 16
          %463 = vsyncadd %s458, %s462
          %s464 = smul.addr %s28, 16
          %s465 = scalar_lea.hbm %s1, %s464
          %s467 = sshll.u32 %s460, 4
          %s468 = int_to_ptr.vmem [resolvable:$true] %s467
          %470 = dma.hbm_to_vmem [thread:$0]  %s465, 16, %s468, %s458
        $region72: #{tpu_custom_call.1} parent=63 // pred_fallthru
          _
      $region64: #{tpu_custom_call.1} parent=5 // pred_fallthru
        _
      %p471 = scmp.le.s32.totalorder 1, %s28
      %p472 = scmp.lt.s32.totalorder %s28, 3
      %p473 = pnand %p471, %p472
      %p474 = pneg %p473
      // Predicated region
      $region73: #{tpu_custom_call.1} parent=5 // pred_check
        _
      $region74: #{tpu_custom_call.1} parent=5 // pred_check_branch
        %476 = sbr.rel (%p473) target = $region76
      $region75: #{tpu_custom_call.1} parent=5 // pred_region
        %s477 = ssub.s32 %s28, 1
        %s478 = sand.u32 %s67, 1
        %s479 = scalar_lea.sflag [#allocation3], %s478
        %s480 = sand.u32 %s67, 1
        %s481 = scalar_lea.vmem [#allocation2], %s480
        // Predicated region
        $region77: #{tpu_custom_call.1} parent=75 // pred_check
          %p482 = pneg %p80
        $region78: #{tpu_custom_call.1} parent=75 // pred_check_branch
          %484 = sbr.rel (%p482) target = $region80
        $region79: #{tpu_custom_call.1} parent=75 // pred_region
          %485 = dma.done %s479, 16
        $region80: #{tpu_custom_call.1} parent=75 // pred_fallthru
          _
        // Predicated region
        $region81: #{tpu_custom_call.1} parent=75 // pred_check
          %p486 = pneg %p185
        $region82: #{tpu_custom_call.1} parent=75 // pred_check_branch
          %488 = sbr.rel (%p486) target = $region84
        $region83: #{tpu_custom_call.1} parent=75 // pred_region
          %489 = dma.done [#allocation6], 16
        $region84: #{tpu_custom_call.1} parent=75 // pred_fallthru
          _
        // Predicated region
        $region85: #{tpu_custom_call.1} parent=75 // pred_check
          %p490 = pneg %p206
        $region86: #{tpu_custom_call.1} parent=75 // pred_check_branch
          %492 = sbr.rel (%p490) target = $region88
        $region87: #{tpu_custom_call.1} parent=75 // pred_region
          %493 = dma.done [#allocation6], 16
        $region88: #{tpu_custom_call.1} parent=75 // pred_fallthru
          _
        // Predicated region
        $region89: #{tpu_custom_call.1} parent=75 // pred_check
          %p494 = pneg %p227
        $region90: #{tpu_custom_call.1} parent=75 // pred_check_branch
          %496 = sbr.rel (%p494) target = $region92
        $region91: #{tpu_custom_call.1} parent=75 // pred_region
          %497 = dma.done [#allocation9], 256
        $region92: #{tpu_custom_call.1} parent=75 // pred_fallthru
          _
        // Predicated region
        $region93: #{tpu_custom_call.1} parent=75 // pred_check
          %p498 = pneg %p248
        $region94: #{tpu_custom_call.1} parent=75 // pred_check_branch
          %500 = sbr.rel (%p498) target = $region96
        $region95: #{tpu_custom_call.1} parent=75 // pred_region
          %501 = dma.done [#allocation9], 16
        $region96: #{tpu_custom_call.1} parent=75 // pred_fallthru
          _
        %p502 = scmp.lt.s32.totalorder %s33, 1
        %s503 = scalar_select %p502, %s33, 1
        %s504 = smul.addr %s503, 8
        %s505 = scalar_lea.vmem %s0, %s504
        %p506 = pneg %p54
        %p507 = pneg %p51
        %s508 = sand.u32 %s67, 1
        %s509 = scalar_lea.sflag [#allocation3], %s508
        %s510 = sand.u32 %s67, 1
        %s511 = scalar_lea.vmem [#allocation2], %s510
        %p512 = pneg %p80
        %p513 = pneg %p77
        %p514 = pneg %p101
        %p515 = pneg %p98
        %p516 = pneg %p122
        %p517 = pneg %p119
        %p518 = pneg %p143
        %p519 = pneg %p140
        %p520 = pneg %p164
        %p521 = pneg %p161
        %p522 = pneg %p185
        %p523 = pneg %p182
        %p524 = pneg %p206
        %p525 = pneg %p203
        %p526 = pneg %p227
        %p527 = pneg %p224
        %p528 = pneg %p248
        %p529 = pneg %p245
        %p530 = pneg %p269
        %p531 = pneg %p266
        %p532 = pneg %p290
        %p533 = pneg %p287
        %p534 = pneg %p311
        %p535 = pneg %p308
        %p536 = pneg %p332
        %p537 = pneg %p329
        %p538 = pneg %p358
        %p539 = pneg %p355
        %s540 = sand.u32 %s345, 1
        %s541 = scalar_lea.sflag [#allocation4], %s540
        %s542 = sand.u32 %s345, 1
        %s543 = smul.addr %s542, 8
        %s544 = scalar_lea.vmem [#allocation11], %s543
        %p545 = scmp.lt.s32.totalorder %s33, 1
        %s546 = scalar_select %p545, %s33, 1
        %s547 = smul.addr %s546, 8
        %s548 = scalar_lea.vmem %s0, %s547
        %v550 = vld [vmem:[%s548] sm:$0xff]
        %v551 = vpack.c.bf16 %v550, %v550
        %v552 = vld [vmem:[%s2] sm:$0xf]
        %v553 = vld [vmem:[%s2 + $0x4] sm:$0xf]
        %v554 = vld [vmem:[%s2 + $0x8] sm:$0xf]
        %v555 = vld [vmem:[%s2 + $0xc] sm:$0xf]
        %v556 = vld [vmem:[%s3] sm:$0x1]
        %v558 = vlaneseq
        %v559 = vshrl.u32 %v558, 7
        %v560 = vsub.s32 0, %v559
        %v561 = vrot.slane %v556, %v560
        %v567 = vunpack.c.l.b16 %v552
        %v568 = vunpack.c.l.b16 %v553
        %v569 = vunpack.c.l.b16 %v554
        %v570 = vunpack.c.l.b16 %v555
        %v571 = vpack.c.b16 %v568, %v567
        %v572 = vpack.c.b16 %v570, %v569
        %vm575 = vcmask 261120
        %v577 = vsel %vm575, %v551, 0
        %579 = vmatprep.subr.bf16.mxu0 0
        %580 = vmatpush1.bf16.msra.mxu0 0
        %581 = vmatprep.subr.bf16.mxu0 0
        %582 = vmatpush1.bf16.msra.mxu0 0
        %583 = vmatprep.subr.bf16.mxu0 0
        %584 = vmatpush1.bf16.msra.mxu0 0
        %585 = vmatprep.subr.bf16.mxu0 0
        %586 = vmatpush1.bf16.msra.mxu0 0
        %587 = vmatprep.subr.bf16.mxu0 0
        %588 = vmatpush1.bf16.msra.mxu0 0
        %589 = vmatprep.subr.bf16.mxu0 0
        %590 = vmatpush1.bf16.msra.mxu0 0
        %591 = vmatprep.subr.bf16.mxu0 0
        %592 = vmatpush1.bf16.msra.mxu0 %v572
        %593 = vmatprep.subr.bf16.mxu0 0
        %594 = vmatpush1.bf16.msra.mxu0 %v571
        %595 = vmatprep.subr.bf16.mxu0 0
        %596 = vmatpush2.bf16.msra.mxu0 0
        %597 = vmatprep.subr.bf16.mxu0 0
        %598 = vmatpush2.bf16.msra.mxu0 0
        %599 = vmatprep.subr.bf16.mxu0 0
        %600 = vmatpush2.bf16.msra.mxu0 0
        %601 = vmatprep.subr.bf16.mxu0 0
        %602 = vmatpush2.bf16.msra.mxu0 0
        %603 = vmatprep.subr.bf16.mxu0 0
        %604 = vmatpush2.bf16.msra.mxu0 0
        %605 = vmatprep.subr.bf16.mxu0 0
        %606 = vmatpush2.bf16.msra.mxu0 0
        %607 = vmatprep.subr.bf16.mxu0 0
        %608 = vmatpush2.bf16.msra.mxu0 0
        %609 = vmatprep.subr.bf16.mxu0 0
        %610 = vmatpush2.bf16.msra.mxu0 0
        %611 = vmatprep.mubr.bf16.mxu0 0
        %612 = vmatmul.mubr.bf16.gmra.mxu0 %v577
        %v613 = vpop.f32.mrf.mxu0
        %v614 = vadd.f32 %v561, %v613
        %v615 = vpop.f32.mrf.mxu0
        %v616 = vpop.f32.mrf.mxu0
        %v617 = vpop.f32.mrf.mxu0
        %618 = vdwg.mxu0
        %v619 = vpack.c.bf16 %v614, %v614
        %621 = vrot.lane.b32.xlu0 %v619, 120
        %v622 = vpop.permute.xlu0 %621
        %623 = vrot.lane.b32.xlu0 %v619, 112
        %v624 = vpop.permute.xlu0 %623
        %625 = vrot.lane.b32.xlu0 %v619, 104
        %v626 = vpop.permute.xlu0 %625
        %v628 = vunpack.c.l.s4 1983009808
        %v629 = vunpack.c.0.s8 %v628
        %v630 = vlaneseq
        %v631 = vshrl.u32 %v630, 7
        %v632 = vsub.s32 %v629, %v631
        %v633 = vrot.slane %v619, %v632
        %v636 = vunpack.c.l.s4 1983009808
        %v637 = vunpack.c.0.s8 %v636
        %v638 = vlaneseq
        %v639 = vshrl.u32 %v638, 7
        %v640 = vsub.s32 %v637, %v639
        %v641 = vrot.slane %v624, %v640
        %v642 = vcombine.low %v633, %v641
        %v643 = vcombine.high %v633, %v641
        %v645 = vunpack.c.l.s4 1934713408
        %v646 = vunpack.c.0.s8 %v645
        %v647 = vlaneseq
        %v648 = vshrl.u32 %v647, 7
        %v649 = vsub.s32 %v646, %v648
        %v650 = vrot.slane %v642, %v649
        %v652 = vunpack.c.l.s4 1934713408
        %v653 = vunpack.c.0.s8 %v652
        %v654 = vlaneseq
        %v655 = vshrl.u32 %v654, 7
        %v656 = vsub.s32 %v653, %v655
        %v657 = vrot.slane %v643, %v656
        %v658 = vcombine.high %v650, 0
        %v659 = vcombine.high %v657, 0
        %v662 = vunpack.c.l.s4 1983009808
        %v663 = vunpack.c.0.s8 %v662
        %v664 = vlaneseq
        %v665 = vshrl.u32 %v664, 7
        %v666 = vsub.s32 %v663, %v665
        %v667 = vrot.slane %v622, %v666
        %v670 = vunpack.c.l.s4 1983009808
        %v671 = vunpack.c.0.s8 %v670
        %v672 = vlaneseq
        %v673 = vshrl.u32 %v672, 7
        %v674 = vsub.s32 %v671, %v673
        %v675 = vrot.slane %v626, %v674
        %v676 = vcombine.low %v667, %v675
        %v677 = vcombine.high %v667, %v675
        %v679 = vunpack.c.l.s4 1934713408
        %v680 = vunpack.c.0.s8 %v679
        %v681 = vlaneseq
        %v682 = vshrl.u32 %v681, 7
        %v683 = vsub.s32 %v680, %v682
        %v684 = vrot.slane %v676, %v683
        %v686 = vunpack.c.l.s4 1934713408
        %v687 = vunpack.c.0.s8 %v686
        %v688 = vlaneseq
        %v689 = vshrl.u32 %v688, 7
        %v690 = vsub.s32 %v687, %v689
        %v691 = vrot.slane %v677, %v690
        %v692 = vcombine.high %v684, 0
        %v693 = vcombine.high %v691, 0
        %v696 = vpack.i.b16 %v684, %v650
        %v698 = vshrl.u32 %v650, 16
        %v699 = vshrl.u32 %v684, 16
        %v700 = vpack.i.b16 %v699, %v698
        %v704 = vpack.i.b16 %v692, %v658
        %v706 = vshrl.u32 %v658, 16
        %v707 = vshrl.u32 %v692, 16
        %v708 = vpack.i.b16 %v707, %v706
        %v712 = vpack.i.b16 %v691, %v657
        %v714 = vshrl.u32 %v657, 16
        %v715 = vshrl.u32 %v691, 16
        %v716 = vpack.i.b16 %v715, %v714
        %v720 = vpack.i.b16 %v693, %v659
        %v722 = vshrl.u32 %v659, 16
        %v723 = vshrl.u32 %v693, 16
        %v724 = vpack.i.b16 %v723, %v722
        %v726 = vcombine.low %v696, %v712
        %v728 = vunpack.c.l.s4 1983009808
        %v729 = vunpack.c.0.s8 %v728
        %v730 = vlaneseq
        %v731 = vshrl.u32 %v730, 7
        %v732 = vsub.s32 %v729, %v731
        %v733 = vrot.slane %v726, %v732
        %v734 = vcombine.low %v704, %v720
        %v736 = vunpack.c.l.s4 1983009808
        %v737 = vunpack.c.0.s8 %v736
        %v738 = vlaneseq
        %v739 = vshrl.u32 %v738, 7
        %v740 = vsub.s32 %v737, %v739
        %v741 = vrot.slane %v734, %v740
        %v742 = vcombine.low %v733, %v741
        %v744 = vunpack.c.l.s4 1934713408
        %v745 = vunpack.c.0.s8 %v744
        %v746 = vlaneseq
        %v747 = vshrl.u32 %v746, 7
        %v748 = vsub.s32 %v745, %v747
        %v749 = vrot.slane %v742, %v748
        %v750 = vcombine.high %v749, 0
        %v751 = vcombine.low %v700, %v716
        %v753 = vunpack.c.l.s4 1983009808
        %v754 = vunpack.c.0.s8 %v753
        %v755 = vlaneseq
        %v756 = vshrl.u32 %v755, 7
        %v757 = vsub.s32 %v754, %v756
        %v758 = vrot.slane %v751, %v757
        %v759 = vcombine.low %v708, %v724
        %v761 = vunpack.c.l.s4 1983009808
        %v762 = vunpack.c.0.s8 %v761
        %v763 = vlaneseq
        %v764 = vshrl.u32 %v763, 7
        %v765 = vsub.s32 %v762, %v764
        %v766 = vrot.slane %v759, %v765
        %v767 = vcombine.low %v758, %v766
        %v769 = vunpack.c.l.s4 1934713408
        %v770 = vunpack.c.0.s8 %v769
        %v771 = vlaneseq
        %v772 = vshrl.u32 %v771, 7
        %v773 = vsub.s32 %v770, %v772
        %v774 = vrot.slane %v767, %v773
        %v775 = vcombine.high %v774, 0
        %v778 = vpack.i.b16 %v774, %v749
        %v779 = vshrl.u32 %v749, 16
        %v780 = vshrl.u32 %v774, 16
        %v781 = vpack.i.b16 %v780, %v779
        %v784 = vpack.i.b16 %v775, %v750
        %v785 = vshrl.u32 %v750, 16
        %v786 = vshrl.u32 %v775, 16
        %v787 = vpack.i.b16 %v786, %v785
        %788 = vrot.lane.b32.xlu0 %v619, 96
        %v789 = vpop.permute.xlu0 %788
        %790 = vrot.lane.b32.xlu0 %v622, 96
        %v791 = vpop.permute.xlu0 %790
        %792 = vrot.lane.b32.xlu0 %v624, 96
        %v793 = vpop.permute.xlu0 %792
        %794 = vrot.lane.b32.xlu0 %v626, 96
        %v795 = vpop.permute.xlu0 %794
        %v798 = vunpack.c.l.s4 1983009808
        %v799 = vunpack.c.0.s8 %v798
        %v800 = vlaneseq
        %v801 = vshrl.u32 %v800, 7
        %v802 = vsub.s32 %v799, %v801
        %v803 = vrot.slane %v789, %v802
        %v806 = vunpack.c.l.s4 1983009808
        %v807 = vunpack.c.0.s8 %v806
        %v808 = vlaneseq
        %v809 = vshrl.u32 %v808, 7
        %v810 = vsub.s32 %v807, %v809
        %v811 = vrot.slane %v793, %v810
        %v812 = vcombine.low %v803, %v811
        %v813 = vcombine.high %v803, %v811
        %v815 = vunpack.c.l.s4 1934713408
        %v816 = vunpack.c.0.s8 %v815
        %v817 = vlaneseq
        %v818 = vshrl.u32 %v817, 7
        %v819 = vsub.s32 %v816, %v818
        %v820 = vrot.slane %v812, %v819
        %v822 = vunpack.c.l.s4 1934713408
        %v823 = vunpack.c.0.s8 %v822
        %v824 = vlaneseq
        %v825 = vshrl.u32 %v824, 7
        %v826 = vsub.s32 %v823, %v825
        %v827 = vrot.slane %v813, %v826
        %v828 = vcombine.high %v820, 0
        %v829 = vcombine.high %v827, 0
        %v832 = vunpack.c.l.s4 1983009808
        %v833 = vunpack.c.0.s8 %v832
        %v834 = vlaneseq
        %v835 = vshrl.u32 %v834, 7
        %v836 = vsub.s32 %v833, %v835
        %v837 = vrot.slane %v791, %v836
        %v840 = vunpack.c.l.s4 1983009808
        %v841 = vunpack.c.0.s8 %v840
        %v842 = vlaneseq
        %v843 = vshrl.u32 %v842, 7
        %v844 = vsub.s32 %v841, %v843
        %v845 = vrot.slane %v795, %v844
        %v846 = vcombine.low %v837, %v845
        %v847 = vcombine.high %v837, %v845
        %v849 = vunpack.c.l.s4 1934713408
        %v850 = vunpack.c.0.s8 %v849
        %v851 = vlaneseq
        %v852 = vshrl.u32 %v851, 7
        %v853 = vsub.s32 %v850, %v852
        %v854 = vrot.slane %v846, %v853
        %v856 = vunpack.c.l.s4 1934713408
        %v857 = vunpack.c.0.s8 %v856
        %v858 = vlaneseq
        %v859 = vshrl.u32 %v858, 7
        %v860 = vsub.s32 %v857, %v859
        %v861 = vrot.slane %v847, %v860
        %v862 = vcombine.high %v854, 0
        %v863 = vcombine.high %v861, 0
        %v866 = vpack.i.b16 %v854, %v820
        %v868 = vshrl.u32 %v820, 16
        %v869 = vshrl.u32 %v854, 16
        %v870 = vpack.i.b16 %v869, %v868
        %v874 = vpack.i.b16 %v862, %v828
        %v876 = vshrl.u32 %v828, 16
        %v877 = vshrl.u32 %v862, 16
        %v878 = vpack.i.b16 %v877, %v876
        %v882 = vpack.i.b16 %v861, %v827
        %v884 = vshrl.u32 %v827, 16
        %v885 = vshrl.u32 %v861, 16
        %v886 = vpack.i.b16 %v885, %v884
        %v890 = vpack.i.b16 %v863, %v829
        %v892 = vshrl.u32 %v829, 16
        %v893 = vshrl.u32 %v863, 16
        %v894 = vpack.i.b16 %v893, %v892
        %v896 = vcombine.low %v866, %v882
        %v898 = vunpack.c.l.s4 1983009808
        %v899 = vunpack.c.0.s8 %v898
        %v900 = vlaneseq
        %v901 = vshrl.u32 %v900, 7
        %v902 = vsub.s32 %v899, %v901
        %v903 = vrot.slane %v896, %v902
        %v904 = vcombine.low %v874, %v890
        %v906 = vunpack.c.l.s4 1983009808
        %v907 = vunpack.c.0.s8 %v906
        %v908 = vlaneseq
        %v909 = vshrl.u32 %v908, 7
        %v910 = vsub.s32 %v907, %v909
        %v911 = vrot.slane %v904, %v910
        %v912 = vcombine.low %v903, %v911
        %v914 = vunpack.c.l.s4 1934713408
        %v915 = vunpack.c.0.s8 %v914
        %v916 = vlaneseq
        %v917 = vshrl.u32 %v916, 7
        %v918 = vsub.s32 %v915, %v917
        %v919 = vrot.slane %v912, %v918
        %v920 = vcombine.high %v919, 0
        %v921 = vcombine.low %v870, %v886
        %v923 = vunpack.c.l.s4 1983009808
        %v924 = vunpack.c.0.s8 %v923
        %v925 = vlaneseq
        %v926 = vshrl.u32 %v925, 7
        %v927 = vsub.s32 %v924, %v926
        %v928 = vrot.slane %v921, %v927
        %v929 = vcombine.low %v878, %v894
        %v931 = vunpack.c.l.s4 1983009808
        %v932 = vunpack.c.0.s8 %v931
        %v933 = vlaneseq
        %v934 = vshrl.u32 %v933, 7
        %v935 = vsub.s32 %v932, %v934
        %v936 = vrot.slane %v929, %v935
        %v937 = vcombine.low %v928, %v936
        %v939 = vunpack.c.l.s4 1934713408
        %v940 = vunpack.c.0.s8 %v939
        %v941 = vlaneseq
        %v942 = vshrl.u32 %v941, 7
        %v943 = vsub.s32 %v940, %v942
        %v944 = vrot.slane %v937, %v943
        %v945 = vcombine.high %v944, 0
        %v948 = vpack.i.b16 %v944, %v919
        %v949 = vshrl.u32 %v919, 16
        %v950 = vshrl.u32 %v944, 16
        %v951 = vpack.i.b16 %v950, %v949
        %v954 = vpack.i.b16 %v945, %v920
        %v955 = vshrl.u32 %v920, 16
        %v956 = vshrl.u32 %v945, 16
        %v957 = vpack.i.b16 %v956, %v955
        %958 = vrot.lane.b32.xlu0 %v619, 64
        %v959 = vpop.permute.xlu0 %958
        %960 = vrot.lane.b32.xlu0 %v622, 64
        %v961 = vpop.permute.xlu0 %960
        %962 = vrot.lane.b32.xlu0 %v624, 64
        %v963 = vpop.permute.xlu0 %962
        %964 = vrot.lane.b32.xlu0 %v626, 64
        %v965 = vpop.permute.xlu0 %964
        %v968 = vunpack.c.l.s4 1983009808
        %v969 = vunpack.c.0.s8 %v968
        %v970 = vlaneseq
        %v971 = vshrl.u32 %v970, 7
        %v972 = vsub.s32 %v969, %v971
        %v973 = vrot.slane %v959, %v972
        %v976 = vunpack.c.l.s4 1983009808
        %v977 = vunpack.c.0.s8 %v976
        %v978 = vlaneseq
        %v979 = vshrl.u32 %v978, 7
        %v980 = vsub.s32 %v977, %v979
        %v981 = vrot.slane %v963, %v980
        %v982 = vcombine.low %v973, %v981
        %v983 = vcombine.high %v973, %v981
        %v985 = vunpack.c.l.s4 1934713408
        %v986 = vunpack.c.0.s8 %v985
        %v987 = vlaneseq
        %v988 = vshrl.u32 %v987, 7
        %v989 = vsub.s32 %v986, %v988
        %v990 = vrot.slane %v982, %v989
        %v992 = vunpack.c.l.s4 1934713408
        %v993 = vunpack.c.0.s8 %v992
        %v994 = vlaneseq
        %v995 = vshrl.u32 %v994, 7
        %v996 = vsub.s32 %v993, %v995
        %v997 = vrot.slane %v983, %v996
        %v998 = vcombine.high %v990, 0
        %v999 = vcombine.high %v997, 0
        %v1002 = vunpack.c.l.s4 1983009808
        %v1003 = vunpack.c.0.s8 %v1002
        %v1004 = vlaneseq
        %v1005 = vshrl.u32 %v1004, 7
        %v1006 = vsub.s32 %v1003, %v1005
        %v1007 = vrot.slane %v961, %v1006
        %v1010 = vunpack.c.l.s4 1983009808
        %v1011 = vunpack.c.0.s8 %v1010
        %v1012 = vlaneseq
        %v1013 = vshrl.u32 %v1012, 7
        %v1014 = vsub.s32 %v1011, %v1013
        %v1015 = vrot.slane %v965, %v1014
        %v1016 = vcombine.low %v1007, %v1015
        %v1017 = vcombine.high %v1007, %v1015
        %v1019 = vunpack.c.l.s4 1934713408
        %v1020 = vunpack.c.0.s8 %v1019
        %v1021 = vlaneseq
        %v1022 = vshrl.u32 %v1021, 7
        %v1023 = vsub.s32 %v1020, %v1022
        %v1024 = vrot.slane %v1016, %v1023
        %v1026 = vunpack.c.l.s4 1934713408
        %v1027 = vunpack.c.0.s8 %v1026
        %v1028 = vlaneseq
        %v1029 = vshrl.u32 %v1028, 7
        %v1030 = vsub.s32 %v1027, %v1029
        %v1031 = vrot.slane %v1017, %v1030
        %v1032 = vcombine.high %v1024, 0
        %v1033 = vcombine.high %v1031, 0
        %v1036 = vpack.i.b16 %v1024, %v990
        %v1038 = vshrl.u32 %v990, 16
        %v1039 = vshrl.u32 %v1024, 16
        %v1040 = vpack.i.b16 %v1039, %v1038
        %v1044 = vpack.i.b16 %v1032, %v998
        %v1046 = vshrl.u32 %v998, 16
        %v1047 = vshrl.u32 %v1032, 16
        %v1048 = vpack.i.b16 %v1047, %v1046
        %v1052 = vpack.i.b16 %v1031, %v997
        %v1054 = vshrl.u32 %v997, 16
        %v1055 = vshrl.u32 %v1031, 16
        %v1056 = vpack.i.b16 %v1055, %v1054
        %v1060 = vpack.i.b16 %v1033, %v999
        %v1062 = vshrl.u32 %v999, 16
        %v1063 = vshrl.u32 %v1033, 16
        %v1064 = vpack.i.b16 %v1063, %v1062
        %v1066 = vcombine.low %v1036, %v1052
        %v1068 = vunpack.c.l.s4 1983009808
        %v1069 = vunpack.c.0.s8 %v1068
        %v1070 = vlaneseq
        %v1071 = vshrl.u32 %v1070, 7
        %v1072 = vsub.s32 %v1069, %v1071
        %v1073 = vrot.slane %v1066, %v1072
        %v1074 = vcombine.low %v1044, %v1060
        %v1076 = vunpack.c.l.s4 1983009808
        %v1077 = vunpack.c.0.s8 %v1076
        %v1078 = vlaneseq
        %v1079 = vshrl.u32 %v1078, 7
        %v1080 = vsub.s32 %v1077, %v1079
        %v1081 = vrot.slane %v1074, %v1080
        %v1082 = vcombine.low %v1073, %v1081
        %v1084 = vunpack.c.l.s4 1934713408
        %v1085 = vunpack.c.0.s8 %v1084
        %v1086 = vlaneseq
        %v1087 = vshrl.u32 %v1086, 7
        %v1088 = vsub.s32 %v1085, %v1087
        %v1089 = vrot.slane %v1082, %v1088
        %v1090 = vcombine.high %v1089, 0
        %v1091 = vcombine.low %v1040, %v1056
        %v1093 = vunpack.c.l.s4 1983009808
        %v1094 = vunpack.c.0.s8 %v1093
        %v1095 = vlaneseq
        %v1096 = vshrl.u32 %v1095, 7
        %v1097 = vsub.s32 %v1094, %v1096
        %v1098 = vrot.slane %v1091, %v1097
        %v1099 = vcombine.low %v1048, %v1064
        %v1101 = vunpack.c.l.s4 1983009808
        %v1102 = vunpack.c.0.s8 %v1101
        %v1103 = vlaneseq
        %v1104 = vshrl.u32 %v1103, 7
        %v1105 = vsub.s32 %v1102, %v1104
        %v1106 = vrot.slane %v1099, %v1105
        %v1107 = vcombine.low %v1098, %v1106
        %v1109 = vunpack.c.l.s4 1934713408
        %v1110 = vunpack.c.0.s8 %v1109
        %v1111 = vlaneseq
        %v1112 = vshrl.u32 %v1111, 7
        %v1113 = vsub.s32 %v1110, %v1112
        %v1114 = vrot.slane %v1107, %v1113
        %v1115 = vcombine.high %v1114, 0
        %v1118 = vpack.i.b16 %v1114, %v1089
        %v1119 = vshrl.u32 %v1089, 16
        %v1120 = vshrl.u32 %v1114, 16
        %v1121 = vpack.i.b16 %v1120, %v1119
        %v1124 = vpack.i.b16 %v1115, %v1090
        %v1125 = vshrl.u32 %v1090, 16
        %v1126 = vshrl.u32 %v1115, 16
        %v1127 = vpack.i.b16 %v1126, %v1125
        %v1128 = vld [vmem:[%s481] sm:$0x1]
        %v1129 = vsub.f32 1.0, %v1128
        %v1130 = vmul.f32 %v1129, -10000.0
        %v1132 = vlaneseq
        %v1133 = vshrl.u32 %v1132, 7
        %v1134 = vsub.s32 0, %v1133
        %v1135 = vrot.slane %v1130, %v1134
        %vm1137 = vcmask 64512
        %v1139 = vsel %vm1137, %v778, 0
        %v1142 = vsel %vm1137, %v948, 0
        %1144 = vmatprep.subr.bf16.mxu0 0
        %1145 = vmatpush1.bf16.xpose.msra.mxu0 0
        %1146 = vmatprep.subr.bf16.mxu0 0
        %1147 = vmatpush1.bf16.xpose.msra.mxu0 0
        %1148 = vmatprep.subr.bf16.mxu0 0
        %1149 = vmatpush1.bf16.xpose.msra.mxu0 0
        %1150 = vmatprep.subr.bf16.mxu0 0
        %1151 = vmatpush1.bf16.xpose.msra.mxu0 0
        %1152 = vmatprep.subr.bf16.mxu0 0
        %1153 = vmatpush1.bf16.xpose.msra.mxu0 0
        %1154 = vmatprep.subr.bf16.mxu0 0
        %1155 = vmatpush1.bf16.xpose.msra.mxu0 0
        %1156 = vmatprep.subr.bf16.mxu0 0
        %1157 = vmatpush1.bf16.xpose.msra.mxu0 0
        %1158 = vmatprep.subr.bf16.mxu0 0
        %1159 = vmatpush1.bf16.xpose.msra.mxu0 %v1142
        %1160 = vmatprep.subr.bf16.mxu0 0
        %1161 = vmatpush2.bf16.xpose.msra.mxu0 0
        %1162 = vmatprep.subr.bf16.mxu0 0
        %1163 = vmatpush2.bf16.xpose.msra.mxu0 0
        %1164 = vmatprep.subr.bf16.mxu0 0
        %1165 = vmatpush2.bf16.xpose.msra.mxu0 0
        %1166 = vmatprep.subr.bf16.mxu0 0
        %1167 = vmatpush2.bf16.xpose.msra.mxu0 0
        %1168 = vmatprep.subr.bf16.mxu0 0
        %1169 = vmatpush2.bf16.xpose.msra.mxu0 0
        %1170 = vmatprep.subr.bf16.mxu0 0
        %1171 = vmatpush2.bf16.xpose.msra.mxu0 0
        %1172 = vmatprep.subr.bf16.mxu0 0
        %1173 = vmatpush2.bf16.xpose.msra.mxu0 0
        %1174 = vmatprep.subr.bf16.mxu0 0
        %1175 = vmatpush2.bf16.xpose.msra.mxu0 0
        %1176 = vmatprep.mubr.bf16.mxu0 0
        %1177 = vmatmul.mubr.bf16.gmra.mxu0 %v1139
        %v1178 = vpop.f32.mrf.mxu0
        %v1179 = vadd.f32 %v1135, %v1178
        %v1180 = vpop.f32.mrf.mxu0
        %v1181 = vpop.f32.mrf.mxu0
        %v1182 = vpop.f32.mrf.mxu0
        %1183 = vdwg.mxu0
        %v1185 = vsel %vm1137, %v781, 0
        %v1188 = vsel %vm1137, %v951, 0
        %1190 = vmatprep.subr.bf16.mxu0 0
        %1191 = vmatpush1.bf16.xpose.msra.mxu0 0
        %1192 = vmatprep.subr.bf16.mxu0 0
        %1193 = vmatpush1.bf16.xpose.msra.mxu0 0
        %1194 = vmatprep.subr.bf16.mxu0 0
        %1195 = vmatpush1.bf16.xpose.msra.mxu0 0
        %1196 = vmatprep.subr.bf16.mxu0 0
        %1197 = vmatpush1.bf16.xpose.msra.mxu0 0
        %1198 = vmatprep.subr.bf16.mxu0 0
        %1199 = vmatpush1.bf16.xpose.msra.mxu0 0
        %1200 = vmatprep.subr.bf16.mxu0 0
        %1201 = vmatpush1.bf16.xpose.msra.mxu0 0
        %1202 = vmatprep.subr.bf16.mxu0 0
        %1203 = vmatpush1.bf16.xpose.msra.mxu0 0
        %1204 = vmatprep.subr.bf16.mxu0 0
        %1205 = vmatpush1.bf16.xpose.msra.mxu0 %v1188
        %1206 = vmatprep.subr.bf16.mxu0 0
        %1207 = vmatpush2.bf16.xpose.msra.mxu0 0
        %1208 = vmatprep.subr.bf16.mxu0 0
        %1209 = vmatpush2.bf16.xpose.msra.mxu0 0
        %1210 = vmatprep.subr.bf16.mxu0 0
        %1211 = vmatpush2.bf16.xpose.msra.mxu0 0
        %1212 = vmatprep.subr.bf16.mxu0 0
        %1213 = vmatpush2.bf16.xpose.msra.mxu0 0
        %1214 = vmatprep.subr.bf16.mxu0 0
        %1215 = vmatpush2.bf16.xpose.msra.mxu0 0
        %1216 = vmatprep.subr.bf16.mxu0 0
        %1217 = vmatpush2.bf16.xpose.msra.mxu0 0
        %1218 = vmatprep.subr.bf16.mxu0 0
        %1219 = vmatpush2.bf16.xpose.msra.mxu0 0
        %1220 = vmatprep.subr.bf16.mxu0 0
        %1221 = vmatpush2.bf16.xpose.msra.mxu0 0
        %1222 = vmatprep.mubr.bf16.mxu0 0
        %1223 = vmatmul.mubr.bf16.gmra.mxu0 %v1185
        %v1224 = vpop.f32.mrf.mxu0
        %v1225 = vadd.f32 %v1135, %v1224
        %v1226 = vpop.f32.mrf.mxu0
        %v1227 = vpop.f32.mrf.mxu0
        %v1228 = vpop.f32.mrf.mxu0
        %1229 = vdwg.mxu0
        %v1231 = vsel %vm1137, %v784, 0
        %v1234 = vsel %vm1137, %v954, 0
        %1236 = vmatprep.subr.bf16.mxu0 0
        %1237 = vmatpush1.bf16.xpose.msra.mxu0 0
        %1238 = vmatprep.subr.bf16.mxu0 0
        %1239 = vmatpush1.bf16.xpose.msra.mxu0 0
        %1240 = vmatprep.subr.bf16.mxu0 0
        %1241 = vmatpush1.bf16.xpose.msra.mxu0 0
        %1242 = vmatprep.subr.bf16.mxu0 0
        %1243 = vmatpush1.bf16.xpose.msra.mxu0 0
        %1244 = vmatprep.subr.bf16.mxu0 0
        %1245 = vmatpush1.bf16.xpose.msra.mxu0 0
        %1246 = vmatprep.subr.bf16.mxu0 0
        %1247 = vmatpush1.bf16.xpose.msra.mxu0 0
        %1248 = vmatprep.subr.bf16.mxu0 0
        %1249 = vmatpush1.bf16.xpose.msra.mxu0 0
        %1250 = vmatprep.subr.bf16.mxu0 0
        %1251 = vmatpush1.bf16.xpose.msra.mxu0 %v1234
        %1252 = vmatprep.subr.bf16.mxu0 0
        %1253 = vmatpush2.bf16.xpose.msra.mxu0 0
        %1254 = vmatprep.subr.bf16.mxu0 0
        %1255 = vmatpush2.bf16.xpose.msra.mxu0 0
        %1256 = vmatprep.subr.bf16.mxu0 0
        %1257 = vmatpush2.bf16.xpose.msra.mxu0 0
        %1258 = vmatprep.subr.bf16.mxu0 0
        %1259 = vmatpush2.bf16.xpose.msra.mxu0 0
        %1260 = vmatprep.subr.bf16.mxu0 0
        %1261 = vmatpush2.bf16.xpose.msra.mxu0 0
        %1262 = vmatprep.subr.bf16.mxu0 0
        %1263 = vmatpush2.bf16.xpose.msra.mxu0 0
        %1264 = vmatprep.subr.bf16.mxu0 0
        %1265 = vmatpush2.bf16.xpose.msra.mxu0 0
        %1266 = vmatprep.subr.bf16.mxu0 0
        %1267 = vmatpush2.bf16.xpose.msra.mxu0 0
        %1268 = vmatprep.mubr.bf16.mxu0 0
        %1269 = vmatmul.mubr.bf16.gmra.mxu0 %v1231
        %v1270 = vpop.f32.mrf.mxu0
        %v1271 = vadd.f32 %v1135, %v1270
        %v1272 = vpop.f32.mrf.mxu0
        %v1273 = vpop.f32.mrf.mxu0
        %v1274 = vpop.f32.mrf.mxu0
        %1275 = vdwg.mxu0
        %v1277 = vsel %vm1137, %v787, 0
        %v1280 = vsel %vm1137, %v957, 0
        %1282 = vmatprep.subr.bf16.mxu0 0
        %1283 = vmatpush1.bf16.xpose.msra.mxu0 0
        %1284 = vmatprep.subr.bf16.mxu0 0
        %1285 = vmatpush1.bf16.xpose.msra.mxu0 0
        %1286 = vmatprep.subr.bf16.mxu0 0
        %1287 = vmatpush1.bf16.xpose.msra.mxu0 0
        %1288 = vmatprep.subr.bf16.mxu0 0
        %1289 = vmatpush1.bf16.xpose.msra.mxu0 0
        %1290 = vmatprep.subr.bf16.mxu0 0
        %1291 = vmatpush1.bf16.xpose.msra.mxu0 0
        %1292 = vmatprep.subr.bf16.mxu0 0
        %1293 = vmatpush1.bf16.xpose.msra.mxu0 0
        %1294 = vmatprep.subr.bf16.mxu0 0
        %1295 = vmatpush1.bf16.xpose.msra.mxu0 0
        %1296 = vmatprep.subr.bf16.mxu0 0
        %1297 = vmatpush1.bf16.xpose.msra.mxu0 %v1280
        %1298 = vmatprep.subr.bf16.mxu0 0
        %1299 = vmatpush2.bf16.xpose.msra.mxu0 0
        %1300 = vmatprep.subr.bf16.mxu0 0
        %1301 = vmatpush2.bf16.xpose.msra.mxu0 0
        %1302 = vmatprep.subr.bf16.mxu0 0
        %1303 = vmatpush2.bf16.xpose.msra.mxu0 0
        %1304 = vmatprep.subr.bf16.mxu0 0
        %1305 = vmatpush2.bf16.xpose.msra.mxu0 0
        %1306 = vmatprep.subr.bf16.mxu0 0
        %1307 = vmatpush2.bf16.xpose.msra.mxu0 0
        %1308 = vmatprep.subr.bf16.mxu0 0
        %1309 = vmatpush2.bf16.xpose.msra.mxu0 0
        %1310 = vmatprep.subr.bf16.mxu0 0
        %1311 = vmatpush2.bf16.xpose.msra.mxu0 0
        %1312 = vmatprep.subr.bf16.mxu0 0
        %1313 = vmatpush2.bf16.xpose.msra.mxu0 0
        %1314 = vmatprep.mubr.bf16.mxu0 0
        %1315 = vmatmul.mubr.bf16.gmra.mxu0 %v1277
        %v1316 = vpop.f32.mrf.mxu0
        %v1317 = vadd.f32 %v1135, %v1316
        %v1318 = vpop.f32.mrf.mxu0
        %v1319 = vpop.f32.mrf.mxu0
        %v1320 = vpop.f32.mrf.mxu0
        %1321 = vdwg.mxu0
        %v1322 = vsel %vm1137, %v1179, -inf
        %1323 = vmax.xlane.f32.xlu0 %v1322
        %v1324 = vpop.xlane.xlu0 %1323
        %v1325 = vsel %vm1137, %v1225, -inf
        %1326 = vmax.xlane.f32.xlu0 %v1325
        %v1327 = vpop.xlane.xlu0 %1326
        %v1328 = vsel %vm1137, %v1271, -inf
        %1329 = vmax.xlane.f32.xlu0 %v1328
        %v1330 = vpop.xlane.xlu0 %1329
        %v1331 = vsel %vm1137, %v1317, -inf
        %1332 = vmax.xlane.f32.xlu0 %v1331
        %v1333 = vpop.xlane.xlu0 %1332
        %v1334 = vsub.f32 %v1179, %v1324
        %v1335 = vsub.f32 %v1225, %v1327
        %v1336 = vsub.f32 %v1271, %v1330
        %v1337 = vsub.f32 %v1317, %v1333
        %v1338 = vmul.f32 %v1334, 1.442695
        %v1339 = vpow.pop %v1338
        %v1340 = vmul.f32 %v1335, 1.442695
        %v1341 = vpow.pop %v1340
        %v1342 = vmul.f32 %v1336, 1.442695
        %v1343 = vpow.pop %v1342
        %v1344 = vmul.f32 %v1337, 1.442695
        %v1345 = vpow.pop %v1344
        %v1346 = vsel %vm1137, %v1339, 0.0
        %1347 = vadd.xlane.f32.xlu0 %v1346
        %v1348 = vpop.xlane.xlu0 %1347
        %v1349 = vsel %vm1137, %v1341, 0.0
        %1350 = vadd.xlane.f32.xlu0 %v1349
        %v1351 = vpop.xlane.xlu0 %1350
        %v1352 = vsel %vm1137, %v1343, 0.0
        %1353 = vadd.xlane.f32.xlu0 %v1352
        %v1354 = vpop.xlane.xlu0 %1353
        %v1355 = vsel %vm1137, %v1345, 0.0
        %1356 = vadd.xlane.f32.xlu0 %v1355
        %v1357 = vpop.xlane.xlu0 %1356
        %v1358 = vrcp.pop %v1348
        %v1359 = vrcp.pop %v1351
        %v1360 = vrcp.pop %v1354
        %v1361 = vrcp.pop %v1357
        %v1362 = vmul.f32 %v1339, %v1358
        %v1363 = vmul.f32 %v1341, %v1359
        %v1364 = vmul.f32 %v1343, %v1360
        %v1365 = vmul.f32 %v1345, %v1361
        %v1366 = vpack.c.bf16 %v1362, %v1362
        %v1367 = vpack.c.bf16 %v1363, %v1363
        %v1368 = vpack.c.bf16 %v1364, %v1364
        %v1369 = vpack.c.bf16 %v1365, %v1365
        %v1371 = vsel %vm1137, %v1366, 0
        %vm1373 = vcmask 1043456
        %v1375 = vsel %vm1373, %v1118, 0
        %1377 = vmatprep.subr.bf16.mxu0 0
        %1378 = vmatpush1.bf16.msra.mxu0 0
        %1379 = vmatprep.subr.bf16.mxu0 0
        %1380 = vmatpush1.bf16.msra.mxu0 0
        %1381 = vmatprep.subr.bf16.mxu0 0
        %1382 = vmatpush1.bf16.msra.mxu0 0
        %1383 = vmatprep.subr.bf16.mxu0 0
        %1384 = vmatpush1.bf16.msra.mxu0 0
        %1385 = vmatprep.subr.bf16.mxu0 0
        %1386 = vmatpush1.bf16.msra.mxu0 0
        %1387 = vmatprep.subr.bf16.mxu0 0
        %1388 = vmatpush1.bf16.msra.mxu0 0
        %1389 = vmatprep.subr.bf16.mxu0 0
        %1390 = vmatpush1.bf16.msra.mxu0 0
        %1391 = vmatprep.subr.bf16.mxu0 0
        %1392 = vmatpush1.bf16.msra.mxu0 %v1375
        %1393 = vmatprep.subr.bf16.mxu0 0
        %1394 = vmatpush2.bf16.msra.mxu0 0
        %1395 = vmatprep.subr.bf16.mxu0 0
        %1396 = vmatpush2.bf16.msra.mxu0 0
        %1397 = vmatprep.subr.bf16.mxu0 0
        %1398 = vmatpush2.bf16.msra.mxu0 0
        %1399 = vmatprep.subr.bf16.mxu0 0
        %1400 = vmatpush2.bf16.msra.mxu0 0
        %1401 = vmatprep.subr.bf16.mxu0 0
        %1402 = vmatpush2.bf16.msra.mxu0 0
        %1403 = vmatprep.subr.bf16.mxu0 0
        %1404 = vmatpush2.bf16.msra.mxu0 0
        %1405 = vmatprep.subr.bf16.mxu0 0
        %1406 = vmatpush2.bf16.msra.mxu0 0
        %1407 = vmatprep.subr.bf16.mxu0 0
        %1408 = vmatpush2.bf16.msra.mxu0 0
        %1409 = vmatprep.mubr.bf16.mxu0 0
        %1410 = vmatmul.mubr.bf16.gmra.mxu0 %v1371
        %v1411 = vpop.f32.mrf.mxu0
        %v1412 = vadd.f32 0.0, %v1411
        %v1413 = vpop.f32.mrf.mxu0
        %v1414 = vpop.f32.mrf.mxu0
        %v1415 = vpop.f32.mrf.mxu0
        %1416 = vdwg.mxu0
        %v1418 = vsel %vm1137, %v1367, 0
        %v1421 = vsel %vm1373, %v1121, 0
        %1423 = vmatprep.subr.bf16.mxu0 0
        %1424 = vmatpush1.bf16.msra.mxu0 0
        %1425 = vmatprep.subr.bf16.mxu0 0
        %1426 = vmatpush1.bf16.msra.mxu0 0
        %1427 = vmatprep.subr.bf16.mxu0 0
        %1428 = vmatpush1.bf16.msra.mxu0 0
        %1429 = vmatprep.subr.bf16.mxu0 0
        %1430 = vmatpush1.bf16.msra.mxu0 0
        %1431 = vmatprep.subr.bf16.mxu0 0
        %1432 = vmatpush1.bf16.msra.mxu0 0
        %1433 = vmatprep.subr.bf16.mxu0 0
        %1434 = vmatpush1.bf16.msra.mxu0 0
        %1435 = vmatprep.subr.bf16.mxu0 0
        %1436 = vmatpush1.bf16.msra.mxu0 0
        %1437 = vmatprep.subr.bf16.mxu0 0
        %1438 = vmatpush1.bf16.msra.mxu0 %v1421
        %1439 = vmatprep.subr.bf16.mxu0 0
        %1440 = vmatpush2.bf16.msra.mxu0 0
        %1441 = vmatprep.subr.bf16.mxu0 0
        %1442 = vmatpush2.bf16.msra.mxu0 0
        %1443 = vmatprep.subr.bf16.mxu0 0
        %1444 = vmatpush2.bf16.msra.mxu0 0
        %1445 = vmatprep.subr.bf16.mxu0 0
        %1446 = vmatpush2.bf16.msra.mxu0 0
        %1447 = vmatprep.subr.bf16.mxu0 0
        %1448 = vmatpush2.bf16.msra.mxu0 0
        %1449 = vmatprep.subr.bf16.mxu0 0
        %1450 = vmatpush2.bf16.msra.mxu0 0
        %1451 = vmatprep.subr.bf16.mxu0 0
        %1452 = vmatpush2.bf16.msra.mxu0 0
        %1453 = vmatprep.subr.bf16.mxu0 0
        %1454 = vmatpush2.bf16.msra.mxu0 0
        %1455 = vmatprep.mubr.bf16.mxu0 0
        %1456 = vmatmul.mubr.bf16.gmra.mxu0 %v1418
        %v1457 = vpop.f32.mrf.mxu0
        %v1458 = vadd.f32 0.0, %v1457
        %v1459 = vpop.f32.mrf.mxu0
        %v1460 = vpop.f32.mrf.mxu0
        %v1461 = vpop.f32.mrf.mxu0
        %1462 = vdwg.mxu0
        %v1464 = vsel %vm1137, %v1368, 0
        %v1467 = vsel %vm1373, %v1124, 0
        %1469 = vmatprep.subr.bf16.mxu0 0
        %1470 = vmatpush1.bf16.msra.mxu0 0
        %1471 = vmatprep.subr.bf16.mxu0 0
        %1472 = vmatpush1.bf16.msra.mxu0 0
        %1473 = vmatprep.subr.bf16.mxu0 0
        %1474 = vmatpush1.bf16.msra.mxu0 0
        %1475 = vmatprep.subr.bf16.mxu0 0
        %1476 = vmatpush1.bf16.msra.mxu0 0
        %1477 = vmatprep.subr.bf16.mxu0 0
        %1478 = vmatpush1.bf16.msra.mxu0 0
        %1479 = vmatprep.subr.bf16.mxu0 0
        %1480 = vmatpush1.bf16.msra.mxu0 0
        %1481 = vmatprep.subr.bf16.mxu0 0
        %1482 = vmatpush1.bf16.msra.mxu0 0
        %1483 = vmatprep.subr.bf16.mxu0 0
        %1484 = vmatpush1.bf16.msra.mxu0 %v1467
        %1485 = vmatprep.subr.bf16.mxu0 0
        %1486 = vmatpush2.bf16.msra.mxu0 0
        %1487 = vmatprep.subr.bf16.mxu0 0
        %1488 = vmatpush2.bf16.msra.mxu0 0
        %1489 = vmatprep.subr.bf16.mxu0 0
        %1490 = vmatpush2.bf16.msra.mxu0 0
        %1491 = vmatprep.subr.bf16.mxu0 0
        %1492 = vmatpush2.bf16.msra.mxu0 0
        %1493 = vmatprep.subr.bf16.mxu0 0
        %1494 = vmatpush2.bf16.msra.mxu0 0
        %1495 = vmatprep.subr.bf16.mxu0 0
        %1496 = vmatpush2.bf16.msra.mxu0 0
        %1497 = vmatprep.subr.bf16.mxu0 0
        %1498 = vmatpush2.bf16.msra.mxu0 0
        %1499 = vmatprep.subr.bf16.mxu0 0
        %1500 = vmatpush2.bf16.msra.mxu0 0
        %1501 = vmatprep.mubr.bf16.mxu0 0
        %1502 = vmatmul.mubr.bf16.gmra.mxu0 %v1464
        %v1503 = vpop.f32.mrf.mxu0
        %v1504 = vadd.f32 0.0, %v1503
        %v1505 = vpop.f32.mrf.mxu0
        %v1506 = vpop.f32.mrf.mxu0
        %v1507 = vpop.f32.mrf.mxu0
        %1508 = vdwg.mxu0
        %v1510 = vsel %vm1137, %v1369, 0
        %v1513 = vsel %vm1373, %v1127, 0
        %1515 = vmatprep.subr.bf16.mxu0 0
        %1516 = vmatpush1.bf16.msra.mxu0 0
        %1517 = vmatprep.subr.bf16.mxu0 0
        %1518 = vmatpush1.bf16.msra.mxu0 0
        %1519 = vmatprep.subr.bf16.mxu0 0
        %1520 = vmatpush1.bf16.msra.mxu0 0
        %1521 = vmatprep.subr.bf16.mxu0 0
        %1522 = vmatpush1.bf16.msra.mxu0 0
        %1523 = vmatprep.subr.bf16.mxu0 0
        %1524 = vmatpush1.bf16.msra.mxu0 0
        %1525 = vmatprep.subr.bf16.mxu0 0
        %1526 = vmatpush1.bf16.msra.mxu0 0
        %1527 = vmatprep.subr.bf16.mxu0 0
        %1528 = vmatpush1.bf16.msra.mxu0 0
        %1529 = vmatprep.subr.bf16.mxu0 0
        %1530 = vmatpush1.bf16.msra.mxu0 %v1513
        %1531 = vmatprep.subr.bf16.mxu0 0
        %1532 = vmatpush2.bf16.msra.mxu0 0
        %1533 = vmatprep.subr.bf16.mxu0 0
        %1534 = vmatpush2.bf16.msra.mxu0 0
        %1535 = vmatprep.subr.bf16.mxu0 0
        %1536 = vmatpush2.bf16.msra.mxu0 0
        %1537 = vmatprep.subr.bf16.mxu0 0
        %1538 = vmatpush2.bf16.msra.mxu0 0
        %1539 = vmatprep.subr.bf16.mxu0 0
        %1540 = vmatpush2.bf16.msra.mxu0 0
        %1541 = vmatprep.subr.bf16.mxu0 0
        %1542 = vmatpush2.bf16.msra.mxu0 0
        %1543 = vmatprep.subr.bf16.mxu0 0
        %1544 = vmatpush2.bf16.msra.mxu0 0
        %1545 = vmatprep.subr.bf16.mxu0 0
        %1546 = vmatpush2.bf16.msra.mxu0 0
        %1547 = vmatprep.mubr.bf16.mxu0 0
        %1548 = vmatmul.mubr.bf16.gmra.mxu0 %v1510
        %v1549 = vpop.f32.mrf.mxu0
        %v1550 = vadd.f32 0.0, %v1549
        %v1551 = vpop.f32.mrf.mxu0
        %v1552 = vpop.f32.mrf.mxu0
        %v1553 = vpop.f32.mrf.mxu0
        %1554 = vdwg.mxu0
        %v1555 = vpack.c.bf16 %v1412, %v1412
        %v1557 = vunpack.c.l.s4 1983009808
        %v1558 = vunpack.c.0.s8 %v1557
        %v1559 = vlaneseq
        %v1560 = vshrl.u32 %v1559, 7
        %v1561 = vsub.s32 %v1558, %v1560
        %v1562 = vrot.slane %v1555, %v1561
        %v1563 = vpack.c.bf16 %v1504, %v1504
        %v1565 = vunpack.c.l.s4 1983009808
        %v1566 = vunpack.c.0.s8 %v1565
        %v1567 = vlaneseq
        %v1568 = vshrl.u32 %v1567, 7
        %v1569 = vsub.s32 %v1566, %v1568
        %v1570 = vrot.slane %v1563, %v1569
        %v1571 = vcombine.low %v1562, %v1570
        %v1572 = vcombine.high %v1562, %v1570
        %v1574 = vunpack.c.l.s4 1934713408
        %v1575 = vunpack.c.0.s8 %v1574
        %v1576 = vlaneseq
        %v1577 = vshrl.u32 %v1576, 7
        %v1578 = vsub.s32 %v1575, %v1577
        %v1579 = vrot.slane %v1571, %v1578
        %v1581 = vunpack.c.l.s4 1934713408
        %v1582 = vunpack.c.0.s8 %v1581
        %v1583 = vlaneseq
        %v1584 = vshrl.u32 %v1583, 7
        %v1585 = vsub.s32 %v1582, %v1584
        %v1586 = vrot.slane %v1572, %v1585
        %v1587 = vcombine.high %v1579, 0
        %v1588 = vcombine.high %v1586, 0
        %v1589 = vpack.c.bf16 %v1458, %v1458
        %v1591 = vunpack.c.l.s4 1983009808
        %v1592 = vunpack.c.0.s8 %v1591
        %v1593 = vlaneseq
        %v1594 = vshrl.u32 %v1593, 7
        %v1595 = vsub.s32 %v1592, %v1594
        %v1596 = vrot.slane %v1589, %v1595
        %v1597 = vpack.c.bf16 %v1550, %v1550
        %v1599 = vunpack.c.l.s4 1983009808
        %v1600 = vunpack.c.0.s8 %v1599
        %v1601 = vlaneseq
        %v1602 = vshrl.u32 %v1601, 7
        %v1603 = vsub.s32 %v1600, %v1602
        %v1604 = vrot.slane %v1597, %v1603
        %v1605 = vcombine.low %v1596, %v1604
        %v1606 = vcombine.high %v1596, %v1604
        %v1608 = vunpack.c.l.s4 1934713408
        %v1609 = vunpack.c.0.s8 %v1608
        %v1610 = vlaneseq
        %v1611 = vshrl.u32 %v1610, 7
        %v1612 = vsub.s32 %v1609, %v1611
        %v1613 = vrot.slane %v1605, %v1612
        %v1615 = vunpack.c.l.s4 1934713408
        %v1616 = vunpack.c.0.s8 %v1615
        %v1617 = vlaneseq
        %v1618 = vshrl.u32 %v1617, 7
        %v1619 = vsub.s32 %v1616, %v1618
        %v1620 = vrot.slane %v1606, %v1619
        %v1621 = vcombine.high %v1613, 0
        %v1622 = vcombine.high %v1620, 0
        %v1625 = vpack.i.b16 %v1613, %v1579
        %v1627 = vshrl.u32 %v1579, 16
        %v1628 = vshrl.u32 %v1613, 16
        %v1629 = vpack.i.b16 %v1628, %v1627
        %v1633 = vpack.i.b16 %v1621, %v1587
        %v1635 = vshrl.u32 %v1587, 16
        %v1636 = vshrl.u32 %v1621, 16
        %v1637 = vpack.i.b16 %v1636, %v1635
        %v1641 = vpack.i.b16 %v1620, %v1586
        %v1643 = vshrl.u32 %v1586, 16
        %v1644 = vshrl.u32 %v1620, 16
        %v1645 = vpack.i.b16 %v1644, %v1643
        %v1649 = vpack.i.b16 %v1622, %v1588
        %v1651 = vshrl.u32 %v1588, 16
        %v1652 = vshrl.u32 %v1622, 16
        %v1653 = vpack.i.b16 %v1652, %v1651
        %v1655 = vcombine.low %v1625, %v1641
        %v1657 = vunpack.c.l.s4 1983009808
        %v1658 = vunpack.c.0.s8 %v1657
        %v1659 = vlaneseq
        %v1660 = vshrl.u32 %v1659, 7
        %v1661 = vsub.s32 %v1658, %v1660
        %v1662 = vrot.slane %v1655, %v1661
        %v1663 = vcombine.low %v1633, %v1649
        %v1665 = vunpack.c.l.s4 1983009808
        %v1666 = vunpack.c.0.s8 %v1665
        %v1667 = vlaneseq
        %v1668 = vshrl.u32 %v1667, 7
        %v1669 = vsub.s32 %v1666, %v1668
        %v1670 = vrot.slane %v1663, %v1669
        %v1671 = vcombine.low %v1662, %v1670
        %v1673 = vunpack.c.l.s4 1934713408
        %v1674 = vunpack.c.0.s8 %v1673
        %v1675 = vlaneseq
        %v1676 = vshrl.u32 %v1675, 7
        %v1677 = vsub.s32 %v1674, %v1676
        %v1678 = vrot.slane %v1671, %v1677
        %v1679 = vcombine.high %v1678, 0
        %v1680 = vcombine.low %v1629, %v1645
        %v1682 = vunpack.c.l.s4 1983009808
        %v1683 = vunpack.c.0.s8 %v1682
        %v1684 = vlaneseq
        %v1685 = vshrl.u32 %v1684, 7
        %v1686 = vsub.s32 %v1683, %v1685
        %v1687 = vrot.slane %v1680, %v1686
        %v1688 = vcombine.low %v1637, %v1653
        %v1690 = vunpack.c.l.s4 1983009808
        %v1691 = vunpack.c.0.s8 %v1690
        %v1692 = vlaneseq
        %v1693 = vshrl.u32 %v1692, 7
        %v1694 = vsub.s32 %v1691, %v1693
        %v1695 = vrot.slane %v1688, %v1694
        %v1696 = vcombine.low %v1687, %v1695
        %v1698 = vunpack.c.l.s4 1934713408
        %v1699 = vunpack.c.0.s8 %v1698
        %v1700 = vlaneseq
        %v1701 = vshrl.u32 %v1700, 7
        %v1702 = vsub.s32 %v1699, %v1701
        %v1703 = vrot.slane %v1696, %v1702
        %v1704 = vcombine.high %v1703, 0
        %v1707 = vpack.i.b16 %v1703, %v1678
        %v1708 = vshrl.u32 %v1678, 16
        %v1709 = vshrl.u32 %v1703, 16
        %v1710 = vpack.i.b16 %v1709, %v1708
        %v1713 = vpack.i.b16 %v1704, %v1679
        %v1714 = vshrl.u32 %v1679, 16
        %v1715 = vshrl.u32 %v1704, 16
        %v1716 = vpack.i.b16 %v1715, %v1714
        %1717 = vrot.lane.b32.xlu0 %v1710, 8
        %v1718 = vpop.permute.xlu0 %1717
        %1719 = vrot.lane.b32.xlu0 %v1713, 16
        %v1720 = vpop.permute.xlu0 %1719
        %1721 = vrot.lane.b32.xlu0 %v1716, 24
        %v1722 = vpop.permute.xlu0 %1721
        %v1725 = vsel %vm1137, %v1707, %v1718
        %vm1726 = vcmask 130048
        %v1728 = vsel %vm1726, %v1725, %v1720
        %vm1729 = vcmask 195584
        %v1731 = vsel %vm1729, %v1728, %v1722
        %v1732 = vld [vmem:[%s4] sm:$0xf]
        %v1733 = vld [vmem:[%s4 + $0x4] sm:$0xf]
        %v1734 = vld [vmem:[%s4 + $0x8] sm:$0xf]
        %v1735 = vld [vmem:[%s4 + $0xc] sm:$0xf]
        %v1736 = vld [vmem:[%s5] sm:$0x1]
        %v1738 = vlaneseq
        %v1739 = vshrl.u32 %v1738, 7
        %v1740 = vsub.s32 0, %v1739
        %v1741 = vrot.slane %v1736, %v1740
        %v1747 = vunpack.c.l.b16 %v1732
        %v1748 = vunpack.c.l.b16 %v1733
        %v1749 = vunpack.c.l.b16 %v1734
        %v1750 = vunpack.c.l.b16 %v1735
        %v1751 = vpack.c.b16 %v1748, %v1747
        %v1752 = vpack.c.b16 %v1750, %v1749
        %v1755 = vsel %vm575, %v1731, 0
        %1757 = vmatprep.subr.bf16.mxu0 0
        %1758 = vmatpush1.bf16.msra.mxu0 0
        %1759 = vmatprep.subr.bf16.mxu0 0
        %1760 = vmatpush1.bf16.msra.mxu0 0
        %1761 = vmatprep.subr.bf16.mxu0 0
        %1762 = vmatpush1.bf16.msra.mxu0 0
        %1763 = vmatprep.subr.bf16.mxu0 0
        %1764 = vmatpush1.bf16.msra.mxu0 0
        %1765 = vmatprep.subr.bf16.mxu0 0
        %1766 = vmatpush1.bf16.msra.mxu0 0
        %1767 = vmatprep.subr.bf16.mxu0 0
        %1768 = vmatpush1.bf16.msra.mxu0 0
        %1769 = vmatprep.subr.bf16.mxu0 0
        %1770 = vmatpush1.bf16.msra.mxu0 %v1752
        %1771 = vmatprep.subr.bf16.mxu0 0
        %1772 = vmatpush1.bf16.msra.mxu0 %v1751
        %1773 = vmatprep.subr.bf16.mxu0 0
        %1774 = vmatpush2.bf16.msra.mxu0 0
        %1775 = vmatprep.subr.bf16.mxu0 0
        %1776 = vmatpush2.bf16.msra.mxu0 0
        %1777 = vmatprep.subr.bf16.mxu0 0
        %1778 = vmatpush2.bf16.msra.mxu0 0
        %1779 = vmatprep.subr.bf16.mxu0 0
        %1780 = vmatpush2.bf16.msra.mxu0 0
        %1781 = vmatprep.subr.bf16.mxu0 0
        %1782 = vmatpush2.bf16.msra.mxu0 0
        %1783 = vmatprep.subr.bf16.mxu0 0
        %1784 = vmatpush2.bf16.msra.mxu0 0
        %1785 = vmatprep.subr.bf16.mxu0 0
        %1786 = vmatpush2.bf16.msra.mxu0 0
        %1787 = vmatprep.subr.bf16.mxu0 0
        %1788 = vmatpush2.bf16.msra.mxu0 0
        %1789 = vmatprep.mubr.bf16.mxu0 0
        %1790 = vmatmul.mubr.bf16.gmra.mxu0 %v1755
        %v1791 = vpop.f32.mrf.mxu0
        %v1792 = vadd.f32 %v1741, %v1791
        %v1793 = vpop.f32.mrf.mxu0
        %v1794 = vpop.f32.mrf.mxu0
        %v1795 = vpop.f32.mrf.mxu0
        %1796 = vdwg.mxu0
        %v1797 = vadd.f32 %v550, %v1792
        %v1798 = vld [vmem:[#allocation5] sm:$0x1]
        %v1799 = vld [vmem:[#allocation7] sm:$0x1]
        %v1800 = vsel %vm575, %v1797, 0.0
        %1801 = vadd.xlane.f32.xlu0 %v1800
        %v1802 = vpop.xlane.xlu0 %1801
        %v1803 = vrcp.pop 32.0
        %v1804 = vmul.f32 %v1802, %v1803
        %v1805 = vsub.f32 %v1797, %v1804
        %v1806 = vmul.f32 %v1805, %v1805
        %v1807 = vsel %vm575, %v1806, 0.0
        %1808 = vadd.xlane.f32.xlu0 %v1807
        %v1809 = vpop.xlane.xlu0 %1808
        %v1810 = vmul.f32 %v1809, %v1803
        %v1811 = vadd.f32 %v1810, 1e-12
        %v1812 = vrsqrt.pop %v1811
        %v1813 = vmul.f32 %v1805, %v1812
        %v1815 = vlaneseq
        %v1816 = vshrl.u32 %v1815, 7
        %v1817 = vsub.s32 0, %v1816
        %v1818 = vrot.slane %v1798, %v1817
        %v1820 = vmul.f32 %v1818, %v1813
        %v1822 = vlaneseq
        %v1823 = vshrl.u32 %v1822, 7
        %v1824 = vsub.s32 0, %v1823
        %v1825 = vrot.slane %v1799, %v1824
        %v1827 = vadd.f32 %v1820, %v1825
        %v1828 = vpack.c.bf16 %v1827, %v1827
        %v1829 = vld [vmem:[#allocation8] sm:$0xf]
        %v1830 = vld [vmem:[#allocation8 + $0x4] sm:$0xf]
        %v1831 = vld [vmem:[#allocation8 + $0x8] sm:$0xf]
        %v1832 = vld [vmem:[#allocation8 + $0xc] sm:$0xf]
        %v1833 = vld [vmem:[#allocation10] sm:$0x1]
        %v1835 = vlaneseq
        %v1836 = vshrl.u32 %v1835, 7
        %v1837 = vsub.s32 0, %v1836
        %v1838 = vrot.slane %v1833, %v1837
        %v1844 = vunpack.c.l.b16 %v1829
        %v1845 = vunpack.c.l.b16 %v1830
        %v1846 = vunpack.c.l.b16 %v1831
        %v1847 = vunpack.c.l.b16 %v1832
        %v1848 = vpack.c.b16 %v1845, %v1844
        %v1849 = vpack.c.b16 %v1847, %v1846
        %v1853 = vsel %vm575, %v1828, 0
        %1855 = vmatprep.subr.bf16.mxu0 0
        %1856 = vmatpush1.bf16.msra.mxu0 0
        %1857 = vmatprep.subr.bf16.mxu0 0
        %1858 = vmatpush1.bf16.msra.mxu0 0
        %1859 = vmatprep.subr.bf16.mxu0 0
        %1860 = vmatpush1.bf16.msra.mxu0 0
        %1861 = vmatprep.subr.bf16.mxu0 0
        %1862 = vmatpush1.bf16.msra.mxu0 0
        %1863 = vmatprep.subr.bf16.mxu0 0
        %1864 = vmatpush1.bf16.msra.mxu0 0
        %1865 = vmatprep.subr.bf16.mxu0 0
        %1866 = vmatpush1.bf16.msra.mxu0 0
        %1867 = vmatprep.subr.bf16.mxu0 0
        %1868 = vmatpush1.bf16.msra.mxu0 %v1849
        %1869 = vmatprep.subr.bf16.mxu0 0
        %1870 = vmatpush1.bf16.msra.mxu0 %v1848
        %1871 = vmatprep.subr.bf16.mxu0 0
        %1872 = vmatpush2.bf16.msra.mxu0 0
        %1873 = vmatprep.subr.bf16.mxu0 0
        %1874 = vmatpush2.bf16.msra.mxu0 0
        %1875 = vmatprep.subr.bf16.mxu0 0
        %1876 = vmatpush2.bf16.msra.mxu0 0
        %1877 = vmatprep.subr.bf16.mxu0 0
        %1878 = vmatpush2.bf16.msra.mxu0 0
        %1879 = vmatprep.subr.bf16.mxu0 0
        %1880 = vmatpush2.bf16.msra.mxu0 0
        %1881 = vmatprep.subr.bf16.mxu0 0
        %1882 = vmatpush2.bf16.msra.mxu0 0
        %1883 = vmatprep.subr.bf16.mxu0 0
        %1884 = vmatpush2.bf16.msra.mxu0 0
        %1885 = vmatprep.subr.bf16.mxu0 0
        %1886 = vmatpush2.bf16.msra.mxu0 0
        %1887 = vmatprep.mubr.bf16.mxu0 0
        %1888 = vmatmul.mubr.bf16.gmra.mxu0 %v1853
        %v1889 = vpop.f32.mrf.mxu0
        %v1890 = vadd.f32 %v1838, %v1889
        %v1891 = vpop.f32.mrf.mxu0
        %v1892 = vpop.f32.mrf.mxu0
        %v1893 = vpop.f32.mrf.mxu0
        %1894 = vdwg.mxu0
        %v1895 = vmul.f32 %v1890, 0.5
        %v1896 = vrcp.pop 1.4142135
        %v1897 = vmul.f32 %v1890, %v1896
        %v1898 = verf.f32.pop %v1897
        %v1899 = vadd.f32 %v1898, 1.0
        %v1900 = vmul.f32 %v1895, %v1899
        %v1901 = vpack.c.bf16 %v1900, %v1900
        %v1902 = vld [vmem:[%s10] sm:$0xf]
        %v1903 = vld [vmem:[%s10 + $0x4] sm:$0xf]
        %v1904 = vld [vmem:[%s10 + $0x8] sm:$0xf]
        %v1905 = vld [vmem:[%s10 + $0xc] sm:$0xf]
        %v1906 = vld [vmem:[%s10 + $0x10] sm:$0xf]
        %v1907 = vld [vmem:[%s10 + $0x14] sm:$0xf]
        %v1908 = vld [vmem:[%s10 + $0x18] sm:$0xf]
        %v1909 = vld [vmem:[%s10 + $0x1c] sm:$0xf]
        %v1910 = vld [vmem:[%s11] sm:$0x1]
        %v1912 = vlaneseq
        %v1913 = vshrl.u32 %v1912, 7
        %v1914 = vsub.s32 0, %v1913
        %v1915 = vrot.slane %v1910, %v1914
        %v1925 = vunpack.c.l.b16 %v1902
        %v1926 = vunpack.c.l.b16 %v1903
        %v1927 = vunpack.c.l.b16 %v1904
        %v1928 = vunpack.c.l.b16 %v1905
        %v1929 = vunpack.c.l.b16 %v1906
        %v1930 = vunpack.c.l.b16 %v1907
        %v1931 = vunpack.c.l.b16 %v1908
        %v1932 = vunpack.c.l.b16 %v1909
        %v1933 = vpack.c.b16 %v1926, %v1925
        %v1934 = vpack.c.b16 %v1928, %v1927
        %v1935 = vpack.c.b16 %v1930, %v1929
        %v1936 = vpack.c.b16 %v1932, %v1931
        %vm1941 = vcmask 523264
        %v1943 = vsel %vm1941, %v1901, 0
        %1945 = vmatprep.subr.bf16.mxu0 0
        %1946 = vmatpush1.bf16.msra.mxu0 0
        %1947 = vmatprep.subr.bf16.mxu0 0
        %1948 = vmatpush1.bf16.msra.mxu0 0
        %1949 = vmatprep.subr.bf16.mxu0 0
        %1950 = vmatpush1.bf16.msra.mxu0 0
        %1951 = vmatprep.subr.bf16.mxu0 0
        %1952 = vmatpush1.bf16.msra.mxu0 0
        %1953 = vmatprep.subr.bf16.mxu0 0
        %1954 = vmatpush1.bf16.msra.mxu0 %v1936
        %1955 = vmatprep.subr.bf16.mxu0 0
        %1956 = vmatpush1.bf16.msra.mxu0 %v1935
        %1957 = vmatprep.subr.bf16.mxu0 0
        %1958 = vmatpush1.bf16.msra.mxu0 %v1934
        %1959 = vmatprep.subr.bf16.mxu0 0
        %1960 = vmatpush1.bf16.msra.mxu0 %v1933
        %1961 = vmatprep.subr.bf16.mxu0 0
        %1962 = vmatpush2.bf16.msra.mxu0 0
        %1963 = vmatprep.subr.bf16.mxu0 0
        %1964 = vmatpush2.bf16.msra.mxu0 0
        %1965 = vmatprep.subr.bf16.mxu0 0
        %1966 = vmatpush2.bf16.msra.mxu0 0
        %1967 = vmatprep.subr.bf16.mxu0 0
        %1968 = vmatpush2.bf16.msra.mxu0 0
        %1969 = vmatprep.subr.bf16.mxu0 0
        %1970 = vmatpush2.bf16.msra.mxu0 0
        %1971 = vmatprep.subr.bf16.mxu0 0
        %1972 = vmatpush2.bf16.msra.mxu0 0
        %1973 = vmatprep.subr.bf16.mxu0 0
        %1974 = vmatpush2.bf16.msra.mxu0 0
        %1975 = vmatprep.subr.bf16.mxu0 0
        %1976 = vmatpush2.bf16.msra.mxu0 0
        %1977 = vmatprep.mubr.bf16.mxu0 0
        %1978 = vmatmul.mubr.bf16.gmra.mxu0 %v1943
        %v1979 = vpop.f32.mrf.mxu0
        %v1980 = vadd.f32 %v1915, %v1979
        %v1981 = vpop.f32.mrf.mxu0
        %v1982 = vpop.f32.mrf.mxu0
        %v1983 = vpop.f32.mrf.mxu0
        %1984 = vdwg.mxu0
        %v1985 = vadd.f32 %v1827, %v1980
        %v1986 = vld [vmem:[%s12] sm:$0x1]
        %v1987 = vld [vmem:[%s13] sm:$0x1]
        %v1988 = vsel %vm575, %v1985, 0.0
        %1989 = vadd.xlane.f32.xlu0 %v1988
        %v1990 = vpop.xlane.xlu0 %1989
        %v1991 = vmul.f32 %v1990, %v1803
        %v1992 = vsub.f32 %v1985, %v1991
        %v1993 = vmul.f32 %v1992, %v1992
        %v1994 = vsel %vm575, %v1993, 0.0
        %1995 = vadd.xlane.f32.xlu0 %v1994
        %v1996 = vpop.xlane.xlu0 %1995
        %v1997 = vmul.f32 %v1996, %v1803
        %v1998 = vadd.f32 %v1997, 1e-12
        %v1999 = vrsqrt.pop %v1998
        %v2000 = vmul.f32 %v1992, %v1999
        %v2002 = vlaneseq
        %v2003 = vshrl.u32 %v2002, 7
        %v2004 = vsub.s32 0, %v2003
        %v2005 = vrot.slane %v1986, %v2004
        %v2007 = vmul.f32 %v2005, %v2000
        %v2009 = vlaneseq
        %v2010 = vshrl.u32 %v2009, 7
        %v2011 = vsub.s32 0, %v2010
        %v2012 = vrot.slane %v1987, %v2011
        %v2014 = vadd.f32 %v2007, %v2012
        %2015 = vst.msk [vmem:[%s544] sm:$0xff] %vm575, %v2014
        %s2016 = sand.u32 %s345, 1
        %s2017 = scalar_lea.sflag [#allocation4], %s2016
        %s2018 = sand.u32 %s345, 1
        %s2019 = smul.addr %s2018, 8
        %s2020 = scalar_lea.vmem [#allocation11], %s2019
        // Predicated region
        $region97: #{tpu_custom_call.1} parent=75 // pred_check
          %p2021 = pneg %p355
        $region98: #{tpu_custom_call.1} parent=75 // pred_check_branch
          %2023 = sbr.rel (%p2021) target = $region100
        $region99: #{tpu_custom_call.1} parent=75 // pred_region
          %s2025 = ssub.s32 128, 128
          %2026 = vsyncadd %s2017, %s2025
          %s2027 = smul.addr %s33, 128
          %s2028 = scalar_lea.hbm %s14, %s2027
          %s2030 = sshll.u32 %s2020, 4
          %s2031 = int_to_ptr.vmem [resolvable:$true] %s2030
          %2033 = dma.vmem_to_hbm [thread:$0]  %s2031, 128, %s2028, %s2017
        $region100: #{tpu_custom_call.1} parent=75 // pred_fallthru
          _
      $region76: #{tpu_custom_call.1} parent=5 // pred_fallthru
        _
      %p2034 = scmp.le.s32.totalorder 2, %s28
      // Predicated region
      $region101: #{tpu_custom_call.1} parent=5 // pred_check
        %p2035 = pneg %p2034
      $region102: #{tpu_custom_call.1} parent=5 // pred_check_branch
        %2037 = sbr.rel (%p2035) target = $region104
      $region103: #{tpu_custom_call.1} parent=5 // pred_region
        %s2038 = ssub.s32 %s28, 2
        // Predicated region
        $region105: #{tpu_custom_call.1} parent=103 // pred_check
          %p2039 = pneg %p361
        $region106: #{tpu_custom_call.1} parent=103 // pred_check_branch
          %2041 = sbr.rel (%p2039) target = $region108
        $region107: #{tpu_custom_call.1} parent=103 // pred_region
          %s2042 = sand.u32 %s346, 1
          %s2043 = scalar_lea.sflag [#allocation4], %s2042
          %s2044 = sand.u32 %s346, 1
          %s2045 = smul.addr %s2044, 8
          %s2046 = scalar_lea.vmem [#allocation11], %s2045
          %2047 = dma.done %s2043, 128
        $region108: #{tpu_custom_call.1} parent=103 // pred_fallthru
          _
      $region104: #{tpu_custom_call.1} parent=5 // pred_fallthru
        _
    $region6: #{tpu_custom_call.1} parent=1 // loop_footer
      %s32 = sadd.s32 1, %s28
    $region7: #{tpu_custom_call.1} parent=1 // loop_footer_branch
      %27 = sbr.rel target = $region3
    $region8: #{tpu_custom_call.1} parent=1 // loop_exit
      _
    %2048 = vsyncpa [#allocation3], 1
    %s2049 = scalar_lea.sflag [#allocation3], 1
    %2050 = vsyncpa %s2049, 1
    %2051 = vsyncpa [#allocation6], 1
    %2052 = vsyncpa [#allocation9], 1
    %2053 = vsyncpa [#allocation4], 1
    %s2054 = scalar_lea.sflag [#allocation4], 1
    %2055 = vsyncpa %s2054, 1

// kernel: tpu_custom_call.1
$region0: #{tpu_custom_call.1}
  #allocation0 [shape = 'u32[]', space=smem, size = 0x4, offset = 0x4, fixed_abs, tag = 'smem constant byte address 0x4 - core index']
  #allocation1 [shape = 'u32[144,128]{1,0:T(1,128)}', space=vmem, size = 0x12000, scoped, tag = 'internal scratch']
  %s0 = inlined_call_operand.vmem [shape: f32[2,8,32], index: 0, kind: input, shape index: {}]
  %s1 = inlined_call_operand.hbm [shape: f32[2,1,8], index: 1, kind: input, shape index: {}]
  %s2 = inlined_call_operand.vmem [shape: bf16[32,96], index: 2, kind: input, shape index: {}]
  %s3 = inlined_call_operand.vmem [shape: f32[1,96], index: 3, kind: input, shape index: {}]
  %s4 = inlined_call_operand.vmem [shape: bf16[32,32], index: 4, kind: input, shape index: {}]
  %s5 = inlined_call_operand.vmem [shape: f32[1,32], index: 5, kind: input, shape index: {}]
  %s6 = inlined_call_operand.hbm [shape: f32[1,32], index: 6, kind: input, shape index: {}]
  %s7 = inlined_call_operand.hbm [shape: f32[1,32], index: 7, kind: input, shape index: {}]
  %s8 = inlined_call_operand.hbm [shape: bf16[32,64], index: 8, kind: input, shape index: {}]
  %s9 = inlined_call_operand.hbm [shape: f32[1,64], index: 9, kind: input, shape index: {}]
  %s10 = inlined_call_operand.vmem [shape: bf16[64,32], index: 10, kind: input, shape index: {}]
  %s11 = inlined_call_operand.vmem [shape: f32[1,32], index: 11, kind: input, shape index: {}]
  %s12 = inlined_call_operand.vmem [shape: f32[1,32], index: 12, kind: input, shape index: {}]
  %s13 = inlined_call_operand.vmem [shape: f32[1,32], index: 13, kind: input, shape index: {}]
  %s14 = inlined_call_operand.hbm [shape: f32[2,8,32], index: 14, kind: output, shape index: {}]
  %s15 = sld [smem:[#allocation0]]
  $region109: #{tpu_custom_call.1} parent=0
    _
  %s17 = ssub.s32 1, %s15
  %s18 = scalar_select 0, %s17, %s15
  $region1: #{tpu_custom_call.1} parent=0
    #allocation2 [shape = 'u8[1024]{0}', space=vmem, size = 0x400, scoped, tag = 'input window, operand 1']
    #allocation3 [shape = 's32[2]{0}', space=sflag, size = 0x8, scoped, tag = 'scoped memory for tpu_custom_call.1']
    #allocation4 [shape = 's32[2]{0}', space=sflag, size = 0x8, scoped, tag = 'scoped memory for tpu_custom_call.1']
    #allocation5 [shape = 'u8[512]{0}', space=vmem, size = 0x400, scoped, tag = 'input window, operand 6, single buffered']
    #allocation6 [shape = 's32[1]{0}', space=sflag, size = 0x4, scoped, tag = 'scoped memory for tpu_custom_call.1']
    #allocation7 [shape = 'u8[512]{0}', space=vmem, size = 0x400, scoped, tag = 'input window, operand 7, single buffered']
    #allocation8 [shape = 'u8[8192]{0}', space=vmem, size = 0x2000, scoped, tag = 'input window, operand 8, single buffered']
    #allocation9 [shape = 's32[1]{0}', space=sflag, size = 0x4, scoped, tag = 'scoped memory for tpu_custom_call.1']
    #allocation10 [shape = 'u8[512]{0}', space=vmem, size = 0x400, scoped, tag = 'input window, operand 9, single buffered']
    #allocation11 [shape = 'u8[8192]{0}', space=vmem, size = 0x2000, scoped, tag = 'output window, operand 0']
    %19 = vsyncpa [#allocation3], 0
    %s20 = scalar_lea.sflag [#allocation3], 1
    %21 = vsyncpa %s20, 0
    %22 = vsyncpa [#allocation6], 0
    %23 = vsyncpa [#allocation9], 0
    %24 = vsyncpa [#allocation4], 0
    %s25 = scalar_lea.sflag [#allocation4], 1
    %26 = vsyncpa %s25, 0
    loop: start=0, step=1, limit=4
    $region2: #{tpu_custom_call.1} parent=1 // loop_pre_header
      _
    $region3: #{tpu_custom_call.1} parent=1 // loop_header
      %s28 = sphi 0, %s32
      %p29 = scmp.ge.s32.totalorder %s28, 4
      %s38 = sphi 0, %s40
      %s41 = sphi 0, %s38
      %s42 = sphi 0, %s41
      %s58 = sphi 0, %s42
      %s64 = sphi 0, %s66
      %s67 = sphi 0, %s64
      %s68 = sphi 0, %s67
      %s84 = sphi 0, %s68
      %s88 = sphi 0, %s88
      %s90 = sphi 0, %s88
      %s91 = sphi 0, %s90
      %s105 = sphi 0, %s91
      %s109 = sphi 0, %s109
      %s111 = sphi 0, %s109
      %s112 = sphi 0, %s111
      %s126 = sphi 0, %s112
      %s130 = sphi 0, %s130
      %s132 = sphi 0, %s130
      %s133 = sphi 0, %s132
      %s147 = sphi 0, %s133
      %s151 = sphi 0, %s151
      %s153 = sphi 0, %s151
      %s154 = sphi 0, %s153
      %s168 = sphi 0, %s154
      %s172 = sphi 0, %s172
      %s174 = sphi 0, %s172
      %s175 = sphi 0, %s174
      %s189 = sphi 0, %s175
      %s193 = sphi 0, %s193
      %s195 = sphi 0, %s193
      %s196 = sphi 0, %s195
      %s210 = sphi 0, %s196
      %s214 = sphi 0, %s214
      %s216 = sphi 0, %s214
      %s217 = sphi 0, %s216
      %s231 = sphi 0, %s217
      %s235 = sphi 0, %s235
      %s237 = sphi 0, %s235
      %s238 = sphi 0, %s237
      %s252 = sphi 0, %s238
      %s256 = sphi 0, %s256
      %s258 = sphi 0, %s256
      %s259 = sphi 0, %s258
      %s273 = sphi 0, %s259
      %s277 = sphi 0, %s277
      %s279 = sphi 0, %s277
      %s280 = sphi 0, %s279
      %s294 = sphi 0, %s280
      %s298 = sphi 0, %s298
      %s300 = sphi 0, %s298
      %s301 = sphi 0, %s300
      %s315 = sphi 0, %s301
      %s319 = sphi 0, %s319
      %s321 = sphi 0, %s319
      %s322 = sphi 0, %s321
      %s336 = sphi 0, %s322
      %s342 = sphi 0, %s344
      %s345 = sphi 0, %s342
      %s346 = sphi 0, %s345
      %s362 = sphi 0, %s346
    $region4: #{tpu_custom_call.1} parent=1 // loop_header_branch
      %31 = sbr.rel (%p29) target = $region8
    $region5: #{tpu_custom_call.1} parent=1 // loop_body
      %s33 = ssub.s32 %s28, 1
      %s34 = ssub.s32 %s28, 2
      %s35 = sadd.s32 %s28, 1
      %s36 = ssub.s32 %s28, %s35
      %p37 = scmp.eq.s32.totalorder %s36, 0
      %s39 = sadd.s32 %s38, 1
      %s40 = scalar_select %p37, %s38, %s39
      %p43 = pneg %p37
      %p44 = scmp.eq.s32.totalorder %s28, 1
      %p45 = por %p43, %p44
      %p46 = scmp.ne.s32.totalorder %s38, %s41
      %p47 = scmp.eq.s32.totalorder %s28, 0
      %p48 = por %p46, %p47
      %p49 = scmp.ne.s32.totalorder %s38, %s41
      %p50 = scmp.eq.s32.totalorder %s33, 1
      %p51 = por %p49, %p50
      %p52 = scmp.ne.s32.totalorder %s41, %s42
      %p53 = scmp.eq.s32.totalorder %s33, 0
      %p54 = por %p52, %p53
      %p55 = scmp.ne.s32.totalorder %s41, %s42
      %p56 = scmp.eq.s32.totalorder %s34, 1
      %p57 = por %p55, %p56
      %p59 = scmp.ne.s32.totalorder %s42, %s58
      %p60 = scmp.eq.s32.totalorder %s34, 0
      %p61 = por %p59, %p60
      %s62 = ssub.s32 %s28, %s35
      %p63 = scmp.eq.s32.totalorder %s62, 0
      %s65 = sadd.s32 %s64, 1
      %s66 = scalar_select %p63, %s64, %s65
      %p69 = pneg %p63
      %p70 = scmp.eq.s32.totalorder %s28, 1
      %p71 = por %p69, %p70
      %p72 = scmp.ne.s32.totalorder %s64, %s67
      %p73 = scmp.eq.s32.totalorder %s28, 0
      %p74 = por %p72, %p73
      %p75 = scmp.ne.s32.totalorder %s64, %s67
      %p76 = scmp.eq.s32.totalorder %s33, 1
      %p77 = por %p75, %p76
      %p78 = scmp.ne.s32.totalorder %s67, %s68
      %p79 = scmp.eq.s32.totalorder %s33, 0
      %p80 = por %p78, %p79
      %p81 = scmp.ne.s32.totalorder %s67, %s68
      %p82 = scmp.eq.s32.totalorder %s34, 1
      %p83 = por %p81, %p82
      %p85 = scmp.ne.s32.totalorder %s68, %s84
      %p86 = scmp.eq.s32.totalorder %s34, 0
      %p87 = por %p85, %p86
      %s89 = sadd.s32 %s88, 1
      %p92 = scmp.eq.s32.totalorder %s28, 1
      %p93 = scmp.ne.s32.totalorder %s88, %s90
      %p94 = scmp.eq.s32.totalorder %s28, 0
      %p95 = por %p93, %p94
      %p96 = scmp.ne.s32.totalorder %s88, %s90
      %p97 = scmp.eq.s32.totalorder %s33, 1
      %p98 = por %p96, %p97
      %p99 = scmp.ne.s32.totalorder %s90, %s91
      %p100 = scmp.eq.s32.totalorder %s33, 0
      %p101 = por %p99, %p100
      %p102 = scmp.ne.s32.totalorder %s90, %s91
      %p103 = scmp.eq.s32.totalorder %s34, 1
      %p104 = por %p102, %p103
      %p106 = scmp.ne.s32.totalorder %s91, %s105
      %p107 = scmp.eq.s32.totalorder %s34, 0
      %p108 = por %p106, %p107
      %s110 = sadd.s32 %s109, 1
      %p113 = scmp.eq.s32.totalorder %s28, 1
      %p114 = scmp.ne.s32.totalorder %s109, %s111
      %p115 = scmp.eq.s32.totalorder %s28, 0
      %p116 = por %p114, %p115
      %p117 = scmp.ne.s32.totalorder %s109, %s111
      %p118 = scmp.eq.s32.totalorder %s33, 1
      %p119 = por %p117, %p118
      %p120 = scmp.ne.s32.totalorder %s111, %s112
      %p121 = scmp.eq.s32.totalorder %s33, 0
      %p122 = por %p120, %p121
      %p123 = scmp.ne.s32.totalorder %s111, %s112
      %p124 = scmp.eq.s32.totalorder %s34, 1
      %p125 = por %p123, %p124
      %p127 = scmp.ne.s32.totalorder %s112, %s126
      %p128 = scmp.eq.s32.totalorder %s34, 0
      %p129 = por %p127, %p128
      %s131 = sadd.s32 %s130, 1
      %p134 = scmp.eq.s32.totalorder %s28, 1
      %p135 = scmp.ne.s32.totalorder %s130, %s132
      %p136 = scmp.eq.s32.totalorder %s28, 0
      %p137 = por %p135, %p136
      %p138 = scmp.ne.s32.totalorder %s130, %s132
      %p139 = scmp.eq.s32.totalorder %s33, 1
      %p140 = por %p138, %p139
      %p141 = scmp.ne.s32.totalorder %s132, %s133
      %p142 = scmp.eq.s32.totalorder %s33, 0
      %p143 = por %p141, %p142
      %p144 = scmp.ne.s32.totalorder %s132, %s133
      %p145 = scmp.eq.s32.totalorder %s34, 1
      %p146 = por %p144, %p145
      %p148 = scmp.ne.s32.totalorder %s133, %s147
      %p149 = scmp.eq.s32.totalorder %s34, 0
      %p150 = por %p148, %p149
      %s152 = sadd.s32 %s151, 1
      %p155 = scmp.eq.s32.totalorder %s28, 1
      %p156 = scmp.ne.s32.totalorder %s151, %s153
      %p157 = scmp.eq.s32.totalorder %s28, 0
      %p158 = por %p156, %p157
      %p159 = scmp.ne.s32.totalorder %s151, %s153
      %p160 = scmp.eq.s32.totalorder %s33, 1
      %p161 = por %p159, %p160
      %p162 = scmp.ne.s32.totalorder %s153, %s154
      %p163 = scmp.eq.s32.totalorder %s33, 0
      %p164 = por %p162, %p163
      %p165 = scmp.ne.s32.totalorder %s153, %s154
      %p166 = scmp.eq.s32.totalorder %s34, 1
      %p167 = por %p165, %p166
      %p169 = scmp.ne.s32.totalorder %s154, %s168
      %p170 = scmp.eq.s32.totalorder %s34, 0
      %p171 = por %p169, %p170
      %s173 = sadd.s32 %s172, 1
      %p176 = scmp.eq.s32.totalorder %s28, 1
      %p177 = scmp.ne.s32.totalorder %s172, %s174
      %p178 = scmp.eq.s32.totalorder %s28, 0
      %p179 = por %p177, %p178
      %p180 = scmp.ne.s32.totalorder %s172, %s174
      %p181 = scmp.eq.s32.totalorder %s33, 1
      %p182 = por %p180, %p181
      %p183 = scmp.ne.s32.totalorder %s174, %s175
      %p184 = scmp.eq.s32.totalorder %s33, 0
      %p185 = por %p183, %p184
      %p186 = scmp.ne.s32.totalorder %s174, %s175
      %p187 = scmp.eq.s32.totalorder %s34, 1
      %p188 = por %p186, %p187
      %p190 = scmp.ne.s32.totalorder %s175, %s189
      %p191 = scmp.eq.s32.totalorder %s34, 0
      %p192 = por %p190, %p191
      %s194 = sadd.s32 %s193, 1
      %p197 = scmp.eq.s32.totalorder %s28, 1
      %p198 = scmp.ne.s32.totalorder %s193, %s195
      %p199 = scmp.eq.s32.totalorder %s28, 0
      %p200 = por %p198, %p199
      %p201 = scmp.ne.s32.totalorder %s193, %s195
      %p202 = scmp.eq.s32.totalorder %s33, 1
      %p203 = por %p201, %p202
      %p204 = scmp.ne.s32.totalorder %s195, %s196
      %p205 = scmp.eq.s32.totalorder %s33, 0
      %p206 = por %p204, %p205
      %p207 = scmp.ne.s32.totalorder %s195, %s196
      %p208 = scmp.eq.s32.totalorder %s34, 1
      %p209 = por %p207, %p208
      %p211 = scmp.ne.s32.totalorder %s196, %s210
      %p212 = scmp.eq.s32.totalorder %s34, 0
      %p213 = por %p211, %p212
      %s215 = sadd.s32 %s214, 1
      %p218 = scmp.eq.s32.totalorder %s28, 1
      %p219 = scmp.ne.s32.totalorder %s214, %s216
      %p220 = scmp.eq.s32.totalorder %s28, 0
      %p221 = por %p219, %p220
      %p222 = scmp.ne.s32.totalorder %s214, %s216
      %p223 = scmp.eq.s32.totalorder %s33, 1
      %p224 = por %p222, %p223
      %p225 = scmp.ne.s32.totalorder %s216, %s217
      %p226 = scmp.eq.s32.totalorder %s33, 0
      %p227 = por %p225, %p226
      %p228 = scmp.ne.s32.totalorder %s216, %s217
      %p229 = scmp.eq.s32.totalorder %s34, 1
      %p230 = por %p228, %p229
      %p232 = scmp.ne.s32.totalorder %s217, %s231
      %p233 = scmp.eq.s32.totalorder %s34, 0
      %p234 = por %p232, %p233
      %s236 = sadd.s32 %s235, 1
      %p239 = scmp.eq.s32.totalorder %s28, 1
      %p240 = scmp.ne.s32.totalorder %s235, %s237
      %p241 = scmp.eq.s32.totalorder %s28, 0
      %p242 = por %p240, %p241
      %p243 = scmp.ne.s32.totalorder %s235, %s237
      %p244 = scmp.eq.s32.totalorder %s33, 1
      %p245 = por %p243, %p244
      %p246 = scmp.ne.s32.totalorder %s237, %s238
      %p247 = scmp.eq.s32.totalorder %s33, 0
      %p248 = por %p246, %p247
      %p249 = scmp.ne.s32.totalorder %s237, %s238
      %p250 = scmp.eq.s32.totalorder %s34, 1
      %p251 = por %p249, %p250
      %p253 = scmp.ne.s32.totalorder %s238, %s252
      %p254 = scmp.eq.s32.totalorder %s34, 0
      %p255 = por %p253, %p254
      %s257 = sadd.s32 %s256, 1
      %p260 = scmp.eq.s32.totalorder %s28, 1
      %p261 = scmp.ne.s32.totalorder %s256, %s258
      %p262 = scmp.eq.s32.totalorder %s28, 0
      %p263 = por %p261, %p262
      %p264 = scmp.ne.s32.totalorder %s256, %s258
      %p265 = scmp.eq.s32.totalorder %s33, 1
      %p266 = por %p264, %p265
      %p267 = scmp.ne.s32.totalorder %s258, %s259
      %p268 = scmp.eq.s32.totalorder %s33, 0
      %p269 = por %p267, %p268
      %p270 = scmp.ne.s32.totalorder %s258, %s259
      %p271 = scmp.eq.s32.totalorder %s34, 1
      %p272 = por %p270, %p271
      %p274 = scmp.ne.s32.totalorder %s259, %s273
      %p275 = scmp.eq.s32.totalorder %s34, 0
      %p276 = por %p274, %p275
      %s278 = sadd.s32 %s277, 1
      %p281 = scmp.eq.s32.totalorder %s28, 1
      %p282 = scmp.ne.s32.totalorder %s277, %s279
      %p283 = scmp.eq.s32.totalorder %s28, 0
      %p284 = por %p282, %p283
      %p285 = scmp.ne.s32.totalorder %s277, %s279
      %p286 = scmp.eq.s32.totalorder %s33, 1
      %p287 = por %p285, %p286
      %p288 = scmp.ne.s32.totalorder %s279, %s280
      %p289 = scmp.eq.s32.totalorder %s33, 0
      %p290 = por %p288, %p289
      %p291 = scmp.ne.s32.totalorder %s279, %s280
      %p292 = scmp.eq.s32.totalorder %s34, 1
      %p293 = por %p291, %p292
      %p295 = scmp.ne.s32.totalorder %s280, %s294
      %p296 = scmp.eq.s32.totalorder %s34, 0
      %p297 = por %p295, %p296
      %s299 = sadd.s32 %s298, 1
      %p302 = scmp.eq.s32.totalorder %s28, 1
      %p303 = scmp.ne.s32.totalorder %s298, %s300
      %p304 = scmp.eq.s32.totalorder %s28, 0
      %p305 = por %p303, %p304
      %p306 = scmp.ne.s32.totalorder %s298, %s300
      %p307 = scmp.eq.s32.totalorder %s33, 1
      %p308 = por %p306, %p307
      %p309 = scmp.ne.s32.totalorder %s300, %s301
      %p310 = scmp.eq.s32.totalorder %s33, 0
      %p311 = por %p309, %p310
      %p312 = scmp.ne.s32.totalorder %s300, %s301
      %p313 = scmp.eq.s32.totalorder %s34, 1
      %p314 = por %p312, %p313
      %p316 = scmp.ne.s32.totalorder %s301, %s315
      %p317 = scmp.eq.s32.totalorder %s34, 0
      %p318 = por %p316, %p317
      %s320 = sadd.s32 %s319, 1
      %p323 = scmp.eq.s32.totalorder %s28, 1
      %p324 = scmp.ne.s32.totalorder %s319, %s321
      %p325 = scmp.eq.s32.totalorder %s28, 0
      %p326 = por %p324, %p325
      %p327 = scmp.ne.s32.totalorder %s319, %s321
      %p328 = scmp.eq.s32.totalorder %s33, 1
      %p329 = por %p327, %p328
      %p330 = scmp.ne.s32.totalorder %s321, %s322
      %p331 = scmp.eq.s32.totalorder %s33, 0
      %p332 = por %p330, %p331
      %p333 = scmp.ne.s32.totalorder %s321, %s322
      %p334 = scmp.eq.s32.totalorder %s34, 1
      %p335 = por %p333, %p334
      %p337 = scmp.ne.s32.totalorder %s322, %s336
      %p338 = scmp.eq.s32.totalorder %s34, 0
      %p339 = por %p337, %p338
      %s340 = ssub.s32 %s28, %s35
      %p341 = scmp.eq.s32.totalorder %s340, 0
      %s343 = sadd.s32 %s342, 1
      %s344 = scalar_select %p341, %s342, %s343
      %p347 = pneg %p341
      %p348 = scmp.eq.s32.totalorder %s28, 1
      %p349 = por %p347, %p348
      %p350 = scmp.ne.s32.totalorder %s342, %s345
      %p351 = scmp.eq.s32.totalorder %s28, 0
      %p352 = por %p350, %p351
      %p353 = scmp.ne.s32.totalorder %s342, %s345
      %p354 = scmp.eq.s32.totalorder %s33, 1
      %p355 = por %p353, %p354
      %p356 = scmp.ne.s32.totalorder %s345, %s346
      %p357 = scmp.eq.s32.totalorder %s33, 0
      %p358 = por %p356, %p357
      %p359 = scmp.ne.s32.totalorder %s345, %s346
      %p360 = scmp.eq.s32.totalorder %s34, 1
      %p361 = por %p359, %p360
      %p363 = scmp.ne.s32.totalorder %s346, %s362
      %p364 = scmp.eq.s32.totalorder %s34, 0
      %p365 = por %p363, %p364
      %p366 = scmp.le.s32.totalorder 1, %s28
      %p367 = scmp.lt.s32.totalorder %s28, 3
      %p368 = pnand %p366, %p367
      %p369 = pneg %p368
      // Predicated region
      $region9: #{tpu_custom_call.1} parent=5 // pred_check
        _
      $region10: #{tpu_custom_call.1} parent=5 // pred_check_branch
        %371 = sbr.rel (%p368) target = $region12
      $region11: #{tpu_custom_call.1} parent=5 // pred_region
        %s372 = ssub.s32 %s28, 1
        // Predicated region
        $region13: #{tpu_custom_call.1} parent=11 // pred_check
          %p373 = pneg %p101
        $region14: #{tpu_custom_call.1} parent=11 // pred_check_branch
          %375 = sbr.rel (%p373) target = $region16
        $region15: #{tpu_custom_call.1} parent=11 // pred_region
          _
        $region16: #{tpu_custom_call.1} parent=11 // pred_fallthru
          _
        // Predicated region
        $region17: #{tpu_custom_call.1} parent=11 // pred_check
          %p376 = pneg %p122
        $region18: #{tpu_custom_call.1} parent=11 // pred_check_branch
          %378 = sbr.rel (%p376) target = $region20
        $region19: #{tpu_custom_call.1} parent=11 // pred_region
          _
        $region20: #{tpu_custom_call.1} parent=11 // pred_fallthru
          _
        // Predicated region
        $region21: #{tpu_custom_call.1} parent=11 // pred_check
          %p379 = pneg %p143
        $region22: #{tpu_custom_call.1} parent=11 // pred_check_branch
          %381 = sbr.rel (%p379) target = $region24
        $region23: #{tpu_custom_call.1} parent=11 // pred_region
          _
        $region24: #{tpu_custom_call.1} parent=11 // pred_fallthru
          _
        // Predicated region
        $region25: #{tpu_custom_call.1} parent=11 // pred_check
          %p382 = pneg %p164
        $region26: #{tpu_custom_call.1} parent=11 // pred_check_branch
          %384 = sbr.rel (%p382) target = $region28
        $region27: #{tpu_custom_call.1} parent=11 // pred_region
          _
        $region28: #{tpu_custom_call.1} parent=11 // pred_fallthru
          _
        // Predicated region
        $region29: #{tpu_custom_call.1} parent=11 // pred_check
          %p385 = pneg %p185
        $region30: #{tpu_custom_call.1} parent=11 // pred_check_branch
          %387 = sbr.rel (%p385) target = $region32
        $region31: #{tpu_custom_call.1} parent=11 // pred_region
          %s389 = ssub.s32 16, 16
          %390 = vsyncadd [#allocation6], %s389
          %s392 = sshll.u32 [#allocation5], 4
          %s393 = int_to_ptr.vmem [resolvable:$true] %s392
          %395 = dma.hbm_to_vmem [thread:$0]  %s6, 16, %s393, [#allocation6]
        $region32: #{tpu_custom_call.1} parent=11 // pred_fallthru
          _
        // Predicated region
        $region33: #{tpu_custom_call.1} parent=11 // pred_check
          %p396 = pneg %p206
        $region34: #{tpu_custom_call.1} parent=11 // pred_check_branch
          %398 = sbr.rel (%p396) target = $region36
        $region35: #{tpu_custom_call.1} parent=11 // pred_region
          %s400 = ssub.s32 16, 16
          %401 = vsyncadd [#allocation6], %s400
          %s403 = sshll.u32 [#allocation7], 4
          %s404 = int_to_ptr.vmem [resolvable:$true] %s403
          %406 = dma.hbm_to_vmem [thread:$0]  %s7, 16, %s404, [#allocation6]
        $region36: #{tpu_custom_call.1} parent=11 // pred_fallthru
          _
        // Predicated region
        $region37: #{tpu_custom_call.1} parent=11 // pred_check
          %p407 = pneg %p227
        $region38: #{tpu_custom_call.1} parent=11 // pred_check_branch
          %409 = sbr.rel (%p407) target = $region40
        $region39: #{tpu_custom_call.1} parent=11 // pred_region
          %s411 = ssub.s32 256, 256
          %412 = vsyncadd [#allocation9], %s411
          %s413 = sshll.u32 [#allocation8], 4
          %s414 = int_to_ptr.vmem [resolvable:$true] %s413
          %419 = dma.hbm_to_vmem [thread:$0]  %s8, 256, %s414, [#allocation9], 64, 64, 4
        $region40: #{tpu_custom_call.1} parent=11 // pred_fallthru
          _
        // Predicated region
        $region41: #{tpu_custom_call.1} parent=11 // pred_check
          %p420 = pneg %p248
        $region42: #{tpu_custom_call.1} parent=11 // pred_check_branch
          %422 = sbr.rel (%p420) target = $region44
        $region43: #{tpu_custom_call.1} parent=11 // pred_region
          %s424 = ssub.s32 16, 16
          %425 = vsyncadd [#allocation9], %s424
          %s427 = sshll.u32 [#allocation10], 4
          %s428 = int_to_ptr.vmem [resolvable:$true] %s427
          %430 = dma.hbm_to_vmem [thread:$0]  %s9, 16, %s428, [#allocation9]
        $region44: #{tpu_custom_call.1} parent=11 // pred_fallthru
          _
        // Predicated region
        $region45: #{tpu_custom_call.1} parent=11 // pred_check
          %p431 = pneg %p269
        $region46: #{tpu_custom_call.1} parent=11 // pred_check_branch
          %433 = sbr.rel (%p431) target = $region48
        $region47: #{tpu_custom_call.1} parent=11 // pred_region
          _
        $region48: #{tpu_custom_call.1} parent=11 // pred_fallthru
          _
        // Predicated region
        $region49: #{tpu_custom_call.1} parent=11 // pred_check
          %p434 = pneg %p290
        $region50: #{tpu_custom_call.1} parent=11 // pred_check_branch
          %436 = sbr.rel (%p434) target = $region52
        $region51: #{tpu_custom_call.1} parent=11 // pred_region
          _
        $region52: #{tpu_custom_call.1} parent=11 // pred_fallthru
          _
        // Predicated region
        $region53: #{tpu_custom_call.1} parent=11 // pred_check
          %p437 = pneg %p311
        $region54: #{tpu_custom_call.1} parent=11 // pred_check_branch
          %439 = sbr.rel (%p437) target = $region56
        $region55: #{tpu_custom_call.1} parent=11 // pred_region
          _
        $region56: #{tpu_custom_call.1} parent=11 // pred_fallthru
          _
        // Predicated region
        $region57: #{tpu_custom_call.1} parent=11 // pred_check
          %p440 = pneg %p332
        $region58: #{tpu_custom_call.1} parent=11 // pred_check_branch
          %442 = sbr.rel (%p440) target = $region60
        $region59: #{tpu_custom_call.1} parent=11 // pred_region
          _
        $region60: #{tpu_custom_call.1} parent=11 // pred_fallthru
          _
      $region12: #{tpu_custom_call.1} parent=5 // pred_fallthru
        _
      %p443 = scmp.lt.s32.totalorder %s28, 2
      // Predicated region
      $region61: #{tpu_custom_call.1} parent=5 // pred_check
        %p444 = pneg %p443
      $region62: #{tpu_custom_call.1} parent=5 // pred_check_branch
        %446 = sbr.rel (%p444) target = $region64
      $region63: #{tpu_custom_call.1} parent=5 // pred_region
        // Predicated region
        $region65: #{tpu_custom_call.1} parent=63 // pred_check
          %p447 = pneg %p48
        $region66: #{tpu_custom_call.1} parent=63 // pred_check_branch
          %449 = sbr.rel (%p447) target = $region68
        $region67: #{tpu_custom_call.1} parent=63 // pred_region
          %p450 = scmp.lt.s32.totalorder %s28, 1
          %s451 = scalar_select %p450, %s28, 1
          %s452 = smul.addr %s451, 8
          %s453 = scalar_lea.vmem %s0, %s452
        $region68: #{tpu_custom_call.1} parent=63 // pred_fallthru
          _
        // Predicated region
        $region69: #{tpu_custom_call.1} parent=63 // pred_check
          %p454 = pneg %p74
        $region70: #{tpu_custom_call.1} parent=63 // pred_check_branch
          %456 = sbr.rel (%p454) target = $region72
        $region71: #{tpu_custom_call.1} parent=63 // pred_region
          %s457 = sand.u32 %s64, 1
          %s458 = scalar_lea.sflag [#allocation3], %s457
          %s459 = sand.u32 %s64, 1
          %s460 = scalar_lea.vmem [#allocation2], %s459
          %s462 = ssub.s32 16, 16
          %463 = vsyncadd %s458, %s462
          %s464 = smul.addr %s28, 16
          %s465 = scalar_lea.hbm %s1, %s464
          %s467 = sshll.u32 %s460, 4
          %s468 = int_to_ptr.vmem [resolvable:$true] %s467
          %470 = dma.hbm_to_vmem [thread:$0]  %s465, 16, %s468, %s458
        $region72: #{tpu_custom_call.1} parent=63 // pred_fallthru
          _
      $region64: #{tpu_custom_call.1} parent=5 // pred_fallthru
        _
      %p471 = scmp.le.s32.totalorder 1, %s28
      %p472 = scmp.lt.s32.totalorder %s28, 3
      %p473 = pnand %p471, %p472
      %p474 = pneg %p473
      // Predicated region
      $region73: #{tpu_custom_call.1} parent=5 // pred_check
        _
      $region74: #{tpu_custom_call.1} parent=5 // pred_check_branch
        %476 = sbr.rel (%p473) target = $region76
      $region75: #{tpu_custom_call.1} parent=5 // pred_region
        %s477 = ssub.s32 %s28, 1
        %s478 = sand.u32 %s67, 1
        %s479 = scalar_lea.sflag [#allocation3], %s478
        %s480 = sand.u32 %s67, 1
        %s481 = scalar_lea.vmem [#allocation2], %s480
        // Predicated region
        $region77: #{tpu_custom_call.1} parent=75 // pred_check
          %p482 = pneg %p80
        $region78: #{tpu_custom_call.1} parent=75 // pred_check_branch
          %484 = sbr.rel (%p482) target = $region80
        $region79: #{tpu_custom_call.1} parent=75 // pred_region
          %485 = dma.done %s479, 16
        $region80: #{tpu_custom_call.1} parent=75 // pred_fallthru
          _
        // Predicated region
        $region81: #{tpu_custom_call.1} parent=75 // pred_check
          %p486 = pneg %p185
        $region82: #{tpu_custom_call.1} parent=75 // pred_check_branch
          %488 = sbr.rel (%p486) target = $region84
        $region83: #{tpu_custom_call.1} parent=75 // pred_region
          %489 = dma.done [#allocation6], 16
        $region84: #{tpu_custom_call.1} parent=75 // pred_fallthru
          _
        // Predicated region
        $region85: #{tpu_custom_call.1} parent=75 // pred_check
          %p490 = pneg %p206
        $region86: #{tpu_custom_call.1} parent=75 // pred_check_branch
          %492 = sbr.rel (%p490) target = $region88
        $region87: #{tpu_custom_call.1} parent=75 // pred_region
          %493 = dma.done [#allocation6], 16
        $region88: #{tpu_custom_call.1} parent=75 // pred_fallthru
          _
        // Predicated region
        $region89: #{tpu_custom_call.1} parent=75 // pred_check
          %p494 = pneg %p227
        $region90: #{tpu_custom_call.1} parent=75 // pred_check_branch
          %496 = sbr.rel (%p494) target = $region92
        $region91: #{tpu_custom_call.1} parent=75 // pred_region
          %497 = dma.done [#allocation9], 256
        $region92: #{tpu_custom_call.1} parent=75 // pred_fallthru
          _
        // Predicated region
        $region93: #{tpu_custom_call.1} parent=75 // pred_check
          %p498 = pneg %p248
        $region94: #{tpu_custom_call.1} parent=75 // pred_check_branch
          %500 = sbr.rel (%p498) target = $region96
        $region95: #{tpu_custom_call.1} parent=75 // pred_region
          %501 = dma.done [#allocation9], 16
        $region96: #{tpu_custom_call.1} parent=75 // pred_fallthru
          _
        %p502 = scmp.lt.s32.totalorder %s33, 1
        %s503 = scalar_select %p502, %s33, 1
        %s504 = smul.addr %s503, 8
        %s505 = scalar_lea.vmem %s0, %s504
        %p506 = pneg %p54
        %p507 = pneg %p51
        %s508 = sand.u32 %s67, 1
        %s509 = scalar_lea.sflag [#allocation3], %s508
        %s510 = sand.u32 %s67, 1
        %s511 = scalar_lea.vmem [#allocation2], %s510
        %p512 = pneg %p80
        %p513 = pneg %p77
        %p514 = pneg %p101
        %p515 = pneg %p98
        %p516 = pneg %p122
        %p517 = pneg %p119
        %p518 = pneg %p143
        %p519 = pneg %p140
        %p520 = pneg %p164
        %p521 = pneg %p161
        %p522 = pneg %p185
        %p523 = pneg %p182
        %p524 = pneg %p206
        %p525 = pneg %p203
        %p526 = pneg %p227
        %p527 = pneg %p224
        %p528 = pneg %p248
        %p529 = pneg %p245
        %p530 = pneg %p269
        %p531 = pneg %p266
        %p532 = pneg %p290
        %p533 = pneg %p287
        %p534 = pneg %p311
        %p535 = pneg %p308
        %p536 = pneg %p332
        %p537 = pneg %p329
        %p538 = pneg %p358
        %p539 = pneg %p355
        %s540 = sand.u32 %s345, 1
        %s541 = scalar_lea.sflag [#allocation4], %s540
        %s542 = sand.u32 %s345, 1
        %s543 = smul.addr %s542, 8
        %s544 = scalar_lea.vmem [#allocation11], %s543
        %p545 = scmp.lt.s32.totalorder %s33, 1
        %s546 = scalar_select %p545, %s33, 1
        %s547 = smul.addr %s546, 8
        %s548 = scalar_lea.vmem %s0, %s547
        %v550 = vld [vmem:[%s548] sm:$0xff]
        %v551 = vpack.c.bf16 %v550, %v550
        %v552 = vld [vmem:[%s2] sm:$0xf]
        %v553 = vld [vmem:[%s2 + $0x4] sm:$0xf]
        %v554 = vld [vmem:[%s2 + $0x8] sm:$0xf]
        %v555 = vld [vmem:[%s2 + $0xc] sm:$0xf]
        %v556 = vld [vmem:[%s3] sm:$0x1]
        %v558 = vlaneseq
        %v559 = vshrl.u32 %v558, 7
        %v560 = vsub.s32 0, %v559
        %v561 = vrot.slane %v556, %v560
        %v567 = vunpack.c.l.b16 %v552
        %v568 = vunpack.c.l.b16 %v553
        %v569 = vunpack.c.l.b16 %v554
        %v570 = vunpack.c.l.b16 %v555
        %v571 = vpack.c.b16 %v568, %v567
        %v572 = vpack.c.b16 %v570, %v569
        %vm575 = vcmask 261120
        %v577 = vsel %vm575, %v551, 0
        %579 = vmatprep.subr.bf16.mxu0 0
        %580 = vmatpush1.bf16.msra.mxu0 0
        %581 = vmatprep.subr.bf16.mxu0 0
        %582 = vmatpush1.bf16.msra.mxu0 0
        %583 = vmatprep.subr.bf16.mxu0 0
        %584 = vmatpush1.bf16.msra.mxu0 0
        %585 = vmatprep.subr.bf16.mxu0 0
        %586 = vmatpush1.bf16.msra.mxu0 0
        %587 = vmatprep.subr.bf16.mxu0 0
        %588 = vmatpush1.bf16.msra.mxu0 0
        %589 = vmatprep.subr.bf16.mxu0 0
        %590 = vmatpush1.bf16.msra.mxu0 0
        %591 = vmatprep.subr.bf16.mxu0 0
        %592 = vmatpush1.bf16.msra.mxu0 %v572
        %593 = vmatprep.subr.bf16.mxu0 0
        %594 = vmatpush1.bf16.msra.mxu0 %v571
        %595 = vmatprep.subr.bf16.mxu0 0
        %596 = vmatpush2.bf16.msra.mxu0 0
        %597 = vmatprep.subr.bf16.mxu0 0
        %598 = vmatpush2.bf16.msra.mxu0 0
        %599 = vmatprep.subr.bf16.mxu0 0
        %600 = vmatpush2.bf16.msra.mxu0 0
        %601 = vmatprep.subr.bf16.mxu0 0
        %602 = vmatpush2.bf16.msra.mxu0 0
        %603 = vmatprep.subr.bf16.mxu0 0
        %604 = vmatpush2.bf16.msra.mxu0 0
        %605 = vmatprep.subr.bf16.mxu0 0
        %606 = vmatpush2.bf16.msra.mxu0 0
        %607 = vmatprep.subr.bf16.mxu0 0
        %608 = vmatpush2.bf16.msra.mxu0 0
        %609 = vmatprep.subr.bf16.mxu0 0
        %610 = vmatpush2.bf16.msra.mxu0 0
        %611 = vmatprep.mubr.bf16.mxu0 0
        %612 = vmatmul.mubr.bf16.gmra.mxu0 %v577
        %v613 = vpop.f32.mrf.mxu0
        %v614 = vadd.f32 %v561, %v613
        %v615 = vpop.f32.mrf.mxu0
        %v616 = vpop.f32.mrf.mxu0
        %v617 = vpop.f32.mrf.mxu0
        %618 = vdwg.mxu0
        %v619 = vpack.c.bf16 %v614, %v614
        %621 = vrot.lane.b32.xlu0 %v619, 120
        %v622 = vpop.permute.xlu0 %621
        %623 = vrot.lane.b32.xlu0 %v619, 112
        %v624 = vpop.permute.xlu0 %623
        %625 = vrot.lane.b32.xlu0 %v619, 104
        %v626 = vpop.permute.xlu0 %625
        %v628 = vunpack.c.l.s4 1983009808
        %v629 = vunpack.c.0.s8 %v628
        %v630 = vlaneseq
        %v631 = vshrl.u32 %v630, 7
        %v632 = vsub.s32 %v629, %v631
        %v633 = vrot.slane %v619, %v632
        %v636 = vunpack.c.l.s4 1983009808
        %v637 = vunpack.c.0.s8 %v636
        %v638 = vlaneseq
        %v639 = vshrl.u32 %v638, 7
        %v640 = vsub.s32 %v637, %v639
        %v641 = vrot.slane %v624, %v640
        %v642 = vcombine.low %v633, %v641
        %v643 = vcombine.high %v633, %v641
        %v645 = vunpack.c.l.s4 1934713408
        %v646 = vunpack.c.0.s8 %v645
        %v647 = vlaneseq
        %v648 = vshrl.u32 %v647, 7
        %v649 = vsub.s32 %v646, %v648
        %v650 = vrot.slane %v642, %v649
        %v652 = vunpack.c.l.s4 1934713408
        %v653 = vunpack.c.0.s8 %v652
        %v654 = vlaneseq
        %v655 = vshrl.u32 %v654, 7
        %v656 = vsub.s32 %v653, %v655
        %v657 = vrot.slane %v643, %v656
        %v658 = vcombine.high %v650, 0
        %v659 = vcombine.high %v657, 0
        %v662 = vunpack.c.l.s4 1983009808
        %v663 = vunpack.c.0.s8 %v662
        %v664 = vlaneseq
        %v665 = vshrl.u32 %v664, 7
        %v666 = vsub.s32 %v663, %v665
        %v667 = vrot.slane %v622, %v666
        %v670 = vunpack.c.l.s4 1983009808
        %v671 = vunpack.c.0.s8 %v670
        %v672 = vlaneseq
        %v673 = vshrl.u32 %v672, 7
        %v674 = vsub.s32 %v671, %v673
        %v675 = vrot.slane %v626, %v674
        %v676 = vcombine.low %v667, %v675
        %v677 = vcombine.high %v667, %v675
        %v679 = vunpack.c.l.s4 1934713408
        %v680 = vunpack.c.0.s8 %v679
        %v681 = vlaneseq
        %v682 = vshrl.u32 %v681, 7
        %v683 = vsub.s32 %v680, %v682
        %v684 = vrot.slane %v676, %v683
        %v686 = vunpack.c.l.s4 1934713408
        %v687 = vunpack.c.0.s8 %v686
        %v688 = vlaneseq
        %v689 = vshrl.u32 %v688, 7
        %v690 = vsub.s32 %v687, %v689
        %v691 = vrot.slane %v677, %v690
        %v692 = vcombine.high %v684, 0
        %v693 = vcombine.high %v691, 0
        %v696 = vpack.i.b16 %v684, %v650
        %v698 = vshrl.u32 %v650, 16
        %v699 = vshrl.u32 %v684, 16
        %v700 = vpack.i.b16 %v699, %v698
        %v704 = vpack.i.b16 %v692, %v658
        %v706 = vshrl.u32 %v658, 16
        %v707 = vshrl.u32 %v692, 16
        %v708 = vpack.i.b16 %v707, %v706
        %v712 = vpack.i.b16 %v691, %v657
        %v714 = vshrl.u32 %v657, 16
        %v715 = vshrl.u32 %v691, 16
        %v716 = vpack.i.b16 %v715, %v714
        %v720 = vpack.i.b16 %v693, %v659
        %v722 = vshrl.u32 %v659, 16
        %v723 = vshrl.u32 %v693, 16
        %v724 = vpack.i.b16 %v723, %v722
        %v726 = vcombine.low %v696, %v712
        %v728 = vunpack.c.l.s4 1983009808
        %v729 = vunpack.c.0.s8 %v728
        %v730 = vlaneseq
        %v731 = vshrl.u32 %v730, 7
        %v732 = vsub.s32 %v729, %v731
        %v733 = vrot.slane %v726, %v732
        %v734 = vcombine.low %v704, %v720
        %v736 = vunpack.c.l.s4 1983009808
        %v737 = vunpack.c.0.s8 %v736
        %v738 = vlaneseq
        %v739 = vshrl.u32 %v738, 7
        %v740 = vsub.s32 %v737, %v739
        %v741 = vrot.slane %v734, %v740
        %v742 = vcombine.low %v733, %v741
        %v744 = vunpack.c.l.s4 1934713408
        %v745 = vunpack.c.0.s8 %v744
        %v746 = vlaneseq
        %v747 = vshrl.u32 %v746, 7
        %v748 = vsub.s32 %v745, %v747
        %v749 = vrot.slane %v742, %v748
        %v750 = vcombine.high %v749, 0
        %v751 = vcombine.low %v700, %v716
        %v753 = vunpack.c.l.s4 1983009808
        %v754 = vunpack.c.0.s8 %v753
        %v755 = vlaneseq
        %v756 = vshrl.u32 %v755, 7
        %v757 = vsub.s32 %v754, %v756
        %v758 = vrot.slane %v751, %v757
        %v759 = vcombine.low %v708, %v724
        %v761 = vunpack.c.l.s4 1983009808
        %v762 = vunpack.c.0.s8 %v761
        %v763 = vlaneseq
        %v764 = vshrl.u32 %v763, 7
        %v765 = vsub.s32 %v762, %v764
        %v766 = vrot.slane %v759, %v765
        %v767 = vcombine.low %v758, %v766
        %v769 = vunpack.c.l.s4 1934713408
        %v770 = vunpack.c.0.s8 %v769
        %v771 = vlaneseq
        %v772 = vshrl.u32 %v771, 7
        %v773 = vsub.s32 %v770, %v772
        %v774 = vrot.slane %v767, %v773
        %v775 = vcombine.high %v774, 0
        %v778 = vpack.i.b16 %v774, %v749
        %v779 = vshrl.u32 %v749, 16
        %v780 = vshrl.u32 %v774, 16
        %v781 = vpack.i.b16 %v780, %v779
        %v784 = vpack.i.b16 %v775, %v750
        %v785 = vshrl.u32 %v750, 16
        %v786 = vshrl.u32 %v775, 16
        %v787 = vpack.i.b16 %v786, %v785
        %788 = vrot.lane.b32.xlu0 %v619, 96
        %v789 = vpop.permute.xlu0 %788
        %790 = vrot.lane.b32.xlu0 %v622, 96
        %v791 = vpop.permute.xlu0 %790
        %792 = vrot.lane.b32.xlu0 %v624, 96
        %v793 = vpop.permute.xlu0 %792
        %794 = vrot.lane.b32.xlu0 %v626, 96
        %v795 = vpop.permute.xlu0 %794
        %v798 = vunpack.c.l.s4 1983009808
        %v799 = vunpack.c.0.s8 %v798
        %v800 = vlaneseq
        %v801 = vshrl.u32 %v800, 7
        %v802 = vsub.s32 %v799, %v801
        %v803 = vrot.slane %v789, %v802
        %v806 = vunpack.c.l.s4 1983009808
        %v807 = vunpack.c.0.s8 %v806
        %v808 = vlaneseq
        %v809 = vshrl.u32 %v808, 7
        %v810 = vsub.s32 %v807, %v809
        %v811 = vrot.slane %v793, %v810
        %v812 = vcombine.low %v803, %v811
        %v813 = vcombine.high %v803, %v811
        %v815 = vunpack.c.l.s4 1934713408
        %v816 = vunpack.c.0.s8 %v815
        %v817 = vlaneseq
        %v818 = vshrl.u32 %v817, 7
        %v819 = vsub.s32 %v816, %v818
        %v820 = vrot.slane %v812, %v819
        %v822 = vunpack.c.l.s4 1934713408
        %v823 = vunpack.c.0.s8 %v822
        %v824 = vlaneseq
        %v825 = vshrl.u32 %v824, 7
        %v826 = vsub.s32 %v823, %v825
        %v827 = vrot.slane %v813, %v826
        %v828 = vcombine.high %v820, 0
        %v829 = vcombine.high %v827, 0
        %v832 = vunpack.c.l.s4 1983009808
        %v833 = vunpack.c.0.s8 %v832
        %v834 = vlaneseq
        %v835 = vshrl.u32 %v834, 7
        %v836 = vsub.s32 %v833, %v835
        %v837 = vrot.slane %v791, %v836
        %v840 = vunpack.c.l.s4 1983009808
        %v841 = vunpack.c.0.s8 %v840
        %v842 = vlaneseq
        %v843 = vshrl.u32 %v842, 7
        %v844 = vsub.s32 %v841, %v843
        %v845 = vrot.slane %v795, %v844
        %v846 = vcombine.low %v837, %v845
        %v847 = vcombine.high %v837, %v845
        %v849 = vunpack.c.l.s4 1934713408
        %v850 = vunpack.c.0.s8 %v849
        %v851 = vlaneseq
        %v852 = vshrl.u32 %v851, 7
        %v853 = vsub.s32 %v850, %v852
        %v854 = vrot.slane %v846, %v853
        %v856 = vunpack.c.l.s4 1934713408
        %v857 = vunpack.c.0.s8 %v856
        %v858 = vlaneseq
        %v859 = vshrl.u32 %v858, 7
        %v860 = vsub.s32 %v857, %v859
        %v861 = vrot.slane %v847, %v860
        %v862 = vcombine.high %v854, 0
        %v863 = vcombine.high %v861, 0
        %v866 = vpack.i.b16 %v854, %v820
        %v868 = vshrl.u32 %v820, 16
        %v869 = vshrl.u32 %v854, 16
        %v870 = vpack.i.b16 %v869, %v868
        %v874 = vpack.i.b16 %v862, %v828
        %v876 = vshrl.u32 %v828, 16
        %v877 = vshrl.u32 %v862, 16
        %v878 = vpack.i.b16 %v877, %v876
        %v882 = vpack.i.b16 %v861, %v827
        %v884 = vshrl.u32 %v827, 16
        %v885 = vshrl.u32 %v861, 16
        %v886 = vpack.i.b16 %v885, %v884
        %v890 = vpack.i.b16 %v863, %v829
        %v892 = vshrl.u32 %v829, 16
        %v893 = vshrl.u32 %v863, 16
        %v894 = vpack.i.b16 %v893, %v892
        %v896 = vcombine.low %v866, %v882
        %v898 = vunpack.c.l.s4 1983009808
        %v899 = vunpack.c.0.s8 %v898
        %v900 = vlaneseq
        %v901 = vshrl.u32 %v900, 7
        %v902 = vsub.s32 %v899, %v901
        %v903 = vrot.slane %v896, %v902
        %v904 = vcombine.low %v874, %v890
        %v906 = vunpack.c.l.s4 1983009808
        %v907 = vunpack.c.0.s8 %v906
        %v908 = vlaneseq
        %v909 = vshrl.u32 %v908, 7
        %v910 = vsub.s32 %v907, %v909
        %v911 = vrot.slane %v904, %v910
        %v912 = vcombine.low %v903, %v911
        %v914 = vunpack.c.l.s4 1934713408
        %v915 = vunpack.c.0.s8 %v914
        %v916 = vlaneseq
        %v917 = vshrl.u32 %v916, 7
        %v918 = vsub.s32 %v915, %v917
        %v919 = vrot.slane %v912, %v918
        %v920 = vcombine.high %v919, 0
        %v921 = vcombine.low %v870, %v886
        %v923 = vunpack.c.l.s4 1983009808
        %v924 = vunpack.c.0.s8 %v923
        %v925 = vlaneseq
        %v926 = vshrl.u32 %v925, 7
        %v927 = vsub.s32 %v924, %v926
        %v928 = vrot.slane %v921, %v927
        %v929 = vcombine.low %v878, %v894
        %v931 = vunpack.c.l.s4 1983009808
        %v932 = vunpack.c.0.s8 %v931
        %v933 = vlaneseq
        %v934 = vshrl.u32 %v933, 7
        %v935 = vsub.s32 %v932, %v934
        %v936 = vrot.slane %v929, %v935
        %v937 = vcombine.low %v928, %v936
        %v939 = vunpack.c.l.s4 1934713408
        %v940 = vunpack.c.0.s8 %v939
        %v941 = vlaneseq
        %v942 = vshrl.u32 %v941, 7
        %v943 = vsub.s32 %v940, %v942
        %v944 = vrot.slane %v937, %v943
        %v945 = vcombine.high %v944, 0
        %v948 = vpack.i.b16 %v944, %v919
        %v949 = vshrl.u32 %v919, 16
        %v950 = vshrl.u32 %v944, 16
        %v951 = vpack.i.b16 %v950, %v949
        %v954 = vpack.i.b16 %v945, %v920
        %v955 = vshrl.u32 %v920, 16
        %v956 = vshrl.u32 %v945, 16
        %v957 = vpack.i.b16 %v956, %v955
        %958 = vrot.lane.b32.xlu0 %v619, 64
        %v959 = vpop.permute.xlu0 %958
        %960 = vrot.lane.b32.xlu0 %v622, 64
        %v961 = vpop.permute.xlu0 %960
        %962 = vrot.lane.b32.xlu0 %v624, 64
        %v963 = vpop.permute.xlu0 %962
        %964 = vrot.lane.b32.xlu0 %v626, 64
        %v965 = vpop.permute.xlu0 %964
        %v968 = vunpack.c.l.s4 1983009808
        %v969 = vunpack.c.0.s8 %v968
        %v970 = vlaneseq
        %v971 = vshrl.u32 %v970, 7
        %v972 = vsub.s32 %v969, %v971
        %v973 = vrot.slane %v959, %v972
        %v976 = vunpack.c.l.s4 1983009808
        %v977 = vunpack.c.0.s8 %v976
        %v978 = vlaneseq
        %v979 = vshrl.u32 %v978, 7
        %v980 = vsub.s32 %v977, %v979
        %v981 = vrot.slane %v963, %v980
        %v982 = vcombine.low %v973, %v981
        %v983 = vcombine.high %v973, %v981
        %v985 = vunpack.c.l.s4 1934713408
        %v986 = vunpack.c.0.s8 %v985
        %v987 = vlaneseq
        %v988 = vshrl.u32 %v987, 7
        %v989 = vsub.s32 %v986, %v988
        %v990 = vrot.slane %v982, %v989
        %v992 = vunpack.c.l.s4 1934713408
        %v993 = vunpack.c.0.s8 %v992
        %v994 = vlaneseq
        %v995 = vshrl.u32 %v994, 7
        %v996 = vsub.s32 %v993, %v995
        %v997 = vrot.slane %v983, %v996
        %v998 = vcombine.high %v990, 0
        %v999 = vcombine.high %v997, 0
        %v1002 = vunpack.c.l.s4 1983009808
        %v1003 = vunpack.c.0.s8 %v1002
        %v1004 = vlaneseq
        %v1005 = vshrl.u32 %v1004, 7
        %v1006 = vsub.s32 %v1003, %v1005
        %v1007 = vrot.slane %v961, %v1006
        %v1010 = vunpack.c.l.s4 1983009808
        %v1011 = vunpack.c.0.s8 %v1010
        %v1012 = vlaneseq
        %v1013 = vshrl.u32 %v1012, 7
        %v1014 = vsub.s32 %v1011, %v1013
        %v1015 = vrot.slane %v965, %v1014
        %v1016 = vcombine.low %v1007, %v1015
        %v1017 = vcombine.high %v1007, %v1015
        %v1019 = vunpack.c.l.s4 1934713408
        %v1020 = vunpack.c.0.s8 %v1019
        %v1021 = vlaneseq
        %v1022 = vshrl.u32 %v1021, 7
        %v1023 = vsub.s32 %v1020, %v1022
        %v1024 = vrot.slane %v1016, %v1023
        %v1026 = vunpack.c.l.s4 1934713408
        %v1027 = vunpack.c.0.s8 %v1026
        %v1028 = vlaneseq
        %v1029 = vshrl.u32 %v1028, 7
        %v1030 = vsub.s32 %v1027, %v1029
        %v1031 = vrot.slane %v1017, %v1030
        %v1032 = vcombine.high %v1024, 0
        %v1033 = vcombine.high %v1031, 0
        %v1036 = vpack.i.b16 %v1024, %v990
        %v1038 = vshrl.u32 %v990, 16
        %v1039 = vshrl.u32 %v1024, 16
        %v1040 = vpack.i.b16 %v1039, %v1038
        %v1044 = vpack.i.b16 %v1032, %v998
        %v1046 = vshrl.u32 %v998, 16
        %v1047 = vshrl.u32 %v1032, 16
        %v1048 = vpack.i.b16 %v1047, %v1046
        %v1052 = vpack.i.b16 %v1031, %v997
        %v1054 = vshrl.u32 %v997, 16
        %v1055 = vshrl.u32 %v1031, 16
        %v1056 = vpack.i.b16 %v1055, %v1054
        %v1060 = vpack.i.b16 %v1033, %v999
        %v1062 = vshrl.u32 %v999, 16
        %v1063 = vshrl.u32 %v1033, 16
        %v1064 = vpack.i.b16 %v1063, %v1062
        %v1066 = vcombine.low %v1036, %v1052
        %v1068 = vunpack.c.l.s4 1983009808
        %v1069 = vunpack.c.0.s8 %v1068
        %v1070 = vlaneseq
        %v1071 = vshrl.u32 %v1070, 7
        %v1072 = vsub.s32 %v1069, %v1071
        %v1073 = vrot.slane %v1066, %v1072
        %v1074 = vcombine.low %v1044, %v1060
        %v1076 = vunpack.c.l.s4 1983009808
        %v1077 = vunpack.c.0.s8 %v1076
        %v1078 = vlaneseq
        %v1079 = vshrl.u32 %v1078, 7
        %v1080 = vsub.s32 %v1077, %v1079
        %v1081 = vrot.slane %v1074, %v1080
        %v1082 = vcombine.low %v1073, %v1081
        %v1084 = vunpack.c.l.s4 1934713408
        %v1085 = vunpack.c.0.s8 %v1084
        %v1086 = vlaneseq
        %v1087 = vshrl.u32 %v1086, 7
        %v1088 = vsub.s32 %v1085, %v1087
        %v1089 = vrot.slane %v1082, %v1088
        %v1090 = vcombine.high %v1089, 0
        %v1091 = vcombine.low %v1040, %v1056
        %v1093 = vunpack.c.l.s4 1983009808
        %v1094 = vunpack.c.0.s8 %v1093
        %v1095 = vlaneseq
        %v1096 = vshrl.u32 %v1095, 7
        %v1097 = vsub.s32 %v1094, %v1096
        %v1098 = vrot.slane %v1091, %v1097
        %v1099 = vcombine.low %v1048, %v1064
        %v1101 = vunpack.c.l.s4 1983009808
        %v1102 = vunpack.c.0.s8 %v1101
        %v1103 = vlaneseq
        %v1104 = vshrl.u32 %v1103, 7
        %v1105 = vsub.s32 %v1102, %v1104
        %v1106 = vrot.slane %v1099, %v1105
        %v1107 = vcombine.low %v1098, %v1106
        %v1109 = vunpack.c.l.s4 1934713408
        %v1110 = vunpack.c.0.s8 %v1109
        %v1111 = vlaneseq
        %v1112 = vshrl.u32 %v1111, 7
        %v1113 = vsub.s32 %v1110, %v1112
        %v1114 = vrot.slane %v1107, %v1113
        %v1115 = vcombine.high %v1114, 0
        %v1118 = vpack.i.b16 %v1114, %v1089
        %v1119 = vshrl.u32 %v1089, 16
        %v1120 = vshrl.u32 %v1114, 16
        %v1121 = vpack.i.b16 %v1120, %v1119
        %v1124 = vpack.i.b16 %v1115, %v1090
        %v1125 = vshrl.u32 %v1090, 16
        %v1126 = vshrl.u32 %v1115, 16
        %v1127 = vpack.i.b16 %v1126, %v1125
        %v1128 = vld [vmem:[%s481] sm:$0x1]
        %v1129 = vsub.f32 1.0, %v1128
        %v1130 = vmul.f32 %v1129, -10000.0
        %v1132 = vlaneseq
        %v1133 = vshrl.u32 %v1132, 7
        %v1134 = vsub.s32 0, %v1133
        %v1135 = vrot.slane %v1130, %v1134
        %vm1137 = vcmask 64512
        %v1139 = vsel %vm1137, %v778, 0
        %v1142 = vsel %vm1137, %v948, 0
        %1144 = vmatprep.subr.bf16.mxu0 0
        %1145 = vmatpush1.bf16.xpose.msra.mxu0 0
        %1146 = vmatprep.subr.bf16.mxu0 0
        %1147 = vmatpush1.bf16.xpose.msra.mxu0 0
        %1148 = vmatprep.subr.bf16.mxu0 0
        %1149 = vmatpush1.bf16.xpose.msra.mxu0 0
        %1150 = vmatprep.subr.bf16.mxu0 0
        %1151 = vmatpush1.bf16.xpose.msra.mxu0 0
        %1152 = vmatprep.subr.bf16.mxu0 0
        %1153 = vmatpush1.bf16.xpose.msra.mxu0 0
        %1154 = vmatprep.subr.bf16.mxu0 0
        %1155 = vmatpush1.bf16.xpose.msra.mxu0 0
        %1156 = vmatprep.subr.bf16.mxu0 0
        %1157 = vmatpush1.bf16.xpose.msra.mxu0 0
        %1158 = vmatprep.subr.bf16.mxu0 0
        %1159 = vmatpush1.bf16.xpose.msra.mxu0 %v1142
        %1160 = vmatprep.subr.bf16.mxu0 0
        %1161 = vmatpush2.bf16.xpose.msra.mxu0 0
        %1162 = vmatprep.subr.bf16.mxu0 0
        %1163 = vmatpush2.bf16.xpose.msra.mxu0 0
        %1164 = vmatprep.subr.bf16.mxu0 0
        %1165 = vmatpush2.bf16.xpose.msra.mxu0 0
        %1166 = vmatprep.subr.bf16.mxu0 0
        %1167 = vmatpush2.bf16.xpose.msra.mxu0 0
        %1168 = vmatprep.subr.bf16.mxu0 0
        %1169 = vmatpush2.bf16.xpose.msra.mxu0 0
        %1170 = vmatprep.subr.bf16.mxu0 0
        %1171 = vmatpush2.bf16.xpose.msra.mxu0 0
        %1172 = vmatprep.subr.bf16.mxu0 0
        %1173 = vmatpush2.bf16.xpose.msra.mxu0 0
        %1174 = vmatprep.subr.bf16.mxu0 0
        %1175 = vmatpush2.bf16.xpose.msra.mxu0 0
        %1176 = vmatprep.mubr.bf16.mxu0 0
        %1177 = vmatmul.mubr.bf16.gmra.mxu0 %v1139
        %v1178 = vpop.f32.mrf.mxu0
        %v1179 = vadd.f32 %v1135, %v1178
        %v1180 = vpop.f32.mrf.mxu0
        %v1181 = vpop.f32.mrf.mxu0
        %v1182 = vpop.f32.mrf.mxu0
        %1183 = vdwg.mxu0
        %v1185 = vsel %vm1137, %v781, 0
        %v1188 = vsel %vm1137, %v951, 0
        %1190 = vmatprep.subr.bf16.mxu0 0
        %1191 = vmatpush1.bf16.xpose.msra.mxu0 0
        %1192 = vmatprep.subr.bf16.mxu0 0
        %1193 = vmatpush1.bf16.xpose.msra.mxu0 0
        %1194 = vmatprep.subr.bf16.mxu0 0
        %1195 = vmatpush1.bf16.xpose.msra.mxu0 0
        %1196 = vmatprep.subr.bf16.mxu0 0
        %1197 = vmatpush1.bf16.xpose.msra.mxu0 0
        %1198 = vmatprep.subr.bf16.mxu0 0
        %1199 = vmatpush1.bf16.xpose.msra.mxu0 0
        %1200 = vmatprep.subr.bf16.mxu0 0
        %1201 = vmatpush1.bf16.xpose.msra.mxu0 0
        %1202 = vmatprep.subr.bf16.mxu0 0
        %1203 = vmatpush1.bf16.xpose.msra.mxu0 0
        %1204 = vmatprep.subr.bf16.mxu0 0
        %1205 = vmatpush1.bf16.xpose.msra.mxu0 %v1188
        %1206 = vmatprep.subr.bf16.mxu0 0
        %1207 = vmatpush2.bf16.xpose.msra.mxu0 0
        %1208 = vmatprep.subr.bf16.mxu0 0
        %1209 = vmatpush2.bf16.xpose.msra.mxu0 0
        %1210 = vmatprep.subr.bf16.mxu0 0
        %1211 = vmatpush2.bf16.xpose.msra.mxu0 0
        %1212 = vmatprep.subr.bf16.mxu0 0
        %1213 = vmatpush2.bf16.xpose.msra.mxu0 0
        %1214 = vmatprep.subr.bf16.mxu0 0
        %1215 = vmatpush2.bf16.xpose.msra.mxu0 0
        %1216 = vmatprep.subr.bf16.mxu0 0
        %1217 = vmatpush2.bf16.xpose.msra.mxu0 0
        %1218 = vmatprep.subr.bf16.mxu0 0
        %1219 = vmatpush2.bf16.xpose.msra.mxu0 0
        %1220 = vmatprep.subr.bf16.mxu0 0
        %1221 = vmatpush2.bf16.xpose.msra.mxu0 0
        %1222 = vmatprep.mubr.bf16.mxu0 0
        %1223 = vmatmul.mubr.bf16.gmra.mxu0 %v1185
        %v1224 = vpop.f32.mrf.mxu0
        %v1225 = vadd.f32 %v1135, %v1224
        %v1226 = vpop.f32.mrf.mxu0
        %v1227 = vpop.f32.mrf.mxu0
        %v1228 = vpop.f32.mrf.mxu0
        %1229 = vdwg.mxu0
        %v1231 = vsel %vm1137, %v784, 0
        %v1234 = vsel %vm1137, %v954, 0
        %1236 = vmatprep.subr.bf16.mxu0 0
        %1237 = vmatpush1.bf16.xpose.msra.mxu0 0
        %1238 = vmatprep.subr.bf16.mxu0 0
        %1239 = vmatpush1.bf16.xpose.msra.mxu0 0
        %1240 = vmatprep.subr.bf16.mxu0 0
        %1241 = vmatpush1.bf16.xpose.msra.mxu0 0
        %1242 = vmatprep.subr.bf16.mxu0 0
        %1243 = vmatpush1.bf16.xpose.msra.mxu0 0
        %1244 = vmatprep.subr.bf16.mxu0 0
        %1245 = vmatpush1.bf16.xpose.msra.mxu0 0
        %1246 = vmatprep.subr.bf16.mxu0 0
        %1247 = vmatpush1.bf16.xpose.msra.mxu0 0
        %1248 = vmatprep.subr.bf16.mxu0 0
        %1249 = vmatpush1.bf16.xpose.msra.mxu0 0
        %1250 = vmatprep.subr.bf16.mxu0 0
        %1251 = vmatpush1.bf16.xpose.msra.mxu0 %v1234
        %1252 = vmatprep.subr.bf16.mxu0 0
        %1253 = vmatpush2.bf16.xpose.msra.mxu0 0
        %1254 = vmatprep.subr.bf16.mxu0 0
        %1255 = vmatpush2.bf16.xpose.msra.mxu0 0
        %1256 = vmatprep.subr.bf16.mxu0 0
        %1257 = vmatpush2.bf16.xpose.msra.mxu0 0
        %1258 = vmatprep.subr.bf16.mxu0 0
        %1259 = vmatpush2.bf16.xpose.msra.mxu0 0
        %1260 = vmatprep.subr.bf16.mxu0 0
        %1261 = vmatpush2.bf16.xpose.msra.mxu0 0
        %1262 = vmatprep.subr.bf16.mxu0 0
        %1263 = vmatpush2.bf16.xpose.msra.mxu0 0
        %1264 = vmatprep.subr.bf16.mxu0 0
        %1265 = vmatpush2.bf16.xpose.msra.mxu0 0
        %1266 = vmatprep.subr.bf16.mxu0 0
        %1267 = vmatpush2.bf16.xpose.msra.mxu0 0
        %1268 = vmatprep.mubr.bf16.mxu0 0
        %1269 = vmatmul.mubr.bf16.gmra.mxu0 %v1231
        %v1270 = vpop.f32.mrf.mxu0
        %v1271 = vadd.f32 %v1135, %v1270
        %v1272 = vpop.f32.mrf.mxu0
        %v1273 = vpop.f32.mrf.mxu0
        %v1274 = vpop.f32.mrf.mxu0
        %1275 = vdwg.mxu0
        %v1277 = vsel %vm1137, %v787, 0
        %v1280 = vsel %vm1137, %v957, 0
        %1282 = vmatprep.subr.bf16.mxu0 0
        %1283 = vmatpush1.bf16.xpose.msra.mxu0 0
        %1284 = vmatprep.subr.bf16.mxu0 0
        %1285 = vmatpush1.bf16.xpose.msra.mxu0 0
        %1286 = vmatprep.subr.bf16.mxu0 0
        %1287 = vmatpush1.bf16.xpose.msra.mxu0 0
        %1288 = vmatprep.subr.bf16.mxu0 0
        %1289 = vmatpush1.bf16.xpose.msra.mxu0 0
        %1290 = vmatprep.subr.bf16.mxu0 0
        %1291 = vmatpush1.bf16.xpose.msra.mxu0 0
        %1292 = vmatprep.subr.bf16.mxu0 0
        %1293 = vmatpush1.bf16.xpose.msra.mxu0 0
        %1294 = vmatprep.subr.bf16.mxu0 0
        %1295 = vmatpush1.bf16.xpose.msra.mxu0 0
        %1296 = vmatprep.subr.bf16.mxu0 0
        %1297 = vmatpush1.bf16.xpose.msra.mxu0 %v1280
        %1298 = vmatprep.subr.bf16.mxu0 0
        %1299 = vmatpush2.bf16.xpose.msra.mxu0 0
        %1300 = vmatprep.subr.bf16.mxu0 0
        %1301 = vmatpush2.bf16.xpose.msra.mxu0 0
        %1302 = vmatprep.subr.bf16.mxu0 0
        %1303 = vmatpush2.bf16.xpose.msra.mxu0 0
        %1304 = vmatprep.subr.bf16.mxu0 0
        %1305 = vmatpush2.bf16.xpose.msra.mxu0 0
        %1306 = vmatprep.subr.bf16.mxu0 0
        %1307 = vmatpush2.bf16.xpose.msra.mxu0 0
        %1308 = vmatprep.subr.bf16.mxu0 0
        %1309 = vmatpush2.bf16.xpose.msra.mxu0 0
        %1310 = vmatprep.subr.bf16.mxu0 0
        %1311 = vmatpush2.bf16.xpose.msra.mxu0 0
        %1312 = vmatprep.subr.bf16.mxu0 0
        %1313 = vmatpush2.bf16.xpose.msra.mxu0 0
        %1314 = vmatprep.mubr.bf16.mxu0 0
        %1315 = vmatmul.mubr.bf16.gmra.mxu0 %v1277
        %v1316 = vpop.f32.mrf.mxu0
        %v1317 = vadd.f32 %v1135, %v1316
        %v1318 = vpop.f32.mrf.mxu0
        %v1319 = vpop.f32.mrf.mxu0
        %v1320 = vpop.f32.mrf.mxu0
        %1321 = vdwg.mxu0
        %v1322 = vsel %vm1137, %v1179, -inf
        %1323 = vmax.xlane.f32.xlu0 %v1322
        %v1324 = vpop.xlane.xlu0 %1323
        %v1325 = vsel %vm1137, %v1225, -inf
        %1326 = vmax.xlane.f32.xlu0 %v1325
        %v1327 = vpop.xlane.xlu0 %1326
        %v1328 = vsel %vm1137, %v1271, -inf
        %1329 = vmax.xlane.f32.xlu0 %v1328
        %v1330 = vpop.xlane.xlu0 %1329
        %v1331 = vsel %vm1137, %v1317, -inf
        %1332 = vmax.xlane.f32.xlu0 %v1331
        %v1333 = vpop.xlane.xlu0 %1332
        %v1334 = vsub.f32 %v1179, %v1324
        %v1335 = vsub.f32 %v1225, %v1327
        %v1336 = vsub.f32 %v1271, %v1330
        %v1337 = vsub.f32 %v1317, %v1333
        %v1338 = vmul.f32 %v1334, 1.442695
        %v1339 = vpow.pop %v1338
        %v1340 = vmul.f32 %v1335, 1.442695
        %v1341 = vpow.pop %v1340
        %v1342 = vmul.f32 %v1336, 1.442695
        %v1343 = vpow.pop %v1342
        %v1344 = vmul.f32 %v1337, 1.442695
        %v1345 = vpow.pop %v1344
        %v1346 = vsel %vm1137, %v1339, 0.0
        %1347 = vadd.xlane.f32.xlu0 %v1346
        %v1348 = vpop.xlane.xlu0 %1347
        %v1349 = vsel %vm1137, %v1341, 0.0
        %1350 = vadd.xlane.f32.xlu0 %v1349
        %v1351 = vpop.xlane.xlu0 %1350
        %v1352 = vsel %vm1137, %v1343, 0.0
        %1353 = vadd.xlane.f32.xlu0 %v1352
        %v1354 = vpop.xlane.xlu0 %1353
        %v1355 = vsel %vm1137, %v1345, 0.0
        %1356 = vadd.xlane.f32.xlu0 %v1355
        %v1357 = vpop.xlane.xlu0 %1356
        %v1358 = vrcp.pop %v1348
        %v1359 = vrcp.pop %v1351
        %v1360 = vrcp.pop %v1354
        %v1361 = vrcp.pop %v1357
        %v1362 = vmul.f32 %v1339, %v1358
        %v1363 = vmul.f32 %v1341, %v1359
        %v1364 = vmul.f32 %v1343, %v1360
        %v1365 = vmul.f32 %v1345, %v1361
        %v1366 = vpack.c.bf16 %v1362, %v1362
        %v1367 = vpack.c.bf16 %v1363, %v1363
        %v1368 = vpack.c.bf16 %v1364, %v1364
        %v1369 = vpack.c.bf16 %v1365, %v1365
        %v1371 = vsel %vm1137, %v1366, 0
        %vm1373 = vcmask 1043456
        %v1375 = vsel %vm1373, %v1118, 0
        %1377 = vmatprep.subr.bf16.mxu0 0
        %1378 = vmatpush1.bf16.msra.mxu0 0
        %1379 = vmatprep.subr.bf16.mxu0 0
        %1380 = vmatpush1.bf16.msra.mxu0 0
        %1381 = vmatprep.subr.bf16.mxu0 0
        %1382 = vmatpush1.bf16.msra.mxu0 0
        %1383 = vmatprep.subr.bf16.mxu0 0
        %1384 = vmatpush1.bf16.msra.mxu0 0
        %1385 = vmatprep.subr.bf16.mxu0 0
        %1386 = vmatpush1.bf16.msra.mxu0 0
        %1387 = vmatprep.subr.bf16.mxu0 0
        %1388 = vmatpush1.bf16.msra.mxu0 0
        %1389 = vmatprep.subr.bf16.mxu0 0
        %1390 = vmatpush1.bf16.msra.mxu0 0
        %1391 = vmatprep.subr.bf16.mxu0 0
        %1392 = vmatpush1.bf16.msra.mxu0 %v1375
        %1393 = vmatprep.subr.bf16.mxu0 0
        %1394 = vmatpush2.bf16.msra.mxu0 0
        %1395 = vmatprep.subr.bf16.mxu0 0
        %1396 = vmatpush2.bf16.msra.mxu0 0
        %1397 = vmatprep.subr.bf16.mxu0 0
        %1398 = vmatpush2.bf16.msra.mxu0 0
        %1399 = vmatprep.subr.bf16.mxu0 0
        %1400 = vmatpush2.bf16.msra.mxu0 0
        %1401 = vmatprep.subr.bf16.mxu0 0
        %1402 = vmatpush2.bf16.msra.mxu0 0
        %1403 = vmatprep.subr.bf16.mxu0 0
        %1404 = vmatpush2.bf16.msra.mxu0 0
        %1405 = vmatprep.subr.bf16.mxu0 0
        %1406 = vmatpush2.bf16.msra.mxu0 0
        %1407 = vmatprep.subr.bf16.mxu0 0
        %1408 = vmatpush2.bf16.msra.mxu0 0
        %1409 = vmatprep.mubr.bf16.mxu0 0
        %1410 = vmatmul.mubr.bf16.gmra.mxu0 %v1371
        %v1411 = vpop.f32.mrf.mxu0
        %v1412 = vadd.f32 0.0, %v1411
        %v1413 = vpop.f32.mrf.mxu0
        %v1414 = vpop.f32.mrf.mxu0
        %v1415 = vpop.f32.mrf.mxu0
        %1416 = vdwg.mxu0
        %v1418 = vsel %vm1137, %v1367, 0
        %v1421 = vsel %vm1373, %v1121, 0
        %1423 = vmatprep.subr.bf16.mxu0 0
        %1424 = vmatpush1.bf16.msra.mxu0 0
        %1425 = vmatprep.subr.bf16.mxu0 0
        %1426 = vmatpush1.bf16.msra.mxu0 0
        %1427 = vmatprep.subr.bf16.mxu0 0
        %1428 = vmatpush1.bf16.msra.mxu0 0
        %1429 = vmatprep.subr.bf16.mxu0 0
        %1430 = vmatpush1.bf16.msra.mxu0 0
        %1431 = vmatprep.subr.bf16.mxu0 0
        %1432 = vmatpush1.bf16.msra.mxu0 0
        %1433 = vmatprep.subr.bf16.mxu0 0
        %1434 = vmatpush1.bf16.msra.mxu0 0
        %1435 = vmatprep.subr.bf16.mxu0 0
        %1436 = vmatpush1.bf16.msra.mxu0 0
        %1437 = vmatprep.subr.bf16.mxu0 0
        %1438 = vmatpush1.bf16.msra.mxu0 %v1421
        %1439 = vmatprep.subr.bf16.mxu0 0
        %1440 = vmatpush2.bf16.msra.mxu0 0
        %1441 = vmatprep.subr.bf16.mxu0 0
        %1442 = vmatpush2.bf16.msra.mxu0 0
        %1443 = vmatprep.subr.bf16.mxu0 0
        %1444 = vmatpush2.bf16.msra.mxu0 0
        %1445 = vmatprep.subr.bf16.mxu0 0
        %1446 = vmatpush2.bf16.msra.mxu0 0
        %1447 = vmatprep.subr.bf16.mxu0 0
        %1448 = vmatpush2.bf16.msra.mxu0 0
        %1449 = vmatprep.subr.bf16.mxu0 0
        %1450 = vmatpush2.bf16.msra.mxu0 0
        %1451 = vmatprep.subr.bf16.mxu0 0
        %1452 = vmatpush2.bf16.msra.mxu0 0
        %1453 = vmatprep.subr.bf16.mxu0 0
        %1454 = vmatpush2.bf16.msra.mxu0 0
        %1455 = vmatprep.mubr.bf16.mxu0 0
        %1456 = vmatmul.mubr.bf16.gmra.mxu0 %v1418
        %v1457 = vpop.f32.mrf.mxu0
        %v1458 = vadd.f32 0.0, %v1457
        %v1459 = vpop.f32.mrf.mxu0
        %v1460 = vpop.f32.mrf.mxu0
        %v1461 = vpop.f32.mrf.mxu0
        %1462 = vdwg.mxu0
        %v1464 = vsel %vm1137, %v1368, 0
        %v1467 = vsel %vm1373, %v1124, 0
        %1469 = vmatprep.subr.bf16.mxu0 0
        %1470 = vmatpush1.bf16.msra.mxu0 0
        %1471 = vmatprep.subr.bf16.mxu0 0
        %1472 = vmatpush1.bf16.msra.mxu0 0
        %1473 = vmatprep.subr.bf16.mxu0 0
        %1474 = vmatpush1.bf16.msra.mxu0 0
        %1475 = vmatprep.subr.bf16.mxu0 0
        %1476 = vmatpush1.bf16.msra.mxu0 0
        %1477 = vmatprep.subr.bf16.mxu0 0
        %1478 = vmatpush1.bf16.msra.mxu0 0
        %1479 = vmatprep.subr.bf16.mxu0 0
        %1480 = vmatpush1.bf16.msra.mxu0 0
        %1481 = vmatprep.subr.bf16.mxu0 0
        %1482 = vmatpush1.bf16.msra.mxu0 0
        %1483 = vmatprep.subr.bf16.mxu0 0
        %1484 = vmatpush1.bf16.msra.mxu0 %v1467
        %1485 = vmatprep.subr.bf16.mxu0 0
        %1486 = vmatpush2.bf16.msra.mxu0 0
        %1487 = vmatprep.subr.bf16.mxu0 0
        %1488 = vmatpush2.bf16.msra.mxu0 0
        %1489 = vmatprep.subr.bf16.mxu0 0
        %1490 = vmatpush2.bf16.msra.mxu0 0
        %1491 = vmatprep.subr.bf16.mxu0 0
        %1492 = vmatpush2.bf16.msra.mxu0 0
        %1493 = vmatprep.subr.bf16.mxu0 0
        %1494 = vmatpush2.bf16.msra.mxu0 0
        %1495 = vmatprep.subr.bf16.mxu0 0
        %1496 = vmatpush2.bf16.msra.mxu0 0
        %1497 = vmatprep.subr.bf16.mxu0 0
        %1498 = vmatpush2.bf16.msra.mxu0 0
        %1499 = vmatprep.subr.bf16.mxu0 0
        %1500 = vmatpush2.bf16.msra.mxu0 0
        %1501 = vmatprep.mubr.bf16.mxu0 0
        %1502 = vmatmul.mubr.bf16.gmra.mxu0 %v1464
        %v1503 = vpop.f32.mrf.mxu0
        %v1504 = vadd.f32 0.0, %v1503
        %v1505 = vpop.f32.mrf.mxu0
        %v1506 = vpop.f32.mrf.mxu0
        %v1507 = vpop.f32.mrf.mxu0
        %1508 = vdwg.mxu0
        %v1510 = vsel %vm1137, %v1369, 0
        %v1513 = vsel %vm1373, %v1127, 0
        %1515 = vmatprep.subr.bf16.mxu0 0
        %1516 = vmatpush1.bf16.msra.mxu0 0
        %1517 = vmatprep.subr.bf16.mxu0 0
        %1518 = vmatpush1.bf16.msra.mxu0 0
        %1519 = vmatprep.subr.bf16.mxu0 0
        %1520 = vmatpush1.bf16.msra.mxu0 0
        %1521 = vmatprep.subr.bf16.mxu0 0
        %1522 = vmatpush1.bf16.msra.mxu0 0
        %1523 = vmatprep.subr.bf16.mxu0 0
        %1524 = vmatpush1.bf16.msra.mxu0 0
        %1525 = vmatprep.subr.bf16.mxu0 0
        %1526 = vmatpush1.bf16.msra.mxu0 0
        %1527 = vmatprep.subr.bf16.mxu0 0
        %1528 = vmatpush1.bf16.msra.mxu0 0
        %1529 = vmatprep.subr.bf16.mxu0 0
        %1530 = vmatpush1.bf16.msra.mxu0 %v1513
        %1531 = vmatprep.subr.bf16.mxu0 0
        %1532 = vmatpush2.bf16.msra.mxu0 0
        %1533 = vmatprep.subr.bf16.mxu0 0
        %1534 = vmatpush2.bf16.msra.mxu0 0
        %1535 = vmatprep.subr.bf16.mxu0 0
        %1536 = vmatpush2.bf16.msra.mxu0 0
        %1537 = vmatprep.subr.bf16.mxu0 0
        %1538 = vmatpush2.bf16.msra.mxu0 0
        %1539 = vmatprep.subr.bf16.mxu0 0
        %1540 = vmatpush2.bf16.msra.mxu0 0
        %1541 = vmatprep.subr.bf16.mxu0 0
        %1542 = vmatpush2.bf16.msra.mxu0 0
        %1543 = vmatprep.subr.bf16.mxu0 0
        %1544 = vmatpush2.bf16.msra.mxu0 0
        %1545 = vmatprep.subr.bf16.mxu0 0
        %1546 = vmatpush2.bf16.msra.mxu0 0
        %1547 = vmatprep.mubr.bf16.mxu0 0
        %1548 = vmatmul.mubr.bf16.gmra.mxu0 %v1510
        %v1549 = vpop.f32.mrf.mxu0
        %v1550 = vadd.f32 0.0, %v1549
        %v1551 = vpop.f32.mrf.mxu0
        %v1552 = vpop.f32.mrf.mxu0
        %v1553 = vpop.f32.mrf.mxu0
        %1554 = vdwg.mxu0
        %v1555 = vpack.c.bf16 %v1412, %v1412
        %v1557 = vunpack.c.l.s4 1983009808
        %v1558 = vunpack.c.0.s8 %v1557
        %v1559 = vlaneseq
        %v1560 = vshrl.u32 %v1559, 7
        %v1561 = vsub.s32 %v1558, %v1560
        %v1562 = vrot.slane %v1555, %v1561
        %v1563 = vpack.c.bf16 %v1504, %v1504
        %v1565 = vunpack.c.l.s4 1983009808
        %v1566 = vunpack.c.0.s8 %v1565
        %v1567 = vlaneseq
        %v1568 = vshrl.u32 %v1567, 7
        %v1569 = vsub.s32 %v1566, %v1568
        %v1570 = vrot.slane %v1563, %v1569
        %v1571 = vcombine.low %v1562, %v1570
        %v1572 = vcombine.high %v1562, %v1570
        %v1574 = vunpack.c.l.s4 1934713408
        %v1575 = vunpack.c.0.s8 %v1574
        %v1576 = vlaneseq
        %v1577 = vshrl.u32 %v1576, 7
        %v1578 = vsub.s32 %v1575, %v1577
        %v1579 = vrot.slane %v1571, %v1578
        %v1581 = vunpack.c.l.s4 1934713408
        %v1582 = vunpack.c.0.s8 %v1581
        %v1583 = vlaneseq
        %v1584 = vshrl.u32 %v1583, 7
        %v1585 = vsub.s32 %v1582, %v1584
        %v1586 = vrot.slane %v1572, %v1585
        %v1587 = vcombine.high %v1579, 0
        %v1588 = vcombine.high %v1586, 0
        %v1589 = vpack.c.bf16 %v1458, %v1458
        %v1591 = vunpack.c.l.s4 1983009808
        %v1592 = vunpack.c.0.s8 %v1591
        %v1593 = vlaneseq
        %v1594 = vshrl.u32 %v1593, 7
        %v1595 = vsub.s32 %v1592, %v1594
        %v1596 = vrot.slane %v1589, %v1595
        %v1597 = vpack.c.bf16 %v1550, %v1550
        %v1599 = vunpack.c.l.s4 1983009808
        %v1600 = vunpack.c.0.s8 %v1599
        %v1601 = vlaneseq
        %v1602 = vshrl.u32 %v1601, 7
        %v1603 = vsub.s32 %v1600, %v1602
        %v1604 = vrot.slane %v1597, %v1603
        %v1605 = vcombine.low %v1596, %v1604
        %v1606 = vcombine.high %v1596, %v1604
        %v1608 = vunpack.c.l.s4 1934713408
        %v1609 = vunpack.c.0.s8 %v1608
        %v1610 = vlaneseq
        %v1611 = vshrl.u32 %v1610, 7
        %v1612 = vsub.s32 %v1609, %v1611
        %v1613 = vrot.slane %v1605, %v1612
        %v1615 = vunpack.c.l.s4 1934713408
        %v1616 = vunpack.c.0.s8 %v1615
        %v1617 = vlaneseq
        %v1618 = vshrl.u32 %v1617, 7
        %v1619 = vsub.s32 %v1616, %v1618
        %v1620 = vrot.slane %v1606, %v1619
        %v1621 = vcombine.high %v1613, 0
        %v1622 = vcombine.high %v1620, 0
        %v1625 = vpack.i.b16 %v1613, %v1579
        %v1627 = vshrl.u32 %v1579, 16
        %v1628 = vshrl.u32 %v1613, 16
        %v1629 = vpack.i.b16 %v1628, %v1627
        %v1633 = vpack.i.b16 %v1621, %v1587
        %v1635 = vshrl.u32 %v1587, 16
        %v1636 = vshrl.u32 %v1621, 16
        %v1637 = vpack.i.b16 %v1636, %v1635
        %v1641 = vpack.i.b16 %v1620, %v1586
        %v1643 = vshrl.u32 %v1586, 16
        %v1644 = vshrl.u32 %v1620, 16
        %v1645 = vpack.i.b16 %v1644, %v1643
        %v1649 = vpack.i.b16 %v1622, %v1588
        %v1651 = vshrl.u32 %v1588, 16
        %v1652 = vshrl.u32 %v1622, 16
        %v1653 = vpack.i.b16 %v1652, %v1651
        %v1655 = vcombine.low %v1625, %v1641
        %v1657 = vunpack.c.l.s4 1983009808
        %v1658 = vunpack.c.0.s8 %v1657
        %v1659 = vlaneseq
        %v1660 = vshrl.u32 %v1659, 7
        %v1661 = vsub.s32 %v1658, %v1660
        %v1662 = vrot.slane %v1655, %v1661
        %v1663 = vcombine.low %v1633, %v1649
        %v1665 = vunpack.c.l.s4 1983009808
        %v1666 = vunpack.c.0.s8 %v1665
        %v1667 = vlaneseq
        %v1668 = vshrl.u32 %v1667, 7
        %v1669 = vsub.s32 %v1666, %v1668
        %v1670 = vrot.slane %v1663, %v1669
        %v1671 = vcombine.low %v1662, %v1670
        %v1673 = vunpack.c.l.s4 1934713408
        %v1674 = vunpack.c.0.s8 %v1673
        %v1675 = vlaneseq
        %v1676 = vshrl.u32 %v1675, 7
        %v1677 = vsub.s32 %v1674, %v1676
        %v1678 = vrot.slane %v1671, %v1677
        %v1679 = vcombine.high %v1678, 0
        %v1680 = vcombine.low %v1629, %v1645
        %v1682 = vunpack.c.l.s4 1983009808
        %v1683 = vunpack.c.0.s8 %v1682
        %v1684 = vlaneseq
        %v1685 = vshrl.u32 %v1684, 7
        %v1686 = vsub.s32 %v1683, %v1685
        %v1687 = vrot.slane %v1680, %v1686
        %v1688 = vcombine.low %v1637, %v1653
        %v1690 = vunpack.c.l.s4 1983009808
        %v1691 = vunpack.c.0.s8 %v1690
        %v1692 = vlaneseq
        %v1693 = vshrl.u32 %v1692, 7
        %v1694 = vsub.s32 %v1691, %v1693
        %v1695 = vrot.slane %v1688, %v1694
        %v1696 = vcombine.low %v1687, %v1695
        %v1698 = vunpack.c.l.s4 1934713408
        %v1699 = vunpack.c.0.s8 %v1698
        %v1700 = vlaneseq
        %v1701 = vshrl.u32 %v1700, 7
        %v1702 = vsub.s32 %v1699, %v1701
        %v1703 = vrot.slane %v1696, %v1702
        %v1704 = vcombine.high %v1703, 0
        %v1707 = vpack.i.b16 %v1703, %v1678
        %v1708 = vshrl.u32 %v1678, 16
        %v1709 = vshrl.u32 %v1703, 16
        %v1710 = vpack.i.b16 %v1709, %v1708
        %v1713 = vpack.i.b16 %v1704, %v1679
        %v1714 = vshrl.u32 %v1679, 16
        %v1715 = vshrl.u32 %v1704, 16
        %v1716 = vpack.i.b16 %v1715, %v1714
        %1717 = vrot.lane.b32.xlu0 %v1710, 8
        %v1718 = vpop.permute.xlu0 %1717
        %1719 = vrot.lane.b32.xlu0 %v1713, 16
        %v1720 = vpop.permute.xlu0 %1719
        %1721 = vrot.lane.b32.xlu0 %v1716, 24
        %v1722 = vpop.permute.xlu0 %1721
        %v1725 = vsel %vm1137, %v1707, %v1718
        %vm1726 = vcmask 130048
        %v1728 = vsel %vm1726, %v1725, %v1720
        %vm1729 = vcmask 195584
        %v1731 = vsel %vm1729, %v1728, %v1722
        %v1732 = vld [vmem:[%s4] sm:$0xf]
        %v1733 = vld [vmem:[%s4 + $0x4] sm:$0xf]
        %v1734 = vld [vmem:[%s4 + $0x8] sm:$0xf]
        %v1735 = vld [vmem:[%s4 + $0xc] sm:$0xf]
        %v1736 = vld [vmem:[%s5] sm:$0x1]
        %v1738 = vlaneseq
        %v1739 = vshrl.u32 %v1738, 7
        %v1740 = vsub.s32 0, %v1739
        %v1741 = vrot.slane %v1736, %v1740
        %v1747 = vunpack.c.l.b16 %v1732
        %v1748 = vunpack.c.l.b16 %v1733
        %v1749 = vunpack.c.l.b16 %v1734
        %v1750 = vunpack.c.l.b16 %v1735
        %v1751 = vpack.c.b16 %v1748, %v1747
        %v1752 = vpack.c.b16 %v1750, %v1749
        %v1755 = vsel %vm575, %v1731, 0
        %1757 = vmatprep.subr.bf16.mxu0 0
        %1758 = vmatpush1.bf16.msra.mxu0 0
        %1759 = vmatprep.subr.bf16.mxu0 0
        %1760 = vmatpush1.bf16.msra.mxu0 0
        %1761 = vmatprep.subr.bf16.mxu0 0
        %1762 = vmatpush1.bf16.msra.mxu0 0
        %1763 = vmatprep.subr.bf16.mxu0 0
        %1764 = vmatpush1.bf16.msra.mxu0 0
        %1765 = vmatprep.subr.bf16.mxu0 0
        %1766 = vmatpush1.bf16.msra.mxu0 0
        %1767 = vmatprep.subr.bf16.mxu0 0
        %1768 = vmatpush1.bf16.msra.mxu0 0
        %1769 = vmatprep.subr.bf16.mxu0 0
        %1770 = vmatpush1.bf16.msra.mxu0 %v1752
        %1771 = vmatprep.subr.bf16.mxu0 0
        %1772 = vmatpush1.bf16.msra.mxu0 %v1751
        %1773 = vmatprep.subr.bf16.mxu0 0
        %1774 = vmatpush2.bf16.msra.mxu0 0
        %1775 = vmatprep.subr.bf16.mxu0 0
        %1776 = vmatpush2.bf16.msra.mxu0 0
        %1777 = vmatprep.subr.bf16.mxu0 0
        %1778 = vmatpush2.bf16.msra.mxu0 0
        %1779 = vmatprep.subr.bf16.mxu0 0
        %1780 = vmatpush2.bf16.msra.mxu0 0
        %1781 = vmatprep.subr.bf16.mxu0 0
        %1782 = vmatpush2.bf16.msra.mxu0 0
        %1783 = vmatprep.subr.bf16.mxu0 0
        %1784 = vmatpush2.bf16.msra.mxu0 0
        %1785 = vmatprep.subr.bf16.mxu0 0
        %1786 = vmatpush2.bf16.msra.mxu0 0
        %1787 = vmatprep.subr.bf16.mxu0 0
        %1788 = vmatpush2.bf16.msra.mxu0 0
        %1789 = vmatprep.mubr.bf16.mxu0 0
        %1790 = vmatmul.mubr.bf16.gmra.mxu0 %v1755
        %v1791 = vpop.f32.mrf.mxu0
        %v1792 = vadd.f32 %v1741, %v1791
        %v1793 = vpop.f32.mrf.mxu0
        %v1794 = vpop.f32.mrf.mxu0
        %v1795 = vpop.f32.mrf.mxu0
        %1796 = vdwg.mxu0
        %v1797 = vadd.f32 %v550, %v1792
        %v1798 = vld [vmem:[#allocation5] sm:$0x1]
        %v1799 = vld [vmem:[#allocation7] sm:$0x1]
        %v1800 = vsel %vm575, %v1797, 0.0
        %1801 = vadd.xlane.f32.xlu0 %v1800
        %v1802 = vpop.xlane.xlu0 %1801
        %v1803 = vrcp.pop 32.0
        %v1804 = vmul.f32 %v1802, %v1803
        %v1805 = vsub.f32 %v1797, %v1804
        %v1806 = vmul.f32 %v1805, %v1805
        %v1807 = vsel %vm575, %v1806, 0.0
        %1808 = vadd.xlane.f32.xlu0 %v1807
        %v1809 = vpop.xlane.xlu0 %1808
        %v1810 = vmul.f32 %v1809, %v1803
        %v1811 = vadd.f32 %v1810, 1e-12
        %v1812 = vrsqrt.pop %v1811
        %v1813 = vmul.f32 %v1805, %v1812
        %v1815 = vlaneseq
        %v1816 = vshrl.u32 %v1815, 7
        %v1817 = vsub.s32 0, %v1816
        %v1818 = vrot.slane %v1798, %v1817
        %v1820 = vmul.f32 %v1818, %v1813
        %v1822 = vlaneseq
        %v1823 = vshrl.u32 %v1822, 7
        %v1824 = vsub.s32 0, %v1823
        %v1825 = vrot.slane %v1799, %v1824
        %v1827 = vadd.f32 %v1820, %v1825
        %v1828 = vpack.c.bf16 %v1827, %v1827
        %v1829 = vld [vmem:[#allocation8] sm:$0xf]
        %v1830 = vld [vmem:[#allocation8 + $0x4] sm:$0xf]
        %v1831 = vld [vmem:[#allocation8 + $0x8] sm:$0xf]
        %v1832 = vld [vmem:[#allocation8 + $0xc] sm:$0xf]
        %v1833 = vld [vmem:[#allocation10] sm:$0x1]
        %v1835 = vlaneseq
        %v1836 = vshrl.u32 %v1835, 7
        %v1837 = vsub.s32 0, %v1836
        %v1838 = vrot.slane %v1833, %v1837
        %v1844 = vunpack.c.l.b16 %v1829
        %v1845 = vunpack.c.l.b16 %v1830
        %v1846 = vunpack.c.l.b16 %v1831
        %v1847 = vunpack.c.l.b16 %v1832
        %v1848 = vpack.c.b16 %v1845, %v1844
        %v1849 = vpack.c.b16 %v1847, %v1846
        %v1853 = vsel %vm575, %v1828, 0
        %1855 = vmatprep.subr.bf16.mxu0 0
        %1856 = vmatpush1.bf16.msra.mxu0 0
        %1857 = vmatprep.subr.bf16.mxu0 0
        %1858 = vmatpush1.bf16.msra.mxu0 0
        %1859 = vmatprep.subr.bf16.mxu0 0
        %1860 = vmatpush1.bf16.msra.mxu0 0
        %1861 = vmatprep.subr.bf16.mxu0 0
        %1862 = vmatpush1.bf16.msra.mxu0 0
        %1863 = vmatprep.subr.bf16.mxu0 0
        %1864 = vmatpush1.bf16.msra.mxu0 0
        %1865 = vmatprep.subr.bf16.mxu0 0
        %1866 = vmatpush1.bf16.msra.mxu0 0
        %1867 = vmatprep.subr.bf16.mxu0 0
        %1868 = vmatpush1.bf16.msra.mxu0 %v1849
        %1869 = vmatprep.subr.bf16.mxu0 0
        %1870 = vmatpush1.bf16.msra.mxu0 %v1848
        %1871 = vmatprep.subr.bf16.mxu0 0
        %1872 = vmatpush2.bf16.msra.mxu0 0
        %1873 = vmatprep.subr.bf16.mxu0 0
        %1874 = vmatpush2.bf16.msra.mxu0 0
        %1875 = vmatprep.subr.bf16.mxu0 0
        %1876 = vmatpush2.bf16.msra.mxu0 0
        %1877 = vmatprep.subr.bf16.mxu0 0
        %1878 = vmatpush2.bf16.msra.mxu0 0
        %1879 = vmatprep.subr.bf16.mxu0 0
        %1880 = vmatpush2.bf16.msra.mxu0 0
        %1881 = vmatprep.subr.bf16.mxu0 0
        %1882 = vmatpush2.bf16.msra.mxu0 0
        %1883 = vmatprep.subr.bf16.mxu0 0
        %1884 = vmatpush2.bf16.msra.mxu0 0
        %1885 = vmatprep.subr.bf16.mxu0 0
        %1886 = vmatpush2.bf16.msra.mxu0 0
        %1887 = vmatprep.mubr.bf16.mxu0 0
        %1888 = vmatmul.mubr.bf16.gmra.mxu0 %v1853
        %v1889 = vpop.f32.mrf.mxu0
        %v1890 = vadd.f32 %v1838, %v1889
        %v1891 = vpop.f32.mrf.mxu0
        %v1892 = vpop.f32.mrf.mxu0
        %v1893 = vpop.f32.mrf.mxu0
        %1894 = vdwg.mxu0
        %v1895 = vmul.f32 %v1890, 0.5
        %v1896 = vrcp.pop 1.4142135
        %v1897 = vmul.f32 %v1890, %v1896
        %v1898 = verf.f32.pop %v1897
        %v1899 = vadd.f32 %v1898, 1.0
        %v1900 = vmul.f32 %v1895, %v1899
        %v1901 = vpack.c.bf16 %v1900, %v1900
        %v1902 = vld [vmem:[%s10] sm:$0xf]
        %v1903 = vld [vmem:[%s10 + $0x4] sm:$0xf]
        %v1904 = vld [vmem:[%s10 + $0x8] sm:$0xf]
        %v1905 = vld [vmem:[%s10 + $0xc] sm:$0xf]
        %v1906 = vld [vmem:[%s10 + $0x10] sm:$0xf]
        %v1907 = vld [vmem:[%s10 + $0x14] sm:$0xf]
        %v1908 = vld [vmem:[%s10 + $0x18] sm:$0xf]
        %v1909 = vld [vmem:[%s10 + $0x1c] sm:$0xf]
        %v1910 = vld [vmem:[%s11] sm:$0x1]
        %v1912 = vlaneseq
        %v1913 = vshrl.u32 %v1912, 7
        %v1914 = vsub.s32 0, %v1913
        %v1915 = vrot.slane %v1910, %v1914
        %v1925 = vunpack.c.l.b16 %v1902
        %v1926 = vunpack.c.l.b16 %v1903
        %v1927 = vunpack.c.l.b16 %v1904
        %v1928 = vunpack.c.l.b16 %v1905
        %v1929 = vunpack.c.l.b16 %v1906
        %v1930 = vunpack.c.l.b16 %v1907
        %v1931 = vunpack.c.l.b16 %v1908
        %v1932 = vunpack.c.l.b16 %v1909
        %v1933 = vpack.c.b16 %v1926, %v1925
        %v1934 = vpack.c.b16 %v1928, %v1927
        %v1935 = vpack.c.b16 %v1930, %v1929
        %v1936 = vpack.c.b16 %v1932, %v1931
        %vm1941 = vcmask 523264
        %v1943 = vsel %vm1941, %v1901, 0
        %1945 = vmatprep.subr.bf16.mxu0 0
        %1946 = vmatpush1.bf16.msra.mxu0 0
        %1947 = vmatprep.subr.bf16.mxu0 0
        %1948 = vmatpush1.bf16.msra.mxu0 0
        %1949 = vmatprep.subr.bf16.mxu0 0
        %1950 = vmatpush1.bf16.msra.mxu0 0
        %1951 = vmatprep.subr.bf16.mxu0 0
        %1952 = vmatpush1.bf16.msra.mxu0 0
        %1953 = vmatprep.subr.bf16.mxu0 0
        %1954 = vmatpush1.bf16.msra.mxu0 %v1936
        %1955 = vmatprep.subr.bf16.mxu0 0
        %1956 = vmatpush1.bf16.msra.mxu0 %v1935
        %1957 = vmatprep.subr.bf16.mxu0 0
        %1958 = vmatpush1.bf16.msra.mxu0 %v1934
        %1959 = vmatprep.subr.bf16.mxu0 0
        %1960 = vmatpush1.bf16.msra.mxu0 %v1933
        %1961 = vmatprep.subr.bf16.mxu0 0
        %1962 = vmatpush2.bf16.msra.mxu0 0
        %1963 = vmatprep.subr.bf16.mxu0 0
        %1964 = vmatpush2.bf16.msra.mxu0 0
        %1965 = vmatprep.subr.bf16.mxu0 0
        %1966 = vmatpush2.bf16.msra.mxu0 0
        %1967 = vmatprep.subr.bf16.mxu0 0
        %1968 = vmatpush2.bf16.msra.mxu0 0
        %1969 = vmatprep.subr.bf16.mxu0 0
        %1970 = vmatpush2.bf16.msra.mxu0 0
        %1971 = vmatprep.subr.bf16.mxu0 0
        %1972 = vmatpush2.bf16.msra.mxu0 0
        %1973 = vmatprep.subr.bf16.mxu0 0
        %1974 = vmatpush2.bf16.msra.mxu0 0
        %1975 = vmatprep.subr.bf16.mxu0 0
        %1976 = vmatpush2.bf16.msra.mxu0 0
        %1977 = vmatprep.mubr.bf16.mxu0 0
        %1978 = vmatmul.mubr.bf16.gmra.mxu0 %v1943
        %v1979 = vpop.f32.mrf.mxu0
        %v1980 = vadd.f32 %v1915, %v1979
        %v1981 = vpop.f32.mrf.mxu0
        %v1982 = vpop.f32.mrf.mxu0
        %v1983 = vpop.f32.mrf.mxu0
        %1984 = vdwg.mxu0
        %v1985 = vadd.f32 %v1827, %v1980
        %v1986 = vld [vmem:[%s12] sm:$0x1]
        %v1987 = vld [vmem:[%s13] sm:$0x1]
        %v1988 = vsel %vm575, %v1985, 0.0
        %1989 = vadd.xlane.f32.xlu0 %v1988
        %v1990 = vpop.xlane.xlu0 %1989
        %v1991 = vmul.f32 %v1990, %v1803
        %v1992 = vsub.f32 %v1985, %v1991
        %v1993 = vmul.f32 %v1992, %v1992
        %v1994 = vsel %vm575, %v1993, 0.0
        %1995 = vadd.xlane.f32.xlu0 %v1994
        %v1996 = vpop.xlane.xlu0 %1995
        %v1997 = vmul.f32 %v1996, %v1803
        %v1998 = vadd.f32 %v1997, 1e-12
        %v1999 = vrsqrt.pop %v1998
        %v2000 = vmul.f32 %v1992, %v1999
        %v2002 = vlaneseq
        %v2003 = vshrl.u32 %v2002, 7
        %v2004 = vsub.s32 0, %v2003
        %v2005 = vrot.slane %v1986, %v2004
        %v2007 = vmul.f32 %v2005, %v2000
        %v2009 = vlaneseq
        %v2010 = vshrl.u32 %v2009, 7
        %v2011 = vsub.s32 0, %v2010
        %v2012 = vrot.slane %v1987, %v2011
        %v2014 = vadd.f32 %v2007, %v2012
        %2015 = vst.msk [vmem:[%s544] sm:$0xff] %vm575, %v2014
        %s2016 = sand.u32 %s345, 1
        %s2017 = scalar_lea.sflag [#allocation4], %s2016
        %s2018 = sand.u32 %s345, 1
        %s2019 = smul.addr %s2018, 8
        %s2020 = scalar_lea.vmem [#allocation11], %s2019
        // Predicated region
        $region97: #{tpu_custom_call.1} parent=75 // pred_check
          %p2021 = pneg %p355
        $region98: #{tpu_custom_call.1} parent=75 // pred_check_branch
          %2023 = sbr.rel (%p2021) target = $region100
        $region99: #{tpu_custom_call.1} parent=75 // pred_region
          %s2025 = ssub.s32 128, 128
          %2026 = vsyncadd %s2017, %s2025
          %s2027 = smul.addr %s33, 128
          %s2028 = scalar_lea.hbm %s14, %s2027
          %s2030 = sshll.u32 %s2020, 4
          %s2031 = int_to_ptr.vmem [resolvable:$true] %s2030
          %2033 = dma.vmem_to_hbm [thread:$0]  %s2031, 128, %s2028, %s2017
        $region100: #{tpu_custom_call.1} parent=75 // pred_fallthru
          _
      $region76: #{tpu_custom_call.1} parent=5 // pred_fallthru
        _
      %p2034 = scmp.le.s32.totalorder 2, %s28
      // Predicated region
      $region101: #{tpu_custom_call.1} parent=5 // pred_check
        %p2035 = pneg %p2034
      $region102: #{tpu_custom_call.1} parent=5 // pred_check_branch
        %2037 = sbr.rel (%p2035) target = $region104
      $region103: #{tpu_custom_call.1} parent=5 // pred_region
        %s2038 = ssub.s32 %s28, 2
        // Predicated region
        $region105: #{tpu_custom_call.1} parent=103 // pred_check
          %p2039 = pneg %p361
        $region106: #{tpu_custom_call.1} parent=103 // pred_check_branch
          %2041 = sbr.rel (%p2039) target = $region108
        $region107: #{tpu_custom_call.1} parent=103 // pred_region
          %s2042 = sand.u32 %s346, 1
          %s2043 = scalar_lea.sflag [#allocation4], %s2042
          %s2044 = sand.u32 %s346, 1
          %s2045 = smul.addr %s2044, 8
          %s2046 = scalar_lea.vmem [#allocation11], %s2045
          %2047 = dma.done %s2043, 128
        $region108: #{tpu_custom_call.1} parent=103 // pred_fallthru
          _
      $region104: #{tpu_custom_call.1} parent=5 // pred_fallthru
        _
    $region6: #{tpu_custom_call.1} parent=1 // loop_footer
      %s32 = sadd.s32 1, %s28
    $region7: #{tpu_custom_call.1} parent=1 // loop_footer_branch
      %27 = sbr.rel target = $region3
    $region8: #{tpu_custom_call.1} parent=1 // loop_exit
      _
    %2048 = vsyncpa [#allocation3], 1
    %s2049 = scalar_lea.sflag [#allocation3], 1
    %2050 = vsyncpa %s2049, 1
    %2051 = vsyncpa [#allocation6], 1
    %2052 = vsyncpa [#allocation9], 1
    %2053 = vsyncpa [#allocation4], 1
    %s2054 = scalar_lea.sflag [#allocation4], 1
    %2055 = vsyncpa %s2054, 1

</llo_original>
